<compile_context>
chip_gen: v7x
topology: tpu7x:2x2x1
jax: 0.10.0
libtpu: 0.0.40
codegen_flags: <defaults>
</compile_context>

<pallas_src>
import functools

import jax
import jax.numpy as jnp
from jax.experimental import pallas as pl
from jax.experimental.pallas import tpu as pltpu


def _round_up(x, m):
    return (x + m - 1) // m * m


# ----------------------------------------------------------------------------- kernel
def _decoder_kernel(xh_ref, l_ref, clim_ref, p_ref, out_ref, *, H, N, Hp, wmeta, bmeta):
    f32 = jnp.float32

    def W(name):                       # full-(8,128)-tile static slice of the weight slab
        r0, r, c = wmeta[name]
        return p_ref[r0:r0 + r, 0:c]

    def Bias(name):                    # (1, c) row vector
        r, c = bmeta[name]
        return p_ref[r:r + 1, 0:c]

    xh = xh_ref[...]                   # (Bt, Np, Fp)
    Bt, Np, Fp = xh.shape

    # ret = relu(fc(cat(x, h)))                                    (Bt*Np, Hp)
    ret2d = jnp.dot(xh.reshape(Bt * Np, Fp), W("fc"),
                    preferred_element_type=f32) + Bias("fc")
    ret2d = jnp.maximum(ret2d, 0.0)
    ret = ret2d.reshape(Bt, Np, Hp)    # Np is a multiple of 8 -> layout no-op

    # interpolation = bmm(ret^T, l); padded stations carry l == 0.
    interp = jnp.sum(ret * l_ref[...], axis=1)                     # (Bt, Hp)

    # embed(climate)
    embed = jnp.dot(clim_ref[...], W("embed"),
                    preferred_element_type=f32) + Bias("embed")    # (Bt, Hp)

    # fused [query_local | query]; split boundary is lane-aligned at Hp.
    q_all = (jnp.dot(interp, W("q_i"), preferred_element_type=f32)
             + jnp.dot(embed, W("q_e"), preferred_element_type=f32)
             + Bias("q"))                                          # (Bt, 2*Hp)
    q_local = q_all[:, :Hp]
    q_glob = q_all[:, Hp:]

    # ---- local branch (reassociated: no transpose, b_kl dropped by shift invariance) ----
    p3 = jnp.sum(q_local[:, None, :] * W("kl")[None, :, :],
                 axis=-1, keepdims=True)                           # (Bt, Np, 1)
    sc_l = jnp.sum(ret * p3, axis=1)                               # (Bt, Hp)
    if H != Hp:                                                    # mask padded lanes
        lane = jax.lax.broadcasted_iota(jnp.int32, (Bt, Hp), 1)
        sc_l = jnp.where(lane < H, sc_l, -1e30)
    sc_l = sc_l - jnp.max(sc_l, axis=-1, keepdims=True)
    e_l = jnp.exp(sc_l)
    w_l = e_l * pl.reciprocal(jnp.sum(e_l, axis=-1, keepdims=True), approx=True)
    g = jnp.sum(ret * w_l[:, None, :], axis=-1)                    # (Bt, Np)
    av_local = jnp.dot(g, W("vl"), preferred_element_type=f32) + Bias("vl")   # (Bt, Hp)

    # ---- global branch: fused [key | value]; split boundary at Hp ----
    kv = (jnp.dot(ret2d, W("kv"), preferred_element_type=f32)
          + Bias("kv")).reshape(Bt, Np, 2 * Hp)
    key_g = kv[:, :, :Hp]
    val_g = kv[:, :, Hp:]
    sc_g = jnp.sum(key_g * q_glob[:, None, :], axis=-1, keepdims=True)        # (Bt, Np, 1)
    if N != Np:                                                    # mask padded stations
        st = jax.lax.broadcasted_iota(jnp.int32, (Bt, Np, 1), 1)
        sc_g = jnp.where(st < N, sc_g, -1e30)
    sc_g = sc_g - jnp.max(sc_g, axis=1, keepdims=True)
    e_g = jnp.exp(sc_g)
    w_g = e_g * pl.reciprocal(jnp.sum(e_g, axis=1, keepdims=True), approx=True)
    av_glob = jnp.sum(w_g * val_g, axis=1)                         # (Bt, Hp)

    # ---- head: 128-aligned lane concat, padded weight rows are zero ----
    feat = jnp.concatenate([av_local, av_glob, embed], axis=-1)    # (Bt, 3*Hp)
    hid = jnp.maximum(jnp.dot(feat, W("lin"), preferred_element_type=f32)
                      + Bias("lin"), 0.0)
    out_ref[...] = (jnp.dot(hid, W("lin2"), preferred_element_type=f32)
                    + Bias("lin2")).astype(out_ref.dtype)          # (Bt, Op) lane-dense


# ----------------------------------------------------------------------------- packing
def _pack_params(params):
    """Fuse + pack all weights/biases into one (R, C) f32 slab.

    Every block is padded to (8k, 128m) extents so in-kernel slices are full-tile
    loads; fused output boundaries sit at 128-lane offsets; key_local/value_local
    are row-padded to Np with zeros so padded stations contribute exactly zero;
    key_local's bias is dropped (it shifts all local scores equally -> softmax
    invariant).
    """
    W_fc, b_fc = params["fc"]
    W_em, b_em = params["embed"]
    W_ql, b_ql = params["query_local"]
    W_q, b_q = params["query"]
    W_kl, _ = params["key_local"]          # bias intentionally dropped
    W_vl, b_vl = params["value_local"]
    W_k, b_k = params["key"]
    W_v, b_v = params["value"]
    W_lin, b_lin = params["linear"]
    W_l2, b_l2 = params["linear2"]

    in_ft, H = W_fc.shape
    n_features = W_em.shape[0]
    N = W_kl.shape[0]
    fc_hid = W_lin.shape[1]
    out_ft = W_l2.shape[1]

    Hp = _round_up(H, 128)
    Fp = _round_up(in_ft, 8)
    NFp = _round_up(n_features, 8)
    Np = _round_up(N, 8)
    FHp = _round_up(fc_hid, 128)
    Op = _round_up(out_ft, 128)

    def block(rows, cols, pieces):
        b = jnp.zeros((rows, cols), jnp.float32)
        for sub, r0, c0 in pieces:
            b = b.at[r0:r0 + sub.shape[0], c0:c0 + sub.shape[1]].set(sub.astype(jnp.float32))
        return b

    def brow(cols, pieces):
        b = jnp.zeros((cols,), jnp.float32)
        for sub, c0 in pieces:
            b = b.at[c0:c0 + sub.shape[0]].set(sub.astype(jnp.float32))
        return b

    weights = [
        ("fc",    block(Fp, Hp, [(W_fc, 0, 0)])),
        ("embed", block(NFp, Hp, [(W_em, 0, 0)])),
        ("q_i",   block(Hp, 2 * Hp, [(W_ql[:H], 0, 0), (W_q[:H], 0, Hp)])),
        ("q_e",   block(Hp, 2 * Hp, [(W_ql[H:], 0, 0), (W_q[H:], 0, Hp)])),
        ("kl",    block(Np, Hp, [(W_kl, 0, 0)])),
        ("vl",    block(Np, Hp, [(W_vl, 0, 0)])),
        ("kv",    block(Hp, 2 * Hp, [(W_k, 0, 0), (W_v, 0, Hp)])),
        ("lin",   block(3 * Hp, FHp, [(W_lin[:H], 0, 0),
                                      (W_lin[H:2 * H], Hp, 0),
                                      (W_lin[2 * H:], 2 * Hp, 0)])),
        ("lin2",  block(FHp, Op, [(W_l2, 0, 0)])),
    ]
    biases = [
        ("fc",    brow(Hp, [(b_fc, 0)])),
        ("embed", brow(Hp, [(b_em, 0)])),
        ("q",     brow(2 * Hp, [(b_ql, 0), (b_q, Hp)])),
        ("vl",    brow(Hp, [(b_vl, 0)])),
        ("kv",    brow(2 * Hp, [(b_k, 0), (b_v, Hp)])),
        ("lin",   brow(FHp, [(b_lin, 0)])),
        ("lin2",  brow(Op, [(b_l2, 0)])),
    ]

    C = _round_up(max(max(w.shape[1] for _, w in weights),
                      max(b.shape[0] for _, b in biases)), 128)

    rows, wmeta, bmeta = [], {}, {}
    r0 = 0
    for name, w in weights:
        r, c = w.shape
        rows.append(jnp.pad(w, ((0, 0), (0, C - c))))
        wmeta[name] = (r0, r, c)
        r0 += r
    brows = []
    for i, (name, b) in enumerate(biases):
        c = b.shape[0]
        brows.append(jnp.pad(b, (0, C - c))[None, :])
        bmeta[name] = (r0 + i, c)
    n_pad = _round_up(len(biases), 8) - len(biases)
    if n_pad:
        brows.append(jnp.zeros((n_pad, C), jnp.float32))
    slab = jnp.concatenate(rows + brows, axis=0)

    dims = dict(H=H, Hp=Hp, Fp=Fp, NFp=NFp, N=N, Np=Np, FHp=FHp,
                in_ft=in_ft, n_features=n_features, out_ft=out_ft, Op=Op)
    return slab, wmeta, bmeta, dims


# ----------------------------------------------------------------------------- params
def make_params(key, in_ft, out_ft, cnn_hid, fc_hid, n_features, num_input_stat):
    n_loc = num_input_stat - 1

    def linear(k, fan_in, fan_out):
        k1, k2 = jax.random.split(k)
        bound = 1.0 / float(fan_in) ** 0.5
        w = jax.random.uniform(k1, (fan_in, fan_out), jnp.float32, -bound, bound)
        b = jax.random.uniform(k2, (fan_out,), jnp.float32, -bound, bound)
        return w, b

    ks = jax.random.split(key, 10)
    return {
        "fc": linear(ks[0], in_ft, cnn_hid),
        "embed": linear(ks[1], n_features, cnn_hid),
        "query_local": linear(ks[2], 2 * cnn_hid, cnn_hid),
        "key_local": linear(ks[3], n_loc, cnn_hid),
        "value_local": linear(ks[4], n_loc, cnn_hid),
        "query": linear(ks[5], 2 * cnn_hid, cnn_hid),
        "key": linear(ks[6], cnn_hid, cnn_hid),
        "value": linear(ks[7], cnn_hid, cnn_hid),
        "linear": linear(ks[8], 3 * cnn_hid, fc_hid),
        "linear2": linear(ks[9], fc_hid, out_ft),
    }


# ----------------------------------------------------------------------------- wrapper
def local_global_decoder(x, h, l, climate, params, out_ft, block_b=32):
    """x: (B,T,N,Fx), h: (B,T,N,latent), l: (B,N), climate: (B,n_features) -> (B,out_ft)."""
    B, _, N, _ = x.shape
    slab, wmeta, bmeta, d = _pack_params(params)

    # Batch tiling: Bt*Np = 256 LHS rows per step for the fc / kv matmuls; raise
    # block_b for very large batches to amortise the ~0.35 us/step overhead.
    Bt = max(8, min(_round_up(B, 8), _round_up(block_b, 8)))
    Bp = _round_up(B, Bt)
    grid = (Bp // Bt,)

    xh = jnp.concatenate([x[:, -1], h[:, -1]], axis=-1).astype(jnp.float32)   # (B, N, in_ft)
    xh = jnp.pad(xh, ((0, Bp - B), (0, d["Np"] - N), (0, d["Fp"] - xh.shape[-1])))
    l3 = jnp.pad(l.astype(jnp.float32), ((0, Bp - B), (0, d["Np"] - N)))[:, :, None]
    clim = jnp.pad(climate.astype(jnp.float32),
                   ((0, Bp - B), (0, d["NFp"] - climate.shape[-1])))

    kernel = functools.partial(_decoder_kernel, H=d["H"], N=N, Hp=d["Hp"],
                               wmeta=wmeta, bmeta=bmeta)

    # Explicit VMEM budget: resident slab + double-buffered streamed tiles + headroom.
    tile_bytes = 4 * (Bt * d["Np"] * d["Fp"] + Bt * d["Np"] + Bt * d["NFp"] + Bt * d["Op"])
    vmem_limit = int(min(slab.size * 4 + 2 * tile_bytes + (8 << 20), 32 << 20))

    out = pl.pallas_call(
        kernel,
        out_shape=jax.ShapeDtypeStruct((Bp, d["Op"]), jnp.float32),
        grid=grid,
        in_specs=[
            pl.BlockSpec((Bt, d["Np"], d["Fp"]), lambda i: (i, 0, 0)),
            pl.BlockSpec((Bt, d["Np"], 1), lambda i: (i, 0, 0)),
            pl.BlockSpec((Bt, d["NFp"]), lambda i: (i, 0)),
            # Constant index_map -> weight slab fetched once, VMEM-resident across steps.
            pl.BlockSpec(slab.shape, lambda i: (0, 0)),
        ],
        out_specs=pl.BlockSpec((Bt, d["Op"]), lambda i: (i, 0)),   # lane-dense 128-wide stores
        compiler_params=pltpu.CompilerParams(
            dimension_semantics=("parallel",),                      # v7x: shard across both TCs
            vmem_limit_bytes=vmem_limit),
    )(xh, l3, clim, slab)
    return out[:B, :out_ft]


# ----------------------------------------------------------------------------- reference
def reference(x, h, l, climate, p):
    """Pure-JAX mirror of the torch forward, for validation."""
    xh = jnp.concatenate([x[:, -1], h[:, -1]], axis=-1)
    wfc, bfc = p["fc"]
    ret = jax.nn.relu(xh @ wfc + bfc)                            # (B, N, H)
    interp = jnp.einsum("bnh,bn->bh", ret, l)                    # bmm(ret^T, l)
    wem, bem = p["embed"]
    embed = climate @ wem + bem
    qcat = jnp.concatenate([interp, embed], axis=-1)
    wql, bql = p["query_local"]
    q_local = qcat @ wql + bql
    wq, bq = p["query"]
    q_glob = qcat @ wq + bq
    retT = jnp.transpose(ret, (0, 2, 1))                         # (B, H, N)
    wkl, bkl = p["key_local"]
    wvl, bvl = p["value_local"]
    key_l = retT @ wkl + bkl
    val_l = retT @ wvl + bvl
    w_l = jax.nn.softmax(jnp.einsum("bhk,bk->bh", key_l, q_local), axis=-1)
    av_l = jnp.einsum("bh,bhk->bk", w_l, val_l)
    wk, bk = p["key"]
    wv, bv = p["value"]
    key_g = ret @ wk + bk
    val_g = ret @ wv + bv
    w_g = jax.nn.softmax(jnp.einsum("bnk,bk->bn", key_g, q_glob), axis=-1)
    av_g = jnp.einsum("bn,bnk->bk", w_g, val_g)
    feat = jnp.concatenate([av_l, av_g, embed], axis=-1)
    wl, bl = p["linear"]
    hid = jax.nn.relu(feat @ wl + bl)
    w2, b2_ = p["linear2"]
    return hid @ w2 + b2_


if __name__ == "__main__":
    B, T = 128, 3                   # B=128 with block_b=32 -> grid of 4 parallel steps
    n_features = 7
    num_input_stat = 7
    N = num_input_stat - 1          # 6 stations (padded to 8 inside the wrapper)
    cnn_hid, fc_hid = 32, 16
    Fx, latent = 5, 11
    in_ft = Fx + latent             # fc input = cat(x, h)
    out_ft = 2

    key = jax.random.PRNGKey(0)
    kx, kh, kl, kc, kp = jax.random.split(key, 5)
    x = jax.random.normal(kx, (B, T, N, Fx), jnp.float32)
    h = jax.random.normal(kh, (B, T, N, latent), jnp.float32)
    l = jax.random.uniform(kl, (B, N), jnp.float32)
    climate = jax.random.normal(kc, (B, n_features), jnp.float32)
    params = make_params(kp, in_ft, out_ft, cnn_hid, fc_hid, n_features, num_input_stat)

    run = jax.jit(functools.partial(local_global_decoder, out_ft=out_ft))
    out = jax.block_until_ready(run(x, h, l, climate, params))
    ref = reference(x, h, l, climate, params)
    assert out.shape == (B, out_ft), out.shape
    # Tolerance leaves headroom for the approximate (EUP) softmax reciprocal.
    assert jnp.allclose(out, ref, rtol=5e-3, atol=5e-3), (out, ref)
    print("KERNEL_OK")
</pallas_src>

<mosaic_0001>
module attributes {stable_mosaic.version = 11 : i64} {
  func.func @_decoder_kernel(%arg0: i32, %arg1: memref<32x8x16xf32, #tpu.memory_space<vmem>>, %arg2: memref<32x8x1xf32, #tpu.memory_space<vmem>>, %arg3: memref<32x8xf32, #tpu.memory_space<vmem>>, %arg4: memref<944x256xf32, #tpu.memory_space<vmem>>, %arg5: memref<32x128xf32, #tpu.memory_space<vmem>>) attributes {dimension_semantics = [#tpu.dimension_semantics<parallel>], iteration_bounds = array<i64: 4>, scalar_prefetch = 0 : i64, scratch_operands = 0 : i64, tpu.core_type = #tpu.core_type<tc>, window_params = [{transform_indices = @transform_0, window_bounds = array<i64: 32, 8, 16>}, {transform_indices = @transform_1, window_bounds = array<i64: 32, 8, 1>}, {transform_indices = @transform_2, window_bounds = array<i64: 32, 8>}, {pipeline_mode = #tpu.pipeline_mode<synchronous>, transform_indices = @transform_3, window_bounds = array<i64: 944, 256>}, {transform_indices = @transform_4, window_bounds = array<i64: 32, 128>}]} {
    %c0 = arith.constant 0 : index
    %c0_0 = arith.constant 0 : index
    %c0_1 = arith.constant 0 : index
    %0 = vector.load %arg1[%c0, %c0_0, %c0_1] : memref<32x8x16xf32, #tpu.memory_space<vmem>>, vector<32x8x16xf32>
    %1 = vector.shape_cast %0 : vector<32x8x16xf32> to vector<256x16xf32>
    %c0_2 = arith.constant 0 : index
    %c0_3 = arith.constant 0 : index
    %2 = vector.load %arg4[%c0_2, %c0_3] : memref<944x256xf32, #tpu.memory_space<vmem>>, vector<16x128xf32>
    %cst = arith.constant dense<0.000000e+00> : vector<256x128xf32>
    %3 = tpu.matmul %1, %2, %cst {dimension_numbers = #tpu.dot_dimension_numbers<[1], [0], [0], [1], [0, 0, 1, 1], [], []>} : vector<256x16xf32>, vector<16x128xf32>, vector<256x128xf32> -> vector<256x128xf32>
    %c936 = arith.constant 936 : index
    %c0_4 = arith.constant 0 : index
    %4 = vector.load %arg4[%c936, %c0_4] : memref<944x256xf32, #tpu.memory_space<vmem>>, vector<1x128xf32>
    %5 = vector.broadcast %4 : vector<1x128xf32> to vector<256x128xf32>
    %6 = arith.addf %3, %5 : vector<256x128xf32>
    %cst_5 = arith.constant 0.000000e+00 : f32
    %7 = vector.broadcast %cst_5 : f32 to vector<256x128xf32>
    %8 = arith.maximumf %6, %7 : vector<256x128xf32>
    %9 = vector.shape_cast %8 : vector<256x128xf32> to vector<32x8x128xf32>
    %c0_6 = arith.constant 0 : index
    %c0_7 = arith.constant 0 : index
    %c0_8 = arith.constant 0 : index
    %10 = vector.load %arg2[%c0_6, %c0_7, %c0_8] : memref<32x8x1xf32, #tpu.memory_space<vmem>>, vector<32x8x1xf32>
    %11 = vector.broadcast %10 : vector<32x8x1xf32> to vector<32x8x128xf32>
    %12 = arith.mulf %9, %11 : vector<32x8x128xf32>
    %cst_9 = arith.constant dense<0.000000e+00> : vector<32x128xf32>
    %13 = vector.multi_reduction <add>, %12, %cst_9 [1] : vector<32x8x128xf32> to vector<32x128xf32>
    %c0_10 = arith.constant 0 : index
    %c0_11 = arith.constant 0 : index
    %14 = vector.load %arg3[%c0_10, %c0_11] : memref<32x8xf32, #tpu.memory_space<vmem>>, vector<32x8xf32>
    %c16 = arith.constant 16 : index
    %c0_12 = arith.constant 0 : index
    %15 = vector.load %arg4[%c16, %c0_12] : memref<944x256xf32, #tpu.memory_space<vmem>>, vector<8x128xf32>
    %cst_13 = arith.constant dense<0.000000e+00> : vector<32x128xf32>
    %16 = tpu.matmul %14, %15, %cst_13 {dimension_numbers = #tpu.dot_dimension_numbers<[1], [0], [0], [1], [0, 0, 1, 1], [], []>} : vector<32x8xf32>, vector<8x128xf32>, vector<32x128xf32> -> vector<32x128xf32>
    %c937 = arith.constant 937 : index
    %c0_14 = arith.constant 0 : index
    %17 = vector.load %arg4[%c937, %c0_14] : memref<944x256xf32, #tpu.memory_space<vmem>>, vector<1x128xf32>
    %18 = vector.broadcast %17 : vector<1x128xf32> to vector<32x128xf32>
    %19 = arith.addf %16, %18 : vector<32x128xf32>
    %c24 = arith.constant 24 : index
    %c0_15 = arith.constant 0 : index
    %20 = vector.load %arg4[%c24, %c0_15] : memref<944x256xf32, #tpu.memory_space<vmem>>, vector<128x256xf32>
    %cst_16 = arith.constant dense<0.000000e+00> : vector<32x256xf32>
    %21 = tpu.matmul %13, %20, %cst_16 {dimension_numbers = #tpu.dot_dimension_numbers<[1], [0], [0], [1], [0, 0, 1, 1], [], []>} : vector<32x128xf32>, vector<128x256xf32>, vector<32x256xf32> -> vector<32x256xf32>
    %c152 = arith.constant 152 : index
    %c0_17 = arith.constant 0 : index
    %22 = vector.load %arg4[%c152, %c0_17] : memref<944x256xf32, #tpu.memory_space<vmem>>, vector<128x256xf32>
    %cst_18 = arith.constant dense<0.000000e+00> : vector<32x256xf32>
    %23 = tpu.matmul %19, %22, %cst_18 {dimension_numbers = #tpu.dot_dimension_numbers<[1], [0], [0], [1], [0, 0, 1, 1], [], []>} : vector<32x128xf32>, vector<128x256xf32>, vector<32x256xf32> -> vector<32x256xf32>
    %24 = arith.addf %21, %23 : vector<32x256xf32>
    %c938 = arith.constant 938 : index
    %c0_19 = arith.constant 0 : index
    %25 = vector.load %arg4[%c938, %c0_19] : memref<944x256xf32, #tpu.memory_space<vmem>>, vector<1x256xf32>
    %26 = vector.broadcast %25 : vector<1x256xf32> to vector<32x256xf32>
    %27 = arith.addf %24, %26 : vector<32x256xf32>
    %28 = vector.extract_strided_slice %27 {offsets = [0, 0], sizes = [32, 128], strides = [1, 1]} : vector<32x256xf32> to vector<32x128xf32>
    %29 = vector.extract_strided_slice %27 {offsets = [0, 128], sizes = [32, 128], strides = [1, 1]} : vector<32x256xf32> to vector<32x128xf32>
    %30 = vector.shape_cast %28 : vector<32x128xf32> to vector<32x1x128xf32>
    %c280 = arith.constant 280 : index
    %c0_20 = arith.constant 0 : index
    %31 = vector.load %arg4[%c280, %c0_20] : memref<944x256xf32, #tpu.memory_space<vmem>>, vector<8x128xf32>
    %32 = vector.shape_cast %31 : vector<8x128xf32> to vector<1x8x128xf32>
    %33 = vector.broadcast %30 : vector<32x1x128xf32> to vector<32x8x128xf32>
    %34 = vector.broadcast %32 : vector<1x8x128xf32> to vector<32x8x128xf32>
    %35 = arith.mulf %33, %34 : vector<32x8x128xf32>
    %cst_21 = arith.constant dense<0.000000e+00> : vector<32x8xf32>
    %36 = vector.multi_reduction <add>, %35, %cst_21 [2] : vector<32x8x128xf32> to vector<32x8xf32>
    %37 = vector.shape_cast %36 : vector<32x8xf32> to vector<32x8x1xf32>
    %38 = vector.broadcast %37 : vector<32x8x1xf32> to vector<32x8x128xf32>
    %39 = arith.mulf %9, %38 : vector<32x8x128xf32>
    %cst_22 = arith.constant dense<0.000000e+00> : vector<32x128xf32>
    %40 = vector.multi_reduction <add>, %39, %cst_22 [1] : vector<32x8x128xf32> to vector<32x128xf32>
    %41 = tpu.iota {dimensions = array<i32: 1>} : vector<32x128xi32>
    %c32_i32 = arith.constant 32 : i32
    %42 = vector.broadcast %c32_i32 : i32 to vector<32x128xi32>
    %43 = arith.cmpi slt, %41, %42 : vector<32x128xi32>
    %cst_23 = arith.constant -1.000000e+30 : f32
    %44 = vector.broadcast %cst_23 : f32 to vector<32x128xf32>
    %45 = arith.select %43, %40, %44 : vector<32x128xi1>, vector<32x128xf32>
    %cst_24 = arith.constant dense<0xFF800000> : vector<32xf32>
    %46 = vector.multi_reduction <maximumf>, %45, %cst_24 [1] : vector<32x128xf32> to vector<32xf32>
    %47 = vector.shape_cast %46 : vector<32xf32> to vector<32x1xf32>
    %48 = vector.broadcast %47 : vector<32x1xf32> to vector<32x128xf32>
    %49 = arith.subf %45, %48 : vector<32x128xf32>
    %50 = math.exp %49 : vector<32x128xf32>
    %cst_25 = arith.constant dense<0.000000e+00> : vector<32xf32>
    %51 = vector.multi_reduction <add>, %50, %cst_25 [1] : vector<32x128xf32> to vector<32xf32>
    %52 = vector.shape_cast %51 : vector<32xf32> to vector<32x1xf32>
    %53 = tpu.reciprocal %52 {approx = true} : vector<32x1xf32> -> vector<32x1xf32>
    %54 = vector.broadcast %53 : vector<32x1xf32> to vector<32x128xf32>
    %55 = arith.mulf %50, %54 : vector<32x128xf32>
    %56 = vector.shape_cast %55 : vector<32x128xf32> to vector<32x1x128xf32>
    %57 = vector.broadcast %56 : vector<32x1x128xf32> to vector<32x8x128xf32>
    %58 = arith.mulf %9, %57 : vector<32x8x128xf32>
    %cst_26 = arith.constant dense<0.000000e+00> : vector<32x8xf32>
    %59 = vector.multi_reduction <add>, %58, %cst_26 [2] : vector<32x8x128xf32> to vector<32x8xf32>
    %c288 = arith.constant 288 : index
    %c0_27 = arith.constant 0 : index
    %60 = vector.load %arg4[%c288, %c0_27] : memref<944x256xf32, #tpu.memory_space<vmem>>, vector<8x128xf32>
    %cst_28 = arith.constant dense<0.000000e+00> : vector<32x128xf32>
    %61 = tpu.matmul %59, %60, %cst_28 {dimension_numbers = #tpu.dot_dimension_numbers<[1], [0], [0], [1], [0, 0, 1, 1], [], []>} : vector<32x8xf32>, vector<8x128xf32>, vector<32x128xf32> -> vector<32x128xf32>
    %c939 = arith.constant 939 : index
    %c0_29 = arith.constant 0 : index
    %62 = vector.load %arg4[%c939, %c0_29] : memref<944x256xf32, #tpu.memory_space<vmem>>, vector<1x128xf32>
    %63 = vector.broadcast %62 : vector<1x128xf32> to vector<32x128xf32>
    %64 = arith.addf %61, %63 : vector<32x128xf32>
    %c296 = arith.constant 296 : index
    %c0_30 = arith.constant 0 : index
    %65 = vector.load %arg4[%c296, %c0_30] : memref<944x256xf32, #tpu.memory_space<vmem>>, vector<128x256xf32>
    %cst_31 = arith.constant dense<0.000000e+00> : vector<256x256xf32>
    %66 = tpu.matmul %8, %65, %cst_31 {dimension_numbers = #tpu.dot_dimension_numbers<[1], [0], [0], [1], [0, 0, 1, 1], [], []>} : vector<256x128xf32>, vector<128x256xf32>, vector<256x256xf32> -> vector<256x256xf32>
    %c940 = arith.constant 940 : index
    %c0_32 = arith.constant 0 : index
    %67 = vector.load %arg4[%c940, %c0_32] : memref<944x256xf32, #tpu.memory_space<vmem>>, vector<1x256xf32>
    %68 = vector.broadcast %67 : vector<1x256xf32> to vector<256x256xf32>
    %69 = arith.addf %66, %68 : vector<256x256xf32>
    %70 = vector.shape_cast %69 : vector<256x256xf32> to vector<32x8x256xf32>
    %71 = vector.extract_strided_slice %70 {offsets = [0, 0, 0], sizes = [32, 8, 128], strides = [1, 1, 1]} : vector<32x8x256xf32> to vector<32x8x128xf32>
    %72 = vector.extract_strided_slice %70 {offsets = [0, 0, 128], sizes = [32, 8, 128], strides = [1, 1, 1]} : vector<32x8x256xf32> to vector<32x8x128xf32>
    %73 = vector.shape_cast %29 : vector<32x128xf32> to vector<32x1x128xf32>
    %74 = vector.broadcast %73 : vector<32x1x128xf32> to vector<32x8x128xf32>
    %75 = arith.mulf %71, %74 : vector<32x8x128xf32>
    %cst_33 = arith.constant dense<0.000000e+00> : vector<32x8xf32>
    %76 = vector.multi_reduction <add>, %75, %cst_33 [2] : vector<32x8x128xf32> to vector<32x8xf32>
    %77 = vector.shape_cast %76 : vector<32x8xf32> to vector<32x8x1xf32>
    %78 = tpu.iota {dimensions = array<i32: 1>} : vector<32x8x1xi32>
    %c6_i32 = arith.constant 6 : i32
    %79 = vector.broadcast %c6_i32 : i32 to vector<32x8x1xi32>
    %80 = arith.cmpi slt, %78, %79 : vector<32x8x1xi32>
    %cst_34 = arith.constant -1.000000e+30 : f32
    %81 = vector.broadcast %cst_34 : f32 to vector<32x8x1xf32>
    %82 = arith.select %80, %77, %81 : vector<32x8x1xi1>, vector<32x8x1xf32>
    %cst_35 = arith.constant dense<0xFF800000> : vector<32x1xf32>
    %83 = vector.multi_reduction <maximumf>, %82, %cst_35 [1] : vector<32x8x1xf32> to vector<32x1xf32>
    %84 = vector.shape_cast %83 : vector<32x1xf32> to vector<32x1x1xf32>
    %85 = vector.broadcast %84 : vector<32x1x1xf32> to vector<32x8x1xf32>
    %86 = arith.subf %82, %85 : vector<32x8x1xf32>
    %87 = math.exp %86 : vector<32x8x1xf32>
    %cst_36 = arith.constant dense<0.000000e+00> : vector<32x1xf32>
    %88 = vector.multi_reduction <add>, %87, %cst_36 [1] : vector<32x8x1xf32> to vector<32x1xf32>
    %89 = vector.shape_cast %88 : vector<32x1xf32> to vector<32x1x1xf32>
    %90 = tpu.reciprocal %89 {approx = true} : vector<32x1x1xf32> -> vector<32x1x1xf32>
    %91 = vector.broadcast %90 : vector<32x1x1xf32> to vector<32x8x1xf32>
    %92 = arith.mulf %87, %91 : vector<32x8x1xf32>
    %93 = vector.broadcast %92 : vector<32x8x1xf32> to vector<32x8x128xf32>
    %94 = arith.mulf %93, %72 : vector<32x8x128xf32>
    %cst_37 = arith.constant dense<0.000000e+00> : vector<32x128xf32>
    %95 = vector.multi_reduction <add>, %94, %cst_37 [1] : vector<32x8x128xf32> to vector<32x128xf32>
    %96 = tpu.concatenate %64, %95, %19 in 1 : vector<32x128xf32>, vector<32x128xf32>, vector<32x128xf32> -> vector<32x384xf32>
    %c424 = arith.constant 424 : index
    %c0_38 = arith.constant 0 : index
    %97 = vector.load %arg4[%c424, %c0_38] : memref<944x256xf32, #tpu.memory_space<vmem>>, vector<384x128xf32>
    %cst_39 = arith.constant dense<0.000000e+00> : vector<32x128xf32>
    %98 = tpu.matmul %96, %97, %cst_39 {dimension_numbers = #tpu.dot_dimension_numbers<[1], [0], [0], [1], [0, 0, 1, 1], [], []>} : vector<32x384xf32>, vector<384x128xf32>, vector<32x128xf32> -> vector<32x128xf32>
    %c941 = arith.constant 941 : index
    %c0_40 = arith.constant 0 : index
    %99 = vector.load %arg4[%c941, %c0_40] : memref<944x256xf32, #tpu.memory_space<vmem>>, vector<1x128xf32>
    %100 = vector.broadcast %99 : vector<1x128xf32> to vector<32x128xf32>
    %101 = arith.addf %98, %100 : vector<32x128xf32>
    %cst_41 = arith.constant 0.000000e+00 : f32
    %102 = vector.broadcast %cst_41 : f32 to vector<32x128xf32>
    %103 = arith.maximumf %101, %102 : vector<32x128xf32>
    %c808 = arith.constant 808 : index
    %c0_42 = arith.constant 0 : index
    %104 = vector.load %arg4[%c808, %c0_42] : memref<944x256xf32, #tpu.memory_space<vmem>>, vector<128x128xf32>
    %cst_43 = arith.constant dense<0.000000e+00> : vector<32x128xf32>
    %105 = tpu.matmul %103, %104, %cst_43 {dimension_numbers = #tpu.dot_dimension_numbers<[1], [0], [0], [1], [0, 0, 1, 1], [], []>} : vector<32x128xf32>, vector<128x128xf32>, vector<32x128xf32> -> vector<32x128xf32>
    %c942 = arith.constant 942 : index
    %c0_44 = arith.constant 0 : index
    %106 = vector.load %arg4[%c942, %c0_44] : memref<944x256xf32, #tpu.memory_space<vmem>>, vector<1x128xf32>
    %107 = vector.broadcast %106 : vector<1x128xf32> to vector<32x128xf32>
    %108 = arith.addf %105, %107 : vector<32x128xf32>
    %c0_45 = arith.constant 0 : index
    %c0_46 = arith.constant 0 : index
    %109 = vector.load %arg5[%c0_45, %c0_46] : memref<32x128xf32, #tpu.memory_space<vmem>>, vector<32x128xf32>
    tpu.vector_store %arg5[%c0_45, %c0_46], %108 {strides = array<i32>} : memref<32x128xf32, #tpu.memory_space<vmem>>, vector<32x128xf32>,
    return
  }
  func.func @transform_0(%arg0: i32) -> (i32, i32, i32) {
    %c0_i32 = arith.constant 0 : i32
    %c0_i32_0 = arith.constant 0 : i32
    %c0_i32_1 = arith.constant 0 : i32
    return %arg0, %c0_i32, %c0_i32_0 : i32, i32, i32
  }
  func.func @transform_1(%arg0: i32) -> (i32, i32, i32) {
    %c0_i32 = arith.constant 0 : i32
    %c0_i32_0 = arith.constant 0 : i32
    %c0_i32_1 = arith.constant 0 : i32
    return %arg0, %c0_i32, %c0_i32_0 : i32, i32, i32
  }
  func.func @transform_2(%arg0: i32) -> (i32, i32) {
    %c0_i32 = arith.constant 0 : i32
    %c0_i32_0 = arith.constant 0 : i32
    return %arg0, %c0_i32 : i32, i32
  }
  func.func @transform_3(%arg0: i32) -> (i32, i32) {
    %c0_i32 = arith.constant 0 : i32
    %c0_i32_0 = arith.constant 0 : i32
    %c0_i32_1 = arith.constant 0 : i32
    return %c0_i32, %c0_i32_0 : i32, i32
  }
  func.func @transform_4(%arg0: i32) -> (i32, i32) {
    %c0_i32 = arith.constant 0 : i32
    %c0_i32_0 = arith.constant 0 : i32
    return %arg0, %c0_i32 : i32, i32
  }
}

</mosaic_0001>

<llo_original>
// kernel: local_global_decoder.1
$region0: #{local_global_decoder.1}
  #allocation0 [shape = 'u32[]', space=smem, size = 0x4, offset = 0x4, fixed_abs, tag = 'smem constant byte address 0x4 - core index']
  #allocation1 [shape = 'u32[144,128]{1,0:T(1,128)}', space=vmem, size = 0x12000, scoped, tag = 'internal scratch']
  %s0 = inlined_call_operand.vmem [shape: f32[128,8,16], index: 0, kind: input, shape index: {}]
  %s1 = inlined_call_operand.vmem [shape: f32[128,8,1], index: 1, kind: input, shape index: {}]
  %s2 = inlined_call_operand.vmem [shape: f32[128,8], index: 2, kind: input, shape index: {}]
  %s3 = inlined_call_operand.vmem [shape: f32[944,256], index: 3, kind: input, shape index: {}]
  %s4 = inlined_call_operand.vmem [shape: f32[128,128], index: 4, kind: output, shape index: {}]
  %s5 = sld [smem:[#allocation0]]
  $region49: #{local_global_decoder.1} parent=0
    _
  %s7 = ssub.s32 1, %s5
  %s8 = scalar_select 0, %s7, %s5
  loop: start=0, step=1, limit=6
  $region2: #{local_global_decoder.1} parent=0 // loop_pre_header
    _
  $region3: #{local_global_decoder.1} parent=0 // loop_header
    %s10 = sphi 0, %s14
    %p11 = scmp.ge.s32.totalorder %s10, 6
    %s20 = sphi 0, %s22
    %s23 = sphi 0, %s20
    %s24 = sphi 0, %s23
    %s40 = sphi 0, %s24
    %s46 = sphi 0, %s48
    %s49 = sphi 0, %s46
    %s50 = sphi 0, %s49
    %s66 = sphi 0, %s50
    %s72 = sphi 0, %s74
    %s75 = sphi 0, %s72
    %s76 = sphi 0, %s75
    %s92 = sphi 0, %s76
    %s96 = sphi 0, %s96
    %s98 = sphi 0, %s96
    %s99 = sphi 0, %s98
    %s113 = sphi 0, %s99
    %s119 = sphi 0, %s121
    %s122 = sphi 0, %s119
    %s123 = sphi 0, %s122
    %s139 = sphi 0, %s123
  $region4: #{local_global_decoder.1} parent=0 // loop_header_branch
    %13 = sbr.rel (%p11) target = $region8
  $region5: #{local_global_decoder.1} parent=0 // loop_body
    %s15 = ssub.s32 %s10, 1
    %s16 = ssub.s32 %s10, 2
    %s17 = sadd.s32 %s10, 1
    %s18 = ssub.s32 %s10, %s17
    %p19 = scmp.eq.s32.totalorder %s18, 0
    %s21 = sadd.s32 %s20, 1
    %s22 = scalar_select %p19, %s20, %s21
    %p25 = pneg %p19
    %p26 = scmp.eq.s32.totalorder %s10, 3
    %p27 = por %p25, %p26
    %p28 = scmp.ne.s32.totalorder %s20, %s23
    %p29 = scmp.eq.s32.totalorder %s10, 0
    %p30 = por %p28, %p29
    %p31 = scmp.ne.s32.totalorder %s20, %s23
    %p32 = scmp.eq.s32.totalorder %s15, 3
    %p33 = por %p31, %p32
    %p34 = scmp.ne.s32.totalorder %s23, %s24
    %p35 = scmp.eq.s32.totalorder %s15, 0
    %p36 = por %p34, %p35
    %p37 = scmp.ne.s32.totalorder %s23, %s24
    %p38 = scmp.eq.s32.totalorder %s16, 3
    %p39 = por %p37, %p38
    %p41 = scmp.ne.s32.totalorder %s24, %s40
    %p42 = scmp.eq.s32.totalorder %s16, 0
    %p43 = por %p41, %p42
    %s44 = ssub.s32 %s10, %s17
    %p45 = scmp.eq.s32.totalorder %s44, 0
    %s47 = sadd.s32 %s46, 1
    %s48 = scalar_select %p45, %s46, %s47
    %p51 = pneg %p45
    %p52 = scmp.eq.s32.totalorder %s10, 3
    %p53 = por %p51, %p52
    %p54 = scmp.ne.s32.totalorder %s46, %s49
    %p55 = scmp.eq.s32.totalorder %s10, 0
    %p56 = por %p54, %p55
    %p57 = scmp.ne.s32.totalorder %s46, %s49
    %p58 = scmp.eq.s32.totalorder %s15, 3
    %p59 = por %p57, %p58
    %p60 = scmp.ne.s32.totalorder %s49, %s50
    %p61 = scmp.eq.s32.totalorder %s15, 0
    %p62 = por %p60, %p61
    %p63 = scmp.ne.s32.totalorder %s49, %s50
    %p64 = scmp.eq.s32.totalorder %s16, 3
    %p65 = por %p63, %p64
    %p67 = scmp.ne.s32.totalorder %s50, %s66
    %p68 = scmp.eq.s32.totalorder %s16, 0
    %p69 = por %p67, %p68
    %s70 = ssub.s32 %s10, %s17
    %p71 = scmp.eq.s32.totalorder %s70, 0
    %s73 = sadd.s32 %s72, 1
    %s74 = scalar_select %p71, %s72, %s73
    %p77 = pneg %p71
    %p78 = scmp.eq.s32.totalorder %s10, 3
    %p79 = por %p77, %p78
    %p80 = scmp.ne.s32.totalorder %s72, %s75
    %p81 = scmp.eq.s32.totalorder %s10, 0
    %p82 = por %p80, %p81
    %p83 = scmp.ne.s32.totalorder %s72, %s75
    %p84 = scmp.eq.s32.totalorder %s15, 3
    %p85 = por %p83, %p84
    %p86 = scmp.ne.s32.totalorder %s75, %s76
    %p87 = scmp.eq.s32.totalorder %s15, 0
    %p88 = por %p86, %p87
    %p89 = scmp.ne.s32.totalorder %s75, %s76
    %p90 = scmp.eq.s32.totalorder %s16, 3
    %p91 = por %p89, %p90
    %p93 = scmp.ne.s32.totalorder %s76, %s92
    %p94 = scmp.eq.s32.totalorder %s16, 0
    %p95 = por %p93, %p94
    %s97 = sadd.s32 %s96, 1
    %p100 = scmp.eq.s32.totalorder %s10, 3
    %p101 = scmp.ne.s32.totalorder %s96, %s98
    %p102 = scmp.eq.s32.totalorder %s10, 0
    %p103 = por %p101, %p102
    %p104 = scmp.ne.s32.totalorder %s96, %s98
    %p105 = scmp.eq.s32.totalorder %s15, 3
    %p106 = por %p104, %p105
    %p107 = scmp.ne.s32.totalorder %s98, %s99
    %p108 = scmp.eq.s32.totalorder %s15, 0
    %p109 = por %p107, %p108
    %p110 = scmp.ne.s32.totalorder %s98, %s99
    %p111 = scmp.eq.s32.totalorder %s16, 3
    %p112 = por %p110, %p111
    %p114 = scmp.ne.s32.totalorder %s99, %s113
    %p115 = scmp.eq.s32.totalorder %s16, 0
    %p116 = por %p114, %p115
    %s117 = ssub.s32 %s10, %s17
    %p118 = scmp.eq.s32.totalorder %s117, 0
    %s120 = sadd.s32 %s119, 1
    %s121 = scalar_select %p118, %s119, %s120
    %p124 = pneg %p118
    %p125 = scmp.eq.s32.totalorder %s10, 3
    %p126 = por %p124, %p125
    %p127 = scmp.ne.s32.totalorder %s119, %s122
    %p128 = scmp.eq.s32.totalorder %s10, 0
    %p129 = por %p127, %p128
    %p130 = scmp.ne.s32.totalorder %s119, %s122
    %p131 = scmp.eq.s32.totalorder %s15, 3
    %p132 = por %p130, %p131
    %p133 = scmp.ne.s32.totalorder %s122, %s123
    %p134 = scmp.eq.s32.totalorder %s15, 0
    %p135 = por %p133, %p134
    %p136 = scmp.ne.s32.totalorder %s122, %s123
    %p137 = scmp.eq.s32.totalorder %s16, 3
    %p138 = por %p136, %p137
    %p140 = scmp.ne.s32.totalorder %s123, %s139
    %p141 = scmp.eq.s32.totalorder %s16, 0
    %p142 = por %p140, %p141
    %p143 = scmp.le.s32.totalorder 1, %s10
    %p144 = scmp.lt.s32.totalorder %s10, 5
    %p145 = pnand %p143, %p144
    %p146 = pneg %p145
    // Predicated region
    $region9: #{local_global_decoder.1} parent=5 // pred_check
      _
    $region10: #{local_global_decoder.1} parent=5 // pred_check_branch
      %148 = sbr.rel (%p145) target = $region12
    $region11: #{local_global_decoder.1} parent=5 // pred_region
      %s149 = ssub.s32 %s10, 1
      // Predicated region
      $region13: #{local_global_decoder.1} parent=11 // pred_check
        %p150 = pneg %p109
      $region14: #{local_global_decoder.1} parent=11 // pred_check_branch
        %152 = sbr.rel (%p150) target = $region16
      $region15: #{local_global_decoder.1} parent=11 // pred_region
        _
      $region16: #{local_global_decoder.1} parent=11 // pred_fallthru
        _
    $region12: #{local_global_decoder.1} parent=5 // pred_fallthru
      _
    %p153 = scmp.lt.s32.totalorder %s10, 4
    // Predicated region
    $region17: #{local_global_decoder.1} parent=5 // pred_check
      %p154 = pneg %p153
    $region18: #{local_global_decoder.1} parent=5 // pred_check_branch
      %156 = sbr.rel (%p154) target = $region20
    $region19: #{local_global_decoder.1} parent=5 // pred_region
      // Predicated region
      $region21: #{local_global_decoder.1} parent=19 // pred_check
        %p157 = pneg %p30
      $region22: #{local_global_decoder.1} parent=19 // pred_check_branch
        %159 = sbr.rel (%p157) target = $region24
      $region23: #{local_global_decoder.1} parent=19 // pred_region
        %s160 = smul.u32 32, %s10
        %p161 = scmp.lt.s32.totalorder %s160, 127
        %s162 = scalar_select %p161, %s160, 127
        %s163 = smul.addr %s162, 8
        %s164 = scalar_lea.vmem %s0, %s163
        %s165 = smul.u32 32, %s10
      $region24: #{local_global_decoder.1} parent=19 // pred_fallthru
        _
      // Predicated region
      $region25: #{local_global_decoder.1} parent=19 // pred_check
        %p166 = pneg %p56
      $region26: #{local_global_decoder.1} parent=19 // pred_check_branch
        %168 = sbr.rel (%p166) target = $region28
      $region27: #{local_global_decoder.1} parent=19 // pred_region
        %s169 = smul.u32 32, %s10
        %p170 = scmp.lt.s32.totalorder %s169, 127
        %s171 = scalar_select %p170, %s169, 127
        %s172 = smul.addr %s171, 8
        %s173 = scalar_lea.vmem %s1, %s172
        %s174 = smul.u32 32, %s10
      $region28: #{local_global_decoder.1} parent=19 // pred_fallthru
        _
      // Predicated region
      $region29: #{local_global_decoder.1} parent=19 // pred_check
        %p175 = pneg %p82
      $region30: #{local_global_decoder.1} parent=19 // pred_check_branch
        %177 = sbr.rel (%p175) target = $region32
      $region31: #{local_global_decoder.1} parent=19 // pred_region
        %s178 = smul.u32 4, %s10
        %p179 = scmp.lt.s32.totalorder %s178, 15
        %s180 = scalar_select %p179, %s178, 15
        %s181 = smul.addr %s180, 8
        %s182 = scalar_lea.vmem %s2, %s181
        %s183 = smul.u32 4, %s10
      $region32: #{local_global_decoder.1} parent=19 // pred_fallthru
        _
    $region20: #{local_global_decoder.1} parent=5 // pred_fallthru
      _
    %p184 = scmp.le.s32.totalorder 1, %s10
    %p185 = scmp.lt.s32.totalorder %s10, 5
    %p186 = pnand %p184, %p185
    %p187 = pneg %p186
    // Predicated region
    $region33: #{local_global_decoder.1} parent=5 // pred_check
      _
    $region34: #{local_global_decoder.1} parent=5 // pred_check_branch
      %189 = sbr.rel (%p186) target = $region36
    $region35: #{local_global_decoder.1} parent=5 // pred_region
      %s190 = ssub.s32 %s10, 1
      %s191 = smul.u32 32, %s15
      %p192 = scmp.lt.s32.totalorder %s191, 127
      %s193 = scalar_select %p192, %s191, 127
      %s194 = smul.addr %s193, 8
      %s195 = scalar_lea.vmem %s0, %s194
      %p196 = pneg %p36
      %p197 = pneg %p33
      %s198 = smul.u32 32, %s15
      %p199 = scmp.lt.s32.totalorder %s198, 127
      %s200 = scalar_select %p199, %s198, 127
      %s201 = smul.addr %s200, 8
      %s202 = scalar_lea.vmem %s1, %s201
      %p203 = pneg %p62
      %p204 = pneg %p59
      %s205 = smul.u32 4, %s15
      %p206 = scmp.lt.s32.totalorder %s205, 15
      %s207 = scalar_select %p206, %s205, 15
      %s208 = smul.addr %s207, 8
      %s209 = scalar_lea.vmem %s2, %s208
      %p210 = pneg %p88
      %p211 = pneg %p85
      %p212 = pneg %p109
      %p213 = pneg %p106
      %p214 = pneg %p135
      %p215 = pneg %p132
      %s216 = smul.u32 4, %s15
      %p217 = scmp.lt.s32.totalorder %s216, 15
      %s218 = scalar_select %p217, %s216, 15
      %s219 = smul.addr %s218, 8
      %s220 = scalar_lea.vmem %s4, %s219
      %s221 = smul.u32 32, %s15
      %p222 = scmp.lt.s32.totalorder %s221, 127
      %s223 = scalar_select %p222, %s221, 127
      %s224 = smul.addr %s223, 8
      %s225 = scalar_lea.vmem %s0, %s224
      %s226 = smul.u32 32, %s15
      %s227 = smul.u32 32, %s15
      %p228 = scmp.lt.s32.totalorder %s227, 127
      %s229 = scalar_select %p228, %s227, 127
      %s230 = smul.addr %s229, 8
      %s231 = scalar_lea.vmem %s1, %s230
      %s232 = smul.u32 32, %s15
      %s233 = smul.u32 4, %s15
      %p234 = scmp.lt.s32.totalorder %s233, 15
      %s235 = scalar_select %p234, %s233, 15
      %s236 = smul.addr %s235, 8
      %s237 = scalar_lea.vmem %s2, %s236
      %s238 = smul.u32 4, %s15
      %s239 = smul.u32 4, %s15
      %p240 = scmp.lt.s32.totalorder %s239, 15
      %s241 = scalar_select %p240, %s239, 15
      %s242 = smul.addr %s241, 8
      %s243 = scalar_lea.vmem %s4, %s242
      %s244 = smul.u32 4, %s15
      %v245 = vld [vmem:[%s225] sm:$0xff]
      %v246 = vld [vmem:[%s225 + $0x8] sm:$0xff]
      %v247 = vld [vmem:[%s225 + $0x10] sm:$0xff]
      %v248 = vld [vmem:[%s225 + $0x18] sm:$0xff]
      %v249 = vld [vmem:[%s225 + $0x20] sm:$0xff]
      %v250 = vld [vmem:[%s225 + $0x28] sm:$0xff]
      %v251 = vld [vmem:[%s225 + $0x30] sm:$0xff]
      %v252 = vld [vmem:[%s225 + $0x38] sm:$0xff]
      %v253 = vld [vmem:[%s225 + $0x40] sm:$0xff]
      %v254 = vld [vmem:[%s225 + $0x48] sm:$0xff]
      %v255 = vld [vmem:[%s225 + $0x50] sm:$0xff]
      %v256 = vld [vmem:[%s225 + $0x58] sm:$0xff]
      %v257 = vld [vmem:[%s225 + $0x60] sm:$0xff]
      %v258 = vld [vmem:[%s225 + $0x68] sm:$0xff]
      %v259 = vld [vmem:[%s225 + $0x70] sm:$0xff]
      %v260 = vld [vmem:[%s225 + $0x78] sm:$0xff]
      %v261 = vld [vmem:[%s225 + $0x80] sm:$0xff]
      %v262 = vld [vmem:[%s225 + $0x88] sm:$0xff]
      %v263 = vld [vmem:[%s225 + $0x90] sm:$0xff]
      %v264 = vld [vmem:[%s225 + $0x98] sm:$0xff]
      %v265 = vld [vmem:[%s225 + $0xa0] sm:$0xff]
      %v266 = vld [vmem:[%s225 + $0xa8] sm:$0xff]
      %v267 = vld [vmem:[%s225 + $0xb0] sm:$0xff]
      %v268 = vld [vmem:[%s225 + $0xb8] sm:$0xff]
      %v269 = vld [vmem:[%s225 + $0xc0] sm:$0xff]
      %v270 = vld [vmem:[%s225 + $0xc8] sm:$0xff]
      %v271 = vld [vmem:[%s225 + $0xd0] sm:$0xff]
      %v272 = vld [vmem:[%s225 + $0xd8] sm:$0xff]
      %v273 = vld [vmem:[%s225 + $0xe0] sm:$0xff]
      %v274 = vld [vmem:[%s225 + $0xe8] sm:$0xff]
      %v275 = vld [vmem:[%s225 + $0xf0] sm:$0xff]
      %v276 = vld [vmem:[%s225 + $0xf8] sm:$0xff]
      %v277 = vld [vmem:[%s3] sm:$0xff]
      %v278 = vld [vmem:[%s3 + $0x10] sm:$0xff]
      %v279 = vld [vmem:[%s3 + $0x750] ss:$0 sm:$0xff]
      %vm280 = vcmask 130048
      %v282 = vsel %vm280, %v245, 0
      %v285 = vsel %vm280, %v246, 0
      %v288 = vsel %vm280, %v247, 0
      %v291 = vsel %vm280, %v248, 0
      %v294 = vsel %vm280, %v249, 0
      %v297 = vsel %vm280, %v250, 0
      %v300 = vsel %vm280, %v251, 0
      %v303 = vsel %vm280, %v252, 0
      %v306 = vsel %vm280, %v253, 0
      %v309 = vsel %vm280, %v254, 0
      %v312 = vsel %vm280, %v255, 0
      %v315 = vsel %vm280, %v256, 0
      %v318 = vsel %vm280, %v257, 0
      %v321 = vsel %vm280, %v258, 0
      %v324 = vsel %vm280, %v259, 0
      %v327 = vsel %vm280, %v260, 0
      %v330 = vsel %vm280, %v261, 0
      %v333 = vsel %vm280, %v262, 0
      %v336 = vsel %vm280, %v263, 0
      %v339 = vsel %vm280, %v264, 0
      %v342 = vsel %vm280, %v265, 0
      %v345 = vsel %vm280, %v266, 0
      %v348 = vsel %vm280, %v267, 0
      %v351 = vsel %vm280, %v268, 0
      %v354 = vsel %vm280, %v269, 0
      %v357 = vsel %vm280, %v270, 0
      %v360 = vsel %vm280, %v271, 0
      %v363 = vsel %vm280, %v272, 0
      %v366 = vsel %vm280, %v273, 0
      %v369 = vsel %vm280, %v274, 0
      %v372 = vsel %vm280, %v275, 0
      %v375 = vsel %vm280, %v276, 0
      %377 = vmatprep.subr.mxu0 0.0
      %378 = vmatpush1.msra.mxu0 %v277
      %379 = vmatprep.subr.mxu0 0.0
      %380 = vmatpush1.msra.mxu0 %v278
      %381 = vmatprep.subr.mxu0 0.0
      %382 = vmatpush1.msra.mxu0 0.0
      %383 = vmatprep.subr.mxu0 0.0
      %384 = vmatpush1.msra.mxu0 0.0
      %385 = vmatprep.subr.mxu0 0.0
      %386 = vmatpush1.msra.mxu0 0.0
      %387 = vmatprep.subr.mxu0 0.0
      %388 = vmatpush1.msra.mxu0 0.0
      %389 = vmatprep.subr.mxu0 0.0
      %390 = vmatpush1.msra.mxu0 0.0
      %391 = vmatprep.subr.mxu0 0.0
      %392 = vmatpush1.msra.mxu0 0.0
      %393 = vmatprep.subr.mxu0 0.0
      %394 = vmatpush1.msra.mxu0 0.0
      %395 = vmatprep.subr.mxu0 0.0
      %396 = vmatpush1.msra.mxu0 0.0
      %397 = vmatprep.subr.mxu0 0.0
      %398 = vmatpush1.msra.mxu0 0.0
      %399 = vmatprep.subr.mxu0 0.0
      %400 = vmatpush1.msra.mxu0 0.0
      %401 = vmatprep.subr.mxu0 0.0
      %402 = vmatpush1.msra.mxu0 0.0
      %403 = vmatprep.subr.mxu0 0.0
      %404 = vmatpush1.msra.mxu0 0.0
      %405 = vmatprep.subr.mxu0 0.0
      %406 = vmatpush1.msra.mxu0 0.0
      %407 = vmatprep.subr.mxu0 0.0
      %408 = vmatpush1.msra.mxu0 0.0
      %409 = vmatprep.subr.mxu0 0.0
      %410 = vmatpush1.msra.mxu0 0.0
      %411 = vmatprep.subr.mxu0 0.0
      %412 = vmatpush1.msra.mxu0 0.0
      %413 = vmatprep.subr.mxu0 0.0
      %414 = vmatpush1.msra.mxu0 0.0
      %415 = vmatprep.subr.mxu0 0.0
      %416 = vmatpush1.msra.mxu0 0.0
      %417 = vmatprep.subr.mxu0 0.0
      %418 = vmatpush1.msra.mxu0 0.0
      %419 = vmatprep.subr.mxu0 0.0
      %420 = vmatpush1.msra.mxu0 0.0
      %421 = vmatprep.subr.mxu0 0.0
      %422 = vmatpush1.msra.mxu0 0.0
      %423 = vmatprep.subr.mxu0 0.0
      %424 = vmatpush1.msra.mxu0 0.0
      %425 = vmatprep.subr.mxu0 0.0
      %426 = vmatpush1.msra.mxu0 0.0
      %427 = vmatprep.subr.mxu0 0.0
      %428 = vmatpush1.msra.mxu0 0.0
      %429 = vmatprep.subr.mxu0 0.0
      %430 = vmatpush1.msra.mxu0 0.0
      %431 = vmatprep.subr.mxu0 0.0
      %432 = vmatpush1.msra.mxu0 0.0
      %433 = vmatprep.subr.mxu0 0.0
      %434 = vmatpush1.msra.mxu0 0.0
      %435 = vmatprep.subr.mxu0 0.0
      %436 = vmatpush1.msra.mxu0 0.0
      %437 = vmatprep.subr.mxu0 0.0
      %438 = vmatpush1.msra.mxu0 0.0
      %439 = vmatprep.subr.mxu0 0.0
      %440 = vmatpush1.msra.mxu0 0.0
      %441 = vmatprep.mubr.f32.mxu0 0.0
      %442 = vmatmul.mubr.f32.gmra.mrb[0].mxu0 %v282
      %v443 = vpop.f32.mrb[0].mxu0
      %v444 = vadd.f32 %v279, %v443
      %v445 = vpop.f32.mrb[0].mxu0
      %446 = vmatprep.mubr.f32.mxu0 0.0
      %447 = vmatmul.mubr.f32.gmra.mrb[0].mxu0 %v285
      %v448 = vpop.f32.mrb[0].mxu0
      %v449 = vadd.f32 %v279, %v448
      %v450 = vpop.f32.mrb[0].mxu0
      %451 = vmatprep.mubr.f32.mxu0 0.0
      %452 = vmatmul.mubr.f32.gmra.mrb[0].mxu0 %v288
      %v453 = vpop.f32.mrb[0].mxu0
      %v454 = vadd.f32 %v279, %v453
      %v455 = vpop.f32.mrb[0].mxu0
      %456 = vmatprep.mubr.f32.mxu0 0.0
      %457 = vmatmul.mubr.f32.gmra.mrb[0].mxu0 %v291
      %v458 = vpop.f32.mrb[0].mxu0
      %v459 = vadd.f32 %v279, %v458
      %v460 = vpop.f32.mrb[0].mxu0
      %461 = vmatprep.mubr.f32.mxu0 0.0
      %462 = vmatmul.mubr.f32.gmra.mrb[0].mxu0 %v294
      %v463 = vpop.f32.mrb[0].mxu0
      %v464 = vadd.f32 %v279, %v463
      %v465 = vpop.f32.mrb[0].mxu0
      %466 = vmatprep.mubr.f32.mxu0 0.0
      %467 = vmatmul.mubr.f32.gmra.mrb[0].mxu0 %v297
      %v468 = vpop.f32.mrb[0].mxu0
      %v469 = vadd.f32 %v279, %v468
      %v470 = vpop.f32.mrb[0].mxu0
      %471 = vmatprep.mubr.f32.mxu0 0.0
      %472 = vmatmul.mubr.f32.gmra.mrb[0].mxu0 %v300
      %v473 = vpop.f32.mrb[0].mxu0
      %v474 = vadd.f32 %v279, %v473
      %v475 = vpop.f32.mrb[0].mxu0
      %476 = vmatprep.mubr.f32.mxu0 0.0
      %477 = vmatmul.mubr.f32.gmra.mrb[0].mxu0 %v303
      %v478 = vpop.f32.mrb[0].mxu0
      %v479 = vadd.f32 %v279, %v478
      %v480 = vpop.f32.mrb[0].mxu0
      %481 = vmatprep.mubr.f32.mxu0 0.0
      %482 = vmatmul.mubr.f32.gmra.mrb[0].mxu0 %v306
      %v483 = vpop.f32.mrb[0].mxu0
      %v484 = vadd.f32 %v279, %v483
      %v485 = vpop.f32.mrb[0].mxu0
      %486 = vmatprep.mubr.f32.mxu0 0.0
      %487 = vmatmul.mubr.f32.gmra.mrb[0].mxu0 %v309
      %v488 = vpop.f32.mrb[0].mxu0
      %v489 = vadd.f32 %v279, %v488
      %v490 = vpop.f32.mrb[0].mxu0
      %491 = vmatprep.mubr.f32.mxu0 0.0
      %492 = vmatmul.mubr.f32.gmra.mrb[0].mxu0 %v312
      %v493 = vpop.f32.mrb[0].mxu0
      %v494 = vadd.f32 %v279, %v493
      %v495 = vpop.f32.mrb[0].mxu0
      %496 = vmatprep.mubr.f32.mxu0 0.0
      %497 = vmatmul.mubr.f32.gmra.mrb[0].mxu0 %v315
      %v498 = vpop.f32.mrb[0].mxu0
      %v499 = vadd.f32 %v279, %v498
      %v500 = vpop.f32.mrb[0].mxu0
      %501 = vmatprep.mubr.f32.mxu0 0.0
      %502 = vmatmul.mubr.f32.gmra.mrb[0].mxu0 %v318
      %v503 = vpop.f32.mrb[0].mxu0
      %v504 = vadd.f32 %v279, %v503
      %v505 = vpop.f32.mrb[0].mxu0
      %506 = vmatprep.mubr.f32.mxu0 0.0
      %507 = vmatmul.mubr.f32.gmra.mrb[0].mxu0 %v321
      %v508 = vpop.f32.mrb[0].mxu0
      %v509 = vadd.f32 %v279, %v508
      %v510 = vpop.f32.mrb[0].mxu0
      %511 = vmatprep.mubr.f32.mxu0 0.0
      %512 = vmatmul.mubr.f32.gmra.mrb[0].mxu0 %v324
      %v513 = vpop.f32.mrb[0].mxu0
      %v514 = vadd.f32 %v279, %v513
      %v515 = vpop.f32.mrb[0].mxu0
      %516 = vmatprep.mubr.f32.mxu0 0.0
      %517 = vmatmul.mubr.f32.gmra.mrb[0].mxu0 %v327
      %v518 = vpop.f32.mrb[0].mxu0
      %v519 = vadd.f32 %v279, %v518
      %v520 = vpop.f32.mrb[0].mxu0
      %521 = vmatprep.mubr.f32.mxu0 0.0
      %522 = vmatmul.mubr.f32.gmra.mrb[0].mxu0 %v330
      %v523 = vpop.f32.mrb[0].mxu0
      %v524 = vadd.f32 %v279, %v523
      %v525 = vpop.f32.mrb[0].mxu0
      %526 = vmatprep.mubr.f32.mxu0 0.0
      %527 = vmatmul.mubr.f32.gmra.mrb[0].mxu0 %v333
      %v528 = vpop.f32.mrb[0].mxu0
      %v529 = vadd.f32 %v279, %v528
      %v530 = vpop.f32.mrb[0].mxu0
      %531 = vmatprep.mubr.f32.mxu0 0.0
      %532 = vmatmul.mubr.f32.gmra.mrb[0].mxu0 %v336
      %v533 = vpop.f32.mrb[0].mxu0
      %v534 = vadd.f32 %v279, %v533
      %v535 = vpop.f32.mrb[0].mxu0
      %536 = vmatprep.mubr.f32.mxu0 0.0
      %537 = vmatmul.mubr.f32.gmra.mrb[0].mxu0 %v339
      %v538 = vpop.f32.mrb[0].mxu0
      %v539 = vadd.f32 %v279, %v538
      %v540 = vpop.f32.mrb[0].mxu0
      %541 = vmatprep.mubr.f32.mxu0 0.0
      %542 = vmatmul.mubr.f32.gmra.mrb[0].mxu0 %v342
      %v543 = vpop.f32.mrb[0].mxu0
      %v544 = vadd.f32 %v279, %v543
      %v545 = vpop.f32.mrb[0].mxu0
      %546 = vmatprep.mubr.f32.mxu0 0.0
      %547 = vmatmul.mubr.f32.gmra.mrb[0].mxu0 %v345
      %v548 = vpop.f32.mrb[0].mxu0
      %v549 = vadd.f32 %v279, %v548
      %v550 = vpop.f32.mrb[0].mxu0
      %551 = vmatprep.mubr.f32.mxu0 0.0
      %552 = vmatmul.mubr.f32.gmra.mrb[0].mxu0 %v348
      %v553 = vpop.f32.mrb[0].mxu0
      %v554 = vadd.f32 %v279, %v553
      %v555 = vpop.f32.mrb[0].mxu0
      %556 = vmatprep.mubr.f32.mxu0 0.0
      %557 = vmatmul.mubr.f32.gmra.mrb[0].mxu0 %v351
      %v558 = vpop.f32.mrb[0].mxu0
      %v559 = vadd.f32 %v279, %v558
      %v560 = vpop.f32.mrb[0].mxu0
      %561 = vmatprep.mubr.f32.mxu0 0.0
      %562 = vmatmul.mubr.f32.gmra.mrb[0].mxu0 %v354
      %v563 = vpop.f32.mrb[0].mxu0
      %v564 = vadd.f32 %v279, %v563
      %v565 = vpop.f32.mrb[0].mxu0
      %566 = vmatprep.mubr.f32.mxu0 0.0
      %567 = vmatmul.mubr.f32.gmra.mrb[0].mxu0 %v357
      %v568 = vpop.f32.mrb[0].mxu0
      %v569 = vadd.f32 %v279, %v568
      %v570 = vpop.f32.mrb[0].mxu0
      %571 = vmatprep.mubr.f32.mxu0 0.0
      %572 = vmatmul.mubr.f32.gmra.mrb[0].mxu0 %v360
      %v573 = vpop.f32.mrb[0].mxu0
      %v574 = vadd.f32 %v279, %v573
      %v575 = vpop.f32.mrb[0].mxu0
      %576 = vmatprep.mubr.f32.mxu0 0.0
      %577 = vmatmul.mubr.f32.gmra.mrb[0].mxu0 %v363
      %v578 = vpop.f32.mrb[0].mxu0
      %v579 = vadd.f32 %v279, %v578
      %v580 = vpop.f32.mrb[0].mxu0
      %581 = vmatprep.mubr.f32.mxu0 0.0
      %582 = vmatmul.mubr.f32.gmra.mrb[0].mxu0 %v366
      %v583 = vpop.f32.mrb[0].mxu0
      %v584 = vadd.f32 %v279, %v583
      %v585 = vpop.f32.mrb[0].mxu0
      %586 = vmatprep.mubr.f32.mxu0 0.0
      %587 = vmatmul.mubr.f32.gmra.mrb[0].mxu0 %v369
      %v588 = vpop.f32.mrb[0].mxu0
      %v589 = vadd.f32 %v279, %v588
      %v590 = vpop.f32.mrb[0].mxu0
      %591 = vmatprep.mubr.f32.mxu0 0.0
      %592 = vmatmul.mubr.f32.gmra.mrb[0].mxu0 %v372
      %v593 = vpop.f32.mrb[0].mxu0
      %v594 = vadd.f32 %v279, %v593
      %v595 = vpop.f32.mrb[0].mxu0
      %596 = vmatprep.mubr.f32.mxu0 0.0
      %597 = vmatmul.mubr.f32.gmra.mrb[0].mxu0 %v375
      %v598 = vpop.f32.mrb[0].mxu0
      %v599 = vadd.f32 %v279, %v598
      %v600 = vpop.f32.mrb[0].mxu0
      %601 = vdwg.mxu0
      %v602 = vmax.f32 %v444, 0.0
      %v603 = vmax.f32 %v449, 0.0
      %v604 = vmax.f32 %v454, 0.0
      %v605 = vmax.f32 %v459, 0.0
      %v606 = vmax.f32 %v464, 0.0
      %v607 = vmax.f32 %v469, 0.0
      %v608 = vmax.f32 %v474, 0.0
      %v609 = vmax.f32 %v479, 0.0
      %v610 = vmax.f32 %v484, 0.0
      %v611 = vmax.f32 %v489, 0.0
      %v612 = vmax.f32 %v494, 0.0
      %v613 = vmax.f32 %v499, 0.0
      %v614 = vmax.f32 %v504, 0.0
      %v615 = vmax.f32 %v509, 0.0
      %v616 = vmax.f32 %v514, 0.0
      %v617 = vmax.f32 %v519, 0.0
      %v618 = vmax.f32 %v524, 0.0
      %v619 = vmax.f32 %v529, 0.0
      %v620 = vmax.f32 %v534, 0.0
      %v621 = vmax.f32 %v539, 0.0
      %v622 = vmax.f32 %v544, 0.0
      %v623 = vmax.f32 %v549, 0.0
      %v624 = vmax.f32 %v554, 0.0
      %v625 = vmax.f32 %v559, 0.0
      %v626 = vmax.f32 %v564, 0.0
      %v627 = vmax.f32 %v569, 0.0
      %v628 = vmax.f32 %v574, 0.0
      %v629 = vmax.f32 %v579, 0.0
      %v630 = vmax.f32 %v584, 0.0
      %v631 = vmax.f32 %v589, 0.0
      %v632 = vmax.f32 %v594, 0.0
      %v633 = vmax.f32 %v599, 0.0
      %v634 = vld [vmem:[%s231] sm:$0xff]
      %v635 = vld [vmem:[%s231 + $0x8] sm:$0xff]
      %v636 = vld [vmem:[%s231 + $0x10] sm:$0xff]
      %v637 = vld [vmem:[%s231 + $0x18] sm:$0xff]
      %v638 = vld [vmem:[%s231 + $0x20] sm:$0xff]
      %v639 = vld [vmem:[%s231 + $0x28] sm:$0xff]
      %v640 = vld [vmem:[%s231 + $0x30] sm:$0xff]
      %v641 = vld [vmem:[%s231 + $0x38] sm:$0xff]
      %v642 = vld [vmem:[%s231 + $0x40] sm:$0xff]
      %v643 = vld [vmem:[%s231 + $0x48] sm:$0xff]
      %v644 = vld [vmem:[%s231 + $0x50] sm:$0xff]
      %v645 = vld [vmem:[%s231 + $0x58] sm:$0xff]
      %v646 = vld [vmem:[%s231 + $0x60] sm:$0xff]
      %v647 = vld [vmem:[%s231 + $0x68] sm:$0xff]
      %v648 = vld [vmem:[%s231 + $0x70] sm:$0xff]
      %v649 = vld [vmem:[%s231 + $0x78] sm:$0xff]
      %v650 = vld [vmem:[%s231 + $0x80] sm:$0xff]
      %v651 = vld [vmem:[%s231 + $0x88] sm:$0xff]
      %v652 = vld [vmem:[%s231 + $0x90] sm:$0xff]
      %v653 = vld [vmem:[%s231 + $0x98] sm:$0xff]
      %v654 = vld [vmem:[%s231 + $0xa0] sm:$0xff]
      %v655 = vld [vmem:[%s231 + $0xa8] sm:$0xff]
      %v656 = vld [vmem:[%s231 + $0xb0] sm:$0xff]
      %v657 = vld [vmem:[%s231 + $0xb8] sm:$0xff]
      %v658 = vld [vmem:[%s231 + $0xc0] sm:$0xff]
      %v659 = vld [vmem:[%s231 + $0xc8] sm:$0xff]
      %v660 = vld [vmem:[%s231 + $0xd0] sm:$0xff]
      %v661 = vld [vmem:[%s231 + $0xd8] sm:$0xff]
      %v662 = vld [vmem:[%s231 + $0xe0] sm:$0xff]
      %v663 = vld [vmem:[%s231 + $0xe8] sm:$0xff]
      %v664 = vld [vmem:[%s231 + $0xf0] sm:$0xff]
      %v665 = vld [vmem:[%s231 + $0xf8] sm:$0xff]
      %667 = vset.pattern.permute.xlu0 0
      %668 = vperm.xlu0 %667, %v634
      %v669 = vpop.permute.xlu0 %668
      %672 = vset.pattern.permute.xlu0 0
      %673 = vperm.xlu0 %672, %v635
      %v674 = vpop.permute.xlu0 %673
      %677 = vset.pattern.permute.xlu0 0
      %678 = vperm.xlu0 %677, %v636
      %v679 = vpop.permute.xlu0 %678
      %682 = vset.pattern.permute.xlu0 0
      %683 = vperm.xlu0 %682, %v637
      %v684 = vpop.permute.xlu0 %683
      %687 = vset.pattern.permute.xlu0 0
      %688 = vperm.xlu0 %687, %v638
      %v689 = vpop.permute.xlu0 %688
      %692 = vset.pattern.permute.xlu0 0
      %693 = vperm.xlu0 %692, %v639
      %v694 = vpop.permute.xlu0 %693
      %697 = vset.pattern.permute.xlu0 0
      %698 = vperm.xlu0 %697, %v640
      %v699 = vpop.permute.xlu0 %698
      %702 = vset.pattern.permute.xlu0 0
      %703 = vperm.xlu0 %702, %v641
      %v704 = vpop.permute.xlu0 %703
      %707 = vset.pattern.permute.xlu0 0
      %708 = vperm.xlu0 %707, %v642
      %v709 = vpop.permute.xlu0 %708
      %712 = vset.pattern.permute.xlu0 0
      %713 = vperm.xlu0 %712, %v643
      %v714 = vpop.permute.xlu0 %713
      %717 = vset.pattern.permute.xlu0 0
      %718 = vperm.xlu0 %717, %v644
      %v719 = vpop.permute.xlu0 %718
      %722 = vset.pattern.permute.xlu0 0
      %723 = vperm.xlu0 %722, %v645
      %v724 = vpop.permute.xlu0 %723
      %727 = vset.pattern.permute.xlu0 0
      %728 = vperm.xlu0 %727, %v646
      %v729 = vpop.permute.xlu0 %728
      %732 = vset.pattern.permute.xlu0 0
      %733 = vperm.xlu0 %732, %v647
      %v734 = vpop.permute.xlu0 %733
      %737 = vset.pattern.permute.xlu0 0
      %738 = vperm.xlu0 %737, %v648
      %v739 = vpop.permute.xlu0 %738
      %742 = vset.pattern.permute.xlu0 0
      %743 = vperm.xlu0 %742, %v649
      %v744 = vpop.permute.xlu0 %743
      %747 = vset.pattern.permute.xlu0 0
      %748 = vperm.xlu0 %747, %v650
      %v749 = vpop.permute.xlu0 %748
      %752 = vset.pattern.permute.xlu0 0
      %753 = vperm.xlu0 %752, %v651
      %v754 = vpop.permute.xlu0 %753
      %757 = vset.pattern.permute.xlu0 0
      %758 = vperm.xlu0 %757, %v652
      %v759 = vpop.permute.xlu0 %758
      %762 = vset.pattern.permute.xlu0 0
      %763 = vperm.xlu0 %762, %v653
      %v764 = vpop.permute.xlu0 %763
      %767 = vset.pattern.permute.xlu0 0
      %768 = vperm.xlu0 %767, %v654
      %v769 = vpop.permute.xlu0 %768
      %772 = vset.pattern.permute.xlu0 0
      %773 = vperm.xlu0 %772, %v655
      %v774 = vpop.permute.xlu0 %773
      %777 = vset.pattern.permute.xlu0 0
      %778 = vperm.xlu0 %777, %v656
      %v779 = vpop.permute.xlu0 %778
      %782 = vset.pattern.permute.xlu0 0
      %783 = vperm.xlu0 %782, %v657
      %v784 = vpop.permute.xlu0 %783
      %787 = vset.pattern.permute.xlu0 0
      %788 = vperm.xlu0 %787, %v658
      %v789 = vpop.permute.xlu0 %788
      %792 = vset.pattern.permute.xlu0 0
      %793 = vperm.xlu0 %792, %v659
      %v794 = vpop.permute.xlu0 %793
      %797 = vset.pattern.permute.xlu0 0
      %798 = vperm.xlu0 %797, %v660
      %v799 = vpop.permute.xlu0 %798
      %802 = vset.pattern.permute.xlu0 0
      %803 = vperm.xlu0 %802, %v661
      %v804 = vpop.permute.xlu0 %803
      %807 = vset.pattern.permute.xlu0 0
      %808 = vperm.xlu0 %807, %v662
      %v809 = vpop.permute.xlu0 %808
      %812 = vset.pattern.permute.xlu0 0
      %813 = vperm.xlu0 %812, %v663
      %v814 = vpop.permute.xlu0 %813
      %817 = vset.pattern.permute.xlu0 0
      %818 = vperm.xlu0 %817, %v664
      %v819 = vpop.permute.xlu0 %818
      %822 = vset.pattern.permute.xlu0 0
      %823 = vperm.xlu0 %822, %v665
      %v824 = vpop.permute.xlu0 %823
      %v826 = vmul.f32 %v602, %v669
      %v827 = vmul.f32 %v603, %v674
      %v828 = vmul.f32 %v604, %v679
      %v829 = vmul.f32 %v605, %v684
      %v830 = vmul.f32 %v606, %v689
      %v831 = vmul.f32 %v607, %v694
      %v832 = vmul.f32 %v608, %v699
      %v833 = vmul.f32 %v609, %v704
      %v834 = vmul.f32 %v610, %v709
      %v835 = vmul.f32 %v611, %v714
      %v836 = vmul.f32 %v612, %v719
      %v837 = vmul.f32 %v613, %v724
      %v838 = vmul.f32 %v614, %v729
      %v839 = vmul.f32 %v615, %v734
      %v840 = vmul.f32 %v616, %v739
      %v841 = vmul.f32 %v617, %v744
      %v842 = vmul.f32 %v618, %v749
      %v843 = vmul.f32 %v619, %v754
      %v844 = vmul.f32 %v620, %v759
      %v845 = vmul.f32 %v621, %v764
      %v846 = vmul.f32 %v622, %v769
      %v847 = vmul.f32 %v623, %v774
      %v848 = vmul.f32 %v624, %v779
      %v849 = vmul.f32 %v625, %v784
      %v850 = vmul.f32 %v626, %v789
      %v851 = vmul.f32 %v627, %v794
      %v852 = vmul.f32 %v628, %v799
      %v853 = vmul.f32 %v629, %v804
      %v854 = vmul.f32 %v630, %v809
      %v855 = vmul.f32 %v631, %v814
      %v856 = vmul.f32 %v632, %v819
      %v857 = vmul.f32 %v633, %v824
      %v858 = vrot.slane %v826, 4
      %v859 = vadd.f32 %v826, %v858
      %v860 = vrot.slane %v859, 2
      %v861 = vadd.f32 %v859, %v860
      %v862 = vrot.slane %v861, 1
      %v863 = vadd.f32 %v861, %v862
      %v864 = vrot.slane %v827, 4
      %v865 = vadd.f32 %v827, %v864
      %v866 = vrot.slane %v865, 2
      %v867 = vadd.f32 %v865, %v866
      %v868 = vrot.slane %v867, 1
      %v869 = vadd.f32 %v867, %v868
      %v870 = vrot.slane %v828, 4
      %v871 = vadd.f32 %v828, %v870
      %v872 = vrot.slane %v871, 2
      %v873 = vadd.f32 %v871, %v872
      %v874 = vrot.slane %v873, 1
      %v875 = vadd.f32 %v873, %v874
      %v876 = vrot.slane %v829, 4
      %v877 = vadd.f32 %v829, %v876
      %v878 = vrot.slane %v877, 2
      %v879 = vadd.f32 %v877, %v878
      %v880 = vrot.slane %v879, 1
      %v881 = vadd.f32 %v879, %v880
      %v882 = vrot.slane %v830, 4
      %v883 = vadd.f32 %v830, %v882
      %v884 = vrot.slane %v883, 2
      %v885 = vadd.f32 %v883, %v884
      %v886 = vrot.slane %v885, 1
      %v887 = vadd.f32 %v885, %v886
      %v888 = vrot.slane %v831, 4
      %v889 = vadd.f32 %v831, %v888
      %v890 = vrot.slane %v889, 2
      %v891 = vadd.f32 %v889, %v890
      %v892 = vrot.slane %v891, 1
      %v893 = vadd.f32 %v891, %v892
      %v894 = vrot.slane %v832, 4
      %v895 = vadd.f32 %v832, %v894
      %v896 = vrot.slane %v895, 2
      %v897 = vadd.f32 %v895, %v896
      %v898 = vrot.slane %v897, 1
      %v899 = vadd.f32 %v897, %v898
      %v900 = vrot.slane %v833, 4
      %v901 = vadd.f32 %v833, %v900
      %v902 = vrot.slane %v901, 2
      %v903 = vadd.f32 %v901, %v902
      %v904 = vrot.slane %v903, 1
      %v905 = vadd.f32 %v903, %v904
      %v906 = vrot.slane %v834, 4
      %v907 = vadd.f32 %v834, %v906
      %v908 = vrot.slane %v907, 2
      %v909 = vadd.f32 %v907, %v908
      %v910 = vrot.slane %v909, 1
      %v911 = vadd.f32 %v909, %v910
      %v912 = vrot.slane %v835, 4
      %v913 = vadd.f32 %v835, %v912
      %v914 = vrot.slane %v913, 2
      %v915 = vadd.f32 %v913, %v914
      %v916 = vrot.slane %v915, 1
      %v917 = vadd.f32 %v915, %v916
      %v918 = vrot.slane %v836, 4
      %v919 = vadd.f32 %v836, %v918
      %v920 = vrot.slane %v919, 2
      %v921 = vadd.f32 %v919, %v920
      %v922 = vrot.slane %v921, 1
      %v923 = vadd.f32 %v921, %v922
      %v924 = vrot.slane %v837, 4
      %v925 = vadd.f32 %v837, %v924
      %v926 = vrot.slane %v925, 2
      %v927 = vadd.f32 %v925, %v926
      %v928 = vrot.slane %v927, 1
      %v929 = vadd.f32 %v927, %v928
      %v930 = vrot.slane %v838, 4
      %v931 = vadd.f32 %v838, %v930
      %v932 = vrot.slane %v931, 2
      %v933 = vadd.f32 %v931, %v932
      %v934 = vrot.slane %v933, 1
      %v935 = vadd.f32 %v933, %v934
      %v936 = vrot.slane %v839, 4
      %v937 = vadd.f32 %v839, %v936
      %v938 = vrot.slane %v937, 2
      %v939 = vadd.f32 %v937, %v938
      %v940 = vrot.slane %v939, 1
      %v941 = vadd.f32 %v939, %v940
      %v942 = vrot.slane %v840, 4
      %v943 = vadd.f32 %v840, %v942
      %v944 = vrot.slane %v943, 2
      %v945 = vadd.f32 %v943, %v944
      %v946 = vrot.slane %v945, 1
      %v947 = vadd.f32 %v945, %v946
      %v948 = vrot.slane %v841, 4
      %v949 = vadd.f32 %v841, %v948
      %v950 = vrot.slane %v949, 2
      %v951 = vadd.f32 %v949, %v950
      %v952 = vrot.slane %v951, 1
      %v953 = vadd.f32 %v951, %v952
      %v954 = vrot.slane %v842, 4
      %v955 = vadd.f32 %v842, %v954
      %v956 = vrot.slane %v955, 2
      %v957 = vadd.f32 %v955, %v956
      %v958 = vrot.slane %v957, 1
      %v959 = vadd.f32 %v957, %v958
      %v960 = vrot.slane %v843, 4
      %v961 = vadd.f32 %v843, %v960
      %v962 = vrot.slane %v961, 2
      %v963 = vadd.f32 %v961, %v962
      %v964 = vrot.slane %v963, 1
      %v965 = vadd.f32 %v963, %v964
      %v966 = vrot.slane %v844, 4
      %v967 = vadd.f32 %v844, %v966
      %v968 = vrot.slane %v967, 2
      %v969 = vadd.f32 %v967, %v968
      %v970 = vrot.slane %v969, 1
      %v971 = vadd.f32 %v969, %v970
      %v972 = vrot.slane %v845, 4
      %v973 = vadd.f32 %v845, %v972
      %v974 = vrot.slane %v973, 2
      %v975 = vadd.f32 %v973, %v974
      %v976 = vrot.slane %v975, 1
      %v977 = vadd.f32 %v975, %v976
      %v978 = vrot.slane %v846, 4
      %v979 = vadd.f32 %v846, %v978
      %v980 = vrot.slane %v979, 2
      %v981 = vadd.f32 %v979, %v980
      %v982 = vrot.slane %v981, 1
      %v983 = vadd.f32 %v981, %v982
      %v984 = vrot.slane %v847, 4
      %v985 = vadd.f32 %v847, %v984
      %v986 = vrot.slane %v985, 2
      %v987 = vadd.f32 %v985, %v986
      %v988 = vrot.slane %v987, 1
      %v989 = vadd.f32 %v987, %v988
      %v990 = vrot.slane %v848, 4
      %v991 = vadd.f32 %v848, %v990
      %v992 = vrot.slane %v991, 2
      %v993 = vadd.f32 %v991, %v992
      %v994 = vrot.slane %v993, 1
      %v995 = vadd.f32 %v993, %v994
      %v996 = vrot.slane %v849, 4
      %v997 = vadd.f32 %v849, %v996
      %v998 = vrot.slane %v997, 2
      %v999 = vadd.f32 %v997, %v998
      %v1000 = vrot.slane %v999, 1
      %v1001 = vadd.f32 %v999, %v1000
      %v1002 = vrot.slane %v850, 4
      %v1003 = vadd.f32 %v850, %v1002
      %v1004 = vrot.slane %v1003, 2
      %v1005 = vadd.f32 %v1003, %v1004
      %v1006 = vrot.slane %v1005, 1
      %v1007 = vadd.f32 %v1005, %v1006
      %v1008 = vrot.slane %v851, 4
      %v1009 = vadd.f32 %v851, %v1008
      %v1010 = vrot.slane %v1009, 2
      %v1011 = vadd.f32 %v1009, %v1010
      %v1012 = vrot.slane %v1011, 1
      %v1013 = vadd.f32 %v1011, %v1012
      %v1014 = vrot.slane %v852, 4
      %v1015 = vadd.f32 %v852, %v1014
      %v1016 = vrot.slane %v1015, 2
      %v1017 = vadd.f32 %v1015, %v1016
      %v1018 = vrot.slane %v1017, 1
      %v1019 = vadd.f32 %v1017, %v1018
      %v1020 = vrot.slane %v853, 4
      %v1021 = vadd.f32 %v853, %v1020
      %v1022 = vrot.slane %v1021, 2
      %v1023 = vadd.f32 %v1021, %v1022
      %v1024 = vrot.slane %v1023, 1
      %v1025 = vadd.f32 %v1023, %v1024
      %v1026 = vrot.slane %v854, 4
      %v1027 = vadd.f32 %v854, %v1026
      %v1028 = vrot.slane %v1027, 2
      %v1029 = vadd.f32 %v1027, %v1028
      %v1030 = vrot.slane %v1029, 1
      %v1031 = vadd.f32 %v1029, %v1030
      %v1032 = vrot.slane %v855, 4
      %v1033 = vadd.f32 %v855, %v1032
      %v1034 = vrot.slane %v1033, 2
      %v1035 = vadd.f32 %v1033, %v1034
      %v1036 = vrot.slane %v1035, 1
      %v1037 = vadd.f32 %v1035, %v1036
      %v1038 = vrot.slane %v856, 4
      %v1039 = vadd.f32 %v856, %v1038
      %v1040 = vrot.slane %v1039, 2
      %v1041 = vadd.f32 %v1039, %v1040
      %v1042 = vrot.slane %v1041, 1
      %v1043 = vadd.f32 %v1041, %v1042
      %v1044 = vrot.slane %v857, 4
      %v1045 = vadd.f32 %v857, %v1044
      %v1046 = vrot.slane %v1045, 2
      %v1047 = vadd.f32 %v1045, %v1046
      %v1048 = vrot.slane %v1047, 1
      %v1049 = vadd.f32 %v1047, %v1048
      %v1050 = vld [vmem:[%s237] sm:$0xff]
      %v1051 = vld [vmem:[%s237 + $0x8] sm:$0xff]
      %v1052 = vld [vmem:[%s237 + $0x10] sm:$0xff]
      %v1053 = vld [vmem:[%s237 + $0x18] sm:$0xff]
      %v1054 = vld [vmem:[%s3 + $0x20] sm:$0xff]
      %v1055 = vld [vmem:[%s3 + $0x751] ss:$0 sm:$0xff]
      %vm1056 = vcmask 64512
      %v1058 = vsel %vm1056, %v1050, 0
      %v1061 = vsel %vm1056, %v1051, 0
      %v1064 = vsel %vm1056, %v1052, 0
      %v1067 = vsel %vm1056, %v1053, 0
      %1069 = vmatprep.subr.mxu0 0.0
      %1070 = vmatpush1.msra.mxu0 %v1054
      %1071 = vmatprep.subr.mxu0 0.0
      %1072 = vmatpush1.msra.mxu0 0.0
      %1073 = vmatprep.subr.mxu0 0.0
      %1074 = vmatpush1.msra.mxu0 0.0
      %1075 = vmatprep.subr.mxu0 0.0
      %1076 = vmatpush1.msra.mxu0 0.0
      %1077 = vmatprep.subr.mxu0 0.0
      %1078 = vmatpush1.msra.mxu0 0.0
      %1079 = vmatprep.subr.mxu0 0.0
      %1080 = vmatpush1.msra.mxu0 0.0
      %1081 = vmatprep.subr.mxu0 0.0
      %1082 = vmatpush1.msra.mxu0 0.0
      %1083 = vmatprep.subr.mxu0 0.0
      %1084 = vmatpush1.msra.mxu0 0.0
      %1085 = vmatprep.subr.mxu0 0.0
      %1086 = vmatpush1.msra.mxu0 0.0
      %1087 = vmatprep.subr.mxu0 0.0
      %1088 = vmatpush1.msra.mxu0 0.0
      %1089 = vmatprep.subr.mxu0 0.0
      %1090 = vmatpush1.msra.mxu0 0.0
      %1091 = vmatprep.subr.mxu0 0.0
      %1092 = vmatpush1.msra.mxu0 0.0
      %1093 = vmatprep.subr.mxu0 0.0
      %1094 = vmatpush1.msra.mxu0 0.0
      %1095 = vmatprep.subr.mxu0 0.0
      %1096 = vmatpush1.msra.mxu0 0.0
      %1097 = vmatprep.subr.mxu0 0.0
      %1098 = vmatpush1.msra.mxu0 0.0
      %1099 = vmatprep.subr.mxu0 0.0
      %1100 = vmatpush1.msra.mxu0 0.0
      %1101 = vmatprep.subr.mxu0 0.0
      %1102 = vmatpush1.msra.mxu0 0.0
      %1103 = vmatprep.subr.mxu0 0.0
      %1104 = vmatpush1.msra.mxu0 0.0
      %1105 = vmatprep.subr.mxu0 0.0
      %1106 = vmatpush1.msra.mxu0 0.0
      %1107 = vmatprep.subr.mxu0 0.0
      %1108 = vmatpush1.msra.mxu0 0.0
      %1109 = vmatprep.subr.mxu0 0.0
      %1110 = vmatpush1.msra.mxu0 0.0
      %1111 = vmatprep.subr.mxu0 0.0
      %1112 = vmatpush1.msra.mxu0 0.0
      %1113 = vmatprep.subr.mxu0 0.0
      %1114 = vmatpush1.msra.mxu0 0.0
      %1115 = vmatprep.subr.mxu0 0.0
      %1116 = vmatpush1.msra.mxu0 0.0
      %1117 = vmatprep.subr.mxu0 0.0
      %1118 = vmatpush1.msra.mxu0 0.0
      %1119 = vmatprep.subr.mxu0 0.0
      %1120 = vmatpush1.msra.mxu0 0.0
      %1121 = vmatprep.subr.mxu0 0.0
      %1122 = vmatpush1.msra.mxu0 0.0
      %1123 = vmatprep.subr.mxu0 0.0
      %1124 = vmatpush1.msra.mxu0 0.0
      %1125 = vmatprep.subr.mxu0 0.0
      %1126 = vmatpush1.msra.mxu0 0.0
      %1127 = vmatprep.subr.mxu0 0.0
      %1128 = vmatpush1.msra.mxu0 0.0
      %1129 = vmatprep.subr.mxu0 0.0
      %1130 = vmatpush1.msra.mxu0 0.0
      %1131 = vmatprep.subr.mxu0 0.0
      %1132 = vmatpush1.msra.mxu0 0.0
      %1133 = vmatprep.mubr.f32.mxu0 0.0
      %1134 = vmatmul.mubr.f32.gmra.mrb[0].mxu0 %v1058
      %v1135 = vpop.f32.mrb[0].mxu0
      %v1136 = vadd.f32 %v1055, %v1135
      %v1137 = vpop.f32.mrb[0].mxu0
      %1138 = vmatprep.mubr.f32.mxu0 0.0
      %1139 = vmatmul.mubr.f32.gmra.mrb[0].mxu0 %v1061
      %v1140 = vpop.f32.mrb[0].mxu0
      %v1141 = vadd.f32 %v1055, %v1140
      %v1142 = vpop.f32.mrb[0].mxu0
      %1143 = vmatprep.mubr.f32.mxu0 0.0
      %1144 = vmatmul.mubr.f32.gmra.mrb[0].mxu0 %v1064
      %v1145 = vpop.f32.mrb[0].mxu0
      %v1146 = vadd.f32 %v1055, %v1145
      %v1147 = vpop.f32.mrb[0].mxu0
      %1148 = vmatprep.mubr.f32.mxu0 0.0
      %1149 = vmatmul.mubr.f32.gmra.mrb[0].mxu0 %v1067
      %v1150 = vpop.f32.mrb[0].mxu0
      %v1151 = vadd.f32 %v1055, %v1150
      %v1152 = vpop.f32.mrb[0].mxu0
      %1153 = vdwg.mxu0
      %v1154 = vld [vmem:[%s3 + $0x30] sm:$0xff]
      %v1155 = vld [vmem:[%s3 + $0x38] sm:$0xff]
      %v1156 = vld [vmem:[%s3 + $0x40] sm:$0xff]
      %v1157 = vld [vmem:[%s3 + $0x48] sm:$0xff]
      %v1158 = vld [vmem:[%s3 + $0x50] sm:$0xff]
      %v1159 = vld [vmem:[%s3 + $0x58] sm:$0xff]
      %v1160 = vld [vmem:[%s3 + $0x60] sm:$0xff]
      %v1161 = vld [vmem:[%s3 + $0x68] sm:$0xff]
      %v1162 = vld [vmem:[%s3 + $0x70] sm:$0xff]
      %v1163 = vld [vmem:[%s3 + $0x78] sm:$0xff]
      %v1164 = vld [vmem:[%s3 + $0x80] sm:$0xff]
      %v1165 = vld [vmem:[%s3 + $0x88] sm:$0xff]
      %v1166 = vld [vmem:[%s3 + $0x90] sm:$0xff]
      %v1167 = vld [vmem:[%s3 + $0x98] sm:$0xff]
      %v1168 = vld [vmem:[%s3 + $0xa0] sm:$0xff]
      %v1169 = vld [vmem:[%s3 + $0xa8] sm:$0xff]
      %v1170 = vld [vmem:[%s3 + $0xb0] sm:$0xff]
      %v1171 = vld [vmem:[%s3 + $0xb8] sm:$0xff]
      %v1172 = vld [vmem:[%s3 + $0xc0] sm:$0xff]
      %v1173 = vld [vmem:[%s3 + $0xc8] sm:$0xff]
      %v1174 = vld [vmem:[%s3 + $0xd0] sm:$0xff]
      %v1175 = vld [vmem:[%s3 + $0xd8] sm:$0xff]
      %v1176 = vld [vmem:[%s3 + $0xe0] sm:$0xff]
      %v1177 = vld [vmem:[%s3 + $0xe8] sm:$0xff]
      %v1178 = vld [vmem:[%s3 + $0xf0] sm:$0xff]
      %v1179 = vld [vmem:[%s3 + $0xf8] sm:$0xff]
      %v1180 = vld [vmem:[%s3 + $0x100] sm:$0xff]
      %v1181 = vld [vmem:[%s3 + $0x108] sm:$0xff]
      %v1182 = vld [vmem:[%s3 + $0x110] sm:$0xff]
      %v1183 = vld [vmem:[%s3 + $0x118] sm:$0xff]
      %v1184 = vld [vmem:[%s3 + $0x120] sm:$0xff]
      %v1185 = vld [vmem:[%s3 + $0x128] sm:$0xff]
      %v1186 = vld [vmem:[%s3 + $0x130] sm:$0xff]
      %v1187 = vld [vmem:[%s3 + $0x138] sm:$0xff]
      %v1188 = vld [vmem:[%s3 + $0x140] sm:$0xff]
      %v1189 = vld [vmem:[%s3 + $0x148] sm:$0xff]
      %v1190 = vld [vmem:[%s3 + $0x150] sm:$0xff]
      %v1191 = vld [vmem:[%s3 + $0x158] sm:$0xff]
      %v1192 = vld [vmem:[%s3 + $0x160] sm:$0xff]
      %v1193 = vld [vmem:[%s3 + $0x168] sm:$0xff]
      %v1194 = vld [vmem:[%s3 + $0x170] sm:$0xff]
      %v1195 = vld [vmem:[%s3 + $0x178] sm:$0xff]
      %v1196 = vld [vmem:[%s3 + $0x180] sm:$0xff]
      %v1197 = vld [vmem:[%s3 + $0x188] sm:$0xff]
      %v1198 = vld [vmem:[%s3 + $0x190] sm:$0xff]
      %v1199 = vld [vmem:[%s3 + $0x198] sm:$0xff]
      %v1200 = vld [vmem:[%s3 + $0x1a0] sm:$0xff]
      %v1201 = vld [vmem:[%s3 + $0x1a8] sm:$0xff]
      %v1202 = vld [vmem:[%s3 + $0x1b0] sm:$0xff]
      %v1203 = vld [vmem:[%s3 + $0x1b8] sm:$0xff]
      %v1204 = vld [vmem:[%s3 + $0x1c0] sm:$0xff]
      %v1205 = vld [vmem:[%s3 + $0x1c8] sm:$0xff]
      %v1206 = vld [vmem:[%s3 + $0x1d0] sm:$0xff]
      %v1207 = vld [vmem:[%s3 + $0x1d8] sm:$0xff]
      %v1208 = vld [vmem:[%s3 + $0x1e0] sm:$0xff]
      %v1209 = vld [vmem:[%s3 + $0x1e8] sm:$0xff]
      %v1210 = vld [vmem:[%s3 + $0x1f0] sm:$0xff]
      %v1211 = vld [vmem:[%s3 + $0x1f8] sm:$0xff]
      %v1212 = vld [vmem:[%s3 + $0x200] sm:$0xff]
      %v1213 = vld [vmem:[%s3 + $0x208] sm:$0xff]
      %v1214 = vld [vmem:[%s3 + $0x210] sm:$0xff]
      %v1215 = vld [vmem:[%s3 + $0x218] sm:$0xff]
      %v1216 = vld [vmem:[%s3 + $0x220] sm:$0xff]
      %v1217 = vld [vmem:[%s3 + $0x228] sm:$0xff]
      %1218 = vmatprep.subr.mxu0 %v1187
      %1219 = vmatpush1.msra.mxu0 %v1186
      %1220 = vmatprep.subr.mxu0 %v1189
      %1221 = vmatpush1.msra.mxu0 %v1188
      %1222 = vmatprep.subr.mxu0 %v1191
      %1223 = vmatpush1.msra.mxu0 %v1190
      %1224 = vmatprep.subr.mxu0 %v1193
      %1225 = vmatpush1.msra.mxu0 %v1192
      %1226 = vmatprep.subr.mxu0 %v1195
      %1227 = vmatpush1.msra.mxu0 %v1194
      %1228 = vmatprep.subr.mxu0 %v1197
      %1229 = vmatpush1.msra.mxu0 %v1196
      %1230 = vmatprep.subr.mxu0 %v1199
      %1231 = vmatpush1.msra.mxu0 %v1198
      %1232 = vmatprep.subr.mxu0 %v1201
      %1233 = vmatpush1.msra.mxu0 %v1200
      %1234 = vmatprep.subr.mxu0 %v1203
      %1235 = vmatpush1.msra.mxu0 %v1202
      %1236 = vmatprep.subr.mxu0 %v1205
      %1237 = vmatpush1.msra.mxu0 %v1204
      %1238 = vmatprep.subr.mxu0 %v1207
      %1239 = vmatpush1.msra.mxu0 %v1206
      %1240 = vmatprep.subr.mxu0 %v1209
      %1241 = vmatpush1.msra.mxu0 %v1208
      %1242 = vmatprep.subr.mxu0 %v1211
      %1243 = vmatpush1.msra.mxu0 %v1210
      %1244 = vmatprep.subr.mxu0 %v1213
      %1245 = vmatpush1.msra.mxu0 %v1212
      %1246 = vmatprep.subr.mxu0 %v1215
      %1247 = vmatpush1.msra.mxu0 %v1214
      %1248 = vmatprep.subr.mxu0 %v1217
      %1249 = vmatpush1.msra.mxu0 %v1216
      %1250 = vmatprep.subr.mxu0 0.0
      %1251 = vmatpush1.msra.mxu0 0.0
      %1252 = vmatprep.subr.mxu0 0.0
      %1253 = vmatpush1.msra.mxu0 0.0
      %1254 = vmatprep.subr.mxu0 0.0
      %1255 = vmatpush1.msra.mxu0 0.0
      %1256 = vmatprep.subr.mxu0 0.0
      %1257 = vmatpush1.msra.mxu0 0.0
      %1258 = vmatprep.subr.mxu0 0.0
      %1259 = vmatpush1.msra.mxu0 0.0
      %1260 = vmatprep.subr.mxu0 0.0
      %1261 = vmatpush1.msra.mxu0 0.0
      %1262 = vmatprep.subr.mxu0 0.0
      %1263 = vmatpush1.msra.mxu0 0.0
      %1264 = vmatprep.subr.mxu0 0.0
      %1265 = vmatpush1.msra.mxu0 0.0
      %1266 = vmatprep.subr.mxu0 0.0
      %1267 = vmatpush1.msra.mxu0 0.0
      %1268 = vmatprep.subr.mxu0 0.0
      %1269 = vmatpush1.msra.mxu0 0.0
      %1270 = vmatprep.subr.mxu0 0.0
      %1271 = vmatpush1.msra.mxu0 0.0
      %1272 = vmatprep.subr.mxu0 0.0
      %1273 = vmatpush1.msra.mxu0 0.0
      %1274 = vmatprep.subr.mxu0 0.0
      %1275 = vmatpush1.msra.mxu0 0.0
      %1276 = vmatprep.subr.mxu0 0.0
      %1277 = vmatpush1.msra.mxu0 0.0
      %1278 = vmatprep.subr.mxu0 0.0
      %1279 = vmatpush1.msra.mxu0 0.0
      %1280 = vmatprep.subr.mxu0 0.0
      %1281 = vmatpush1.msra.mxu0 0.0
      %1282 = vmatprep.mubr.f32.mxu0 0.0
      %1283 = vmatmul.mubr.f32.gmra.mrb[0].mxu0 %v1136
      %v1284 = vpop.f32.mrb[0].mxu0
      %v1285 = vadd.f32 0.0, %v1284
      %v1286 = vpop.f32.mrb[0].mxu0
      %v1287 = vadd.f32 0.0, %v1286
      %1288 = vmatprep.mubr.f32.mxu0 0.0
      %1289 = vmatmul.mubr.f32.gmra.mrb[0].mxu0 %v1141
      %v1290 = vpop.f32.mrb[0].mxu0
      %v1291 = vadd.f32 0.0, %v1290
      %v1292 = vpop.f32.mrb[0].mxu0
      %v1293 = vadd.f32 0.0, %v1292
      %1294 = vmatprep.mubr.f32.mxu0 0.0
      %1295 = vmatmul.mubr.f32.gmra.mrb[0].mxu0 %v1146
      %v1296 = vpop.f32.mrb[0].mxu0
      %v1297 = vadd.f32 0.0, %v1296
      %v1298 = vpop.f32.mrb[0].mxu0
      %v1299 = vadd.f32 0.0, %v1298
      %1300 = vmatprep.mubr.f32.mxu0 0.0
      %1301 = vmatmul.mubr.f32.gmra.mrb[0].mxu0 %v1151
      %v1302 = vpop.f32.mrb[0].mxu0
      %v1303 = vadd.f32 0.0, %v1302
      %v1304 = vpop.f32.mrb[0].mxu0
      %v1305 = vadd.f32 0.0, %v1304
      %1306 = vdwg.mxu0
      %vm1339 = vcmask 1041409
      %v1340 = vsel %vm1339, %v869, %v863
      %vm1341 = vcmask 1042434
      %v1342 = vsel %vm1341, %v875, %v1340
      %vm1343 = vcmask 1043459
      %v1344 = vsel %vm1343, %v881, %v1342
      %vm1345 = vcmask 1044484
      %v1346 = vsel %vm1345, %v887, %v1344
      %vm1347 = vcmask 1045509
      %v1348 = vsel %vm1347, %v893, %v1346
      %vm1349 = vcmask 1046534
      %v1350 = vsel %vm1349, %v899, %v1348
      %vm1351 = vcmask 1047559
      %v1352 = vsel %vm1351, %v905, %v1350
      %v1353 = vsel %vm1339, %v917, %v911
      %v1354 = vsel %vm1341, %v923, %v1353
      %v1355 = vsel %vm1343, %v929, %v1354
      %v1356 = vsel %vm1345, %v935, %v1355
      %v1357 = vsel %vm1347, %v941, %v1356
      %v1358 = vsel %vm1349, %v947, %v1357
      %v1359 = vsel %vm1351, %v953, %v1358
      %v1360 = vsel %vm1339, %v965, %v959
      %v1361 = vsel %vm1341, %v971, %v1360
      %v1362 = vsel %vm1343, %v977, %v1361
      %v1363 = vsel %vm1345, %v983, %v1362
      %v1364 = vsel %vm1347, %v989, %v1363
      %v1365 = vsel %vm1349, %v995, %v1364
      %v1366 = vsel %vm1351, %v1001, %v1365
      %v1367 = vsel %vm1339, %v1013, %v1007
      %v1368 = vsel %vm1341, %v1019, %v1367
      %v1369 = vsel %vm1343, %v1025, %v1368
      %v1370 = vsel %vm1345, %v1031, %v1369
      %v1371 = vsel %vm1347, %v1037, %v1370
      %v1372 = vsel %vm1349, %v1043, %v1371
      %v1373 = vsel %vm1351, %v1049, %v1372
      %1378 = vmatprep.subr.mxu0 %v1155
      %1379 = vmatpush1.msra.mxu0 %v1154
      %1380 = vmatprep.subr.mxu0 %v1157
      %1381 = vmatpush1.msra.mxu0 %v1156
      %1382 = vmatprep.subr.mxu0 %v1159
      %1383 = vmatpush1.msra.mxu0 %v1158
      %1384 = vmatprep.subr.mxu0 %v1161
      %1385 = vmatpush1.msra.mxu0 %v1160
      %1386 = vmatprep.subr.mxu0 %v1163
      %1387 = vmatpush1.msra.mxu0 %v1162
      %1388 = vmatprep.subr.mxu0 %v1165
      %1389 = vmatpush1.msra.mxu0 %v1164
      %1390 = vmatprep.subr.mxu0 %v1167
      %1391 = vmatpush1.msra.mxu0 %v1166
      %1392 = vmatprep.subr.mxu0 %v1169
      %1393 = vmatpush1.msra.mxu0 %v1168
      %1394 = vmatprep.subr.mxu0 %v1171
      %1395 = vmatpush1.msra.mxu0 %v1170
      %1396 = vmatprep.subr.mxu0 %v1173
      %1397 = vmatpush1.msra.mxu0 %v1172
      %1398 = vmatprep.subr.mxu0 %v1175
      %1399 = vmatpush1.msra.mxu0 %v1174
      %1400 = vmatprep.subr.mxu0 %v1177
      %1401 = vmatpush1.msra.mxu0 %v1176
      %1402 = vmatprep.subr.mxu0 %v1179
      %1403 = vmatpush1.msra.mxu0 %v1178
      %1404 = vmatprep.subr.mxu0 %v1181
      %1405 = vmatpush1.msra.mxu0 %v1180
      %1406 = vmatprep.subr.mxu0 %v1183
      %1407 = vmatpush1.msra.mxu0 %v1182
      %1408 = vmatprep.subr.mxu0 %v1185
      %1409 = vmatpush1.msra.mxu0 %v1184
      %1410 = vmatprep.subr.mxu0 0.0
      %1411 = vmatpush1.msra.mxu0 0.0
      %1412 = vmatprep.subr.mxu0 0.0
      %1413 = vmatpush1.msra.mxu0 0.0
      %1414 = vmatprep.subr.mxu0 0.0
      %1415 = vmatpush1.msra.mxu0 0.0
      %1416 = vmatprep.subr.mxu0 0.0
      %1417 = vmatpush1.msra.mxu0 0.0
      %1418 = vmatprep.subr.mxu0 0.0
      %1419 = vmatpush1.msra.mxu0 0.0
      %1420 = vmatprep.subr.mxu0 0.0
      %1421 = vmatpush1.msra.mxu0 0.0
      %1422 = vmatprep.subr.mxu0 0.0
      %1423 = vmatpush1.msra.mxu0 0.0
      %1424 = vmatprep.subr.mxu0 0.0
      %1425 = vmatpush1.msra.mxu0 0.0
      %1426 = vmatprep.subr.mxu0 0.0
      %1427 = vmatpush1.msra.mxu0 0.0
      %1428 = vmatprep.subr.mxu0 0.0
      %1429 = vmatpush1.msra.mxu0 0.0
      %1430 = vmatprep.subr.mxu0 0.0
      %1431 = vmatpush1.msra.mxu0 0.0
      %1432 = vmatprep.subr.mxu0 0.0
      %1433 = vmatpush1.msra.mxu0 0.0
      %1434 = vmatprep.subr.mxu0 0.0
      %1435 = vmatpush1.msra.mxu0 0.0
      %1436 = vmatprep.subr.mxu0 0.0
      %1437 = vmatpush1.msra.mxu0 0.0
      %1438 = vmatprep.subr.mxu0 0.0
      %1439 = vmatpush1.msra.mxu0 0.0
      %1440 = vmatprep.subr.mxu0 0.0
      %1441 = vmatpush1.msra.mxu0 0.0
      %1442 = vmatprep.mubr.f32.mxu0 0.0
      %1443 = vmatmul.mubr.f32.gmra.mrb[0].mxu0 %v1352
      %v1444 = vpop.f32.mrb[0].mxu0
      %v1445 = vadd.f32 %v1285, %v1444
      %v1446 = vpop.f32.mrb[0].mxu0
      %v1447 = vadd.f32 %v1287, %v1446
      %1448 = vmatprep.mubr.f32.mxu0 0.0
      %1449 = vmatmul.mubr.f32.gmra.mrb[0].mxu0 %v1359
      %v1450 = vpop.f32.mrb[0].mxu0
      %v1451 = vadd.f32 %v1291, %v1450
      %v1452 = vpop.f32.mrb[0].mxu0
      %v1453 = vadd.f32 %v1293, %v1452
      %1454 = vmatprep.mubr.f32.mxu0 0.0
      %1455 = vmatmul.mubr.f32.gmra.mrb[0].mxu0 %v1366
      %v1456 = vpop.f32.mrb[0].mxu0
      %v1457 = vadd.f32 %v1297, %v1456
      %v1458 = vpop.f32.mrb[0].mxu0
      %v1459 = vadd.f32 %v1299, %v1458
      %1460 = vmatprep.mubr.f32.mxu0 0.0
      %1461 = vmatmul.mubr.f32.gmra.mrb[0].mxu0 %v1373
      %v1462 = vpop.f32.mrb[0].mxu0
      %v1463 = vadd.f32 %v1303, %v1462
      %v1464 = vpop.f32.mrb[0].mxu0
      %v1465 = vadd.f32 %v1305, %v1464
      %1466 = vdwg.mxu0
      %s1467 = scalar_lea.vmem %s3, 1874
      %v1468 = vld [vmem:[%s1467] ss:$8 sm:$0x3]
      %v1470 = vlaneseq
      %v1471 = vshrl.u32 %v1470, 7
      %v1472 = vsub.s32 0, %v1471
      %v1473 = vrot.slane %v1468, %v1472
      %v1474 = vlaneseq
      %v1475 = vshrl.u32 %v1474, 7
      %v1476 = vsub.s32 1, %v1475
      %v1477 = vrot.slane %v1468, %v1476
      %v1480 = vadd.f32 %v1445, %v1473
      %v1481 = vadd.f32 %v1447, %v1477
      %v1482 = vadd.f32 %v1451, %v1473
      %v1483 = vadd.f32 %v1453, %v1477
      %v1484 = vadd.f32 %v1457, %v1473
      %v1485 = vadd.f32 %v1459, %v1477
      %v1486 = vadd.f32 %v1463, %v1473
      %v1487 = vadd.f32 %v1465, %v1477
      %v1492 = vcombine.high %v1480, %v1480
      %v1494 = vunpack.c.l.s4 1966171168
      %v1495 = vunpack.c.0.s8 %v1494
      %v1496 = vlaneseq
      %v1497 = vshrl.u32 %v1496, 7
      %v1498 = vsub.s32 %v1495, %v1497
      %v1499 = vrot.slane %v1480, %v1498
      %v1501 = vunpack.c.l.s4 1966171168
      %v1502 = vunpack.c.0.s8 %v1501
      %v1503 = vlaneseq
      %v1504 = vshrl.u32 %v1503, 7
      %v1505 = vsub.s32 %v1502, %v1504
      %v1506 = vrot.slane %v1492, %v1505
      %v1507 = vcombine.high %v1499, %v1499
      %v1508 = vcombine.high %v1506, %v1506
      %v1510 = vunpack.c.l.s4 1966171168
      %v1511 = vunpack.c.0.s8 %v1510
      %v1512 = vlaneseq
      %v1513 = vshrl.u32 %v1512, 7
      %v1514 = vsub.s32 %v1511, %v1513
      %v1515 = vrot.slane %v1499, %v1514
      %v1517 = vunpack.c.l.s4 1966171168
      %v1518 = vunpack.c.0.s8 %v1517
      %v1519 = vlaneseq
      %v1520 = vshrl.u32 %v1519, 7
      %v1521 = vsub.s32 %v1518, %v1520
      %v1522 = vrot.slane %v1506, %v1521
      %v1524 = vunpack.c.l.s4 1966171168
      %v1525 = vunpack.c.0.s8 %v1524
      %v1526 = vlaneseq
      %v1527 = vshrl.u32 %v1526, 7
      %v1528 = vsub.s32 %v1525, %v1527
      %v1529 = vrot.slane %v1507, %v1528
      %v1531 = vunpack.c.l.s4 1966171168
      %v1532 = vunpack.c.0.s8 %v1531
      %v1533 = vlaneseq
      %v1534 = vshrl.u32 %v1533, 7
      %v1535 = vsub.s32 %v1532, %v1534
      %v1536 = vrot.slane %v1508, %v1535
      %v1537 = vcombine.high %v1515, %v1515
      %v1538 = vcombine.high %v1522, %v1522
      %v1539 = vcombine.high %v1529, %v1529
      %v1540 = vcombine.high %v1536, %v1536
      %v1541 = vcombine.high %v1482, %v1482
      %v1543 = vunpack.c.l.s4 1966171168
      %v1544 = vunpack.c.0.s8 %v1543
      %v1545 = vlaneseq
      %v1546 = vshrl.u32 %v1545, 7
      %v1547 = vsub.s32 %v1544, %v1546
      %v1548 = vrot.slane %v1482, %v1547
      %v1550 = vunpack.c.l.s4 1966171168
      %v1551 = vunpack.c.0.s8 %v1550
      %v1552 = vlaneseq
      %v1553 = vshrl.u32 %v1552, 7
      %v1554 = vsub.s32 %v1551, %v1553
      %v1555 = vrot.slane %v1541, %v1554
      %v1556 = vcombine.high %v1548, %v1548
      %v1557 = vcombine.high %v1555, %v1555
      %v1559 = vunpack.c.l.s4 1966171168
      %v1560 = vunpack.c.0.s8 %v1559
      %v1561 = vlaneseq
      %v1562 = vshrl.u32 %v1561, 7
      %v1563 = vsub.s32 %v1560, %v1562
      %v1564 = vrot.slane %v1548, %v1563
      %v1566 = vunpack.c.l.s4 1966171168
      %v1567 = vunpack.c.0.s8 %v1566
      %v1568 = vlaneseq
      %v1569 = vshrl.u32 %v1568, 7
      %v1570 = vsub.s32 %v1567, %v1569
      %v1571 = vrot.slane %v1555, %v1570
      %v1573 = vunpack.c.l.s4 1966171168
      %v1574 = vunpack.c.0.s8 %v1573
      %v1575 = vlaneseq
      %v1576 = vshrl.u32 %v1575, 7
      %v1577 = vsub.s32 %v1574, %v1576
      %v1578 = vrot.slane %v1556, %v1577
      %v1580 = vunpack.c.l.s4 1966171168
      %v1581 = vunpack.c.0.s8 %v1580
      %v1582 = vlaneseq
      %v1583 = vshrl.u32 %v1582, 7
      %v1584 = vsub.s32 %v1581, %v1583
      %v1585 = vrot.slane %v1557, %v1584
      %v1586 = vcombine.high %v1564, %v1564
      %v1587 = vcombine.high %v1571, %v1571
      %v1588 = vcombine.high %v1578, %v1578
      %v1589 = vcombine.high %v1585, %v1585
      %v1590 = vcombine.high %v1484, %v1484
      %v1592 = vunpack.c.l.s4 1966171168
      %v1593 = vunpack.c.0.s8 %v1592
      %v1594 = vlaneseq
      %v1595 = vshrl.u32 %v1594, 7
      %v1596 = vsub.s32 %v1593, %v1595
      %v1597 = vrot.slane %v1484, %v1596
      %v1599 = vunpack.c.l.s4 1966171168
      %v1600 = vunpack.c.0.s8 %v1599
      %v1601 = vlaneseq
      %v1602 = vshrl.u32 %v1601, 7
      %v1603 = vsub.s32 %v1600, %v1602
      %v1604 = vrot.slane %v1590, %v1603
      %v1605 = vcombine.high %v1597, %v1597
      %v1606 = vcombine.high %v1604, %v1604
      %v1608 = vunpack.c.l.s4 1966171168
      %v1609 = vunpack.c.0.s8 %v1608
      %v1610 = vlaneseq
      %v1611 = vshrl.u32 %v1610, 7
      %v1612 = vsub.s32 %v1609, %v1611
      %v1613 = vrot.slane %v1597, %v1612
      %v1615 = vunpack.c.l.s4 1966171168
      %v1616 = vunpack.c.0.s8 %v1615
      %v1617 = vlaneseq
      %v1618 = vshrl.u32 %v1617, 7
      %v1619 = vsub.s32 %v1616, %v1618
      %v1620 = vrot.slane %v1604, %v1619
      %v1622 = vunpack.c.l.s4 1966171168
      %v1623 = vunpack.c.0.s8 %v1622
      %v1624 = vlaneseq
      %v1625 = vshrl.u32 %v1624, 7
      %v1626 = vsub.s32 %v1623, %v1625
      %v1627 = vrot.slane %v1605, %v1626
      %v1629 = vunpack.c.l.s4 1966171168
      %v1630 = vunpack.c.0.s8 %v1629
      %v1631 = vlaneseq
      %v1632 = vshrl.u32 %v1631, 7
      %v1633 = vsub.s32 %v1630, %v1632
      %v1634 = vrot.slane %v1606, %v1633
      %v1635 = vcombine.high %v1613, %v1613
      %v1636 = vcombine.high %v1620, %v1620
      %v1637 = vcombine.high %v1627, %v1627
      %v1638 = vcombine.high %v1634, %v1634
      %v1639 = vcombine.high %v1486, %v1486
      %v1641 = vunpack.c.l.s4 1966171168
      %v1642 = vunpack.c.0.s8 %v1641
      %v1643 = vlaneseq
      %v1644 = vshrl.u32 %v1643, 7
      %v1645 = vsub.s32 %v1642, %v1644
      %v1646 = vrot.slane %v1486, %v1645
      %v1648 = vunpack.c.l.s4 1966171168
      %v1649 = vunpack.c.0.s8 %v1648
      %v1650 = vlaneseq
      %v1651 = vshrl.u32 %v1650, 7
      %v1652 = vsub.s32 %v1649, %v1651
      %v1653 = vrot.slane %v1639, %v1652
      %v1654 = vcombine.high %v1646, %v1646
      %v1655 = vcombine.high %v1653, %v1653
      %v1657 = vunpack.c.l.s4 1966171168
      %v1658 = vunpack.c.0.s8 %v1657
      %v1659 = vlaneseq
      %v1660 = vshrl.u32 %v1659, 7
      %v1661 = vsub.s32 %v1658, %v1660
      %v1662 = vrot.slane %v1646, %v1661
      %v1664 = vunpack.c.l.s4 1966171168
      %v1665 = vunpack.c.0.s8 %v1664
      %v1666 = vlaneseq
      %v1667 = vshrl.u32 %v1666, 7
      %v1668 = vsub.s32 %v1665, %v1667
      %v1669 = vrot.slane %v1653, %v1668
      %v1671 = vunpack.c.l.s4 1966171168
      %v1672 = vunpack.c.0.s8 %v1671
      %v1673 = vlaneseq
      %v1674 = vshrl.u32 %v1673, 7
      %v1675 = vsub.s32 %v1672, %v1674
      %v1676 = vrot.slane %v1654, %v1675
      %v1678 = vunpack.c.l.s4 1966171168
      %v1679 = vunpack.c.0.s8 %v1678
      %v1680 = vlaneseq
      %v1681 = vshrl.u32 %v1680, 7
      %v1682 = vsub.s32 %v1679, %v1681
      %v1683 = vrot.slane %v1655, %v1682
      %v1684 = vcombine.high %v1662, %v1662
      %v1685 = vcombine.high %v1669, %v1669
      %v1686 = vcombine.high %v1676, %v1676
      %v1687 = vcombine.high %v1683, %v1683
      %v1688 = vld [vmem:[%s3 + $0x230] sm:$0xff]
      %v1689 = vlaneseq
      %v1690 = vshrl.u32 %v1689, 7
      %v1691 = vsub.s32 0, %v1690
      %v1692 = vrot.slane %v1515, %v1691
      %v1693 = vlaneseq
      %v1694 = vshrl.u32 %v1693, 7
      %v1695 = vsub.s32 0, %v1694
      %v1696 = vrot.slane %v1529, %v1695
      %v1697 = vlaneseq
      %v1698 = vshrl.u32 %v1697, 7
      %v1699 = vsub.s32 0, %v1698
      %v1700 = vrot.slane %v1537, %v1699
      %v1701 = vlaneseq
      %v1702 = vshrl.u32 %v1701, 7
      %v1703 = vsub.s32 0, %v1702
      %v1704 = vrot.slane %v1539, %v1703
      %v1705 = vlaneseq
      %v1706 = vshrl.u32 %v1705, 7
      %v1707 = vsub.s32 0, %v1706
      %v1708 = vrot.slane %v1522, %v1707
      %v1709 = vlaneseq
      %v1710 = vshrl.u32 %v1709, 7
      %v1711 = vsub.s32 0, %v1710
      %v1712 = vrot.slane %v1536, %v1711
      %v1713 = vlaneseq
      %v1714 = vshrl.u32 %v1713, 7
      %v1715 = vsub.s32 0, %v1714
      %v1716 = vrot.slane %v1538, %v1715
      %v1717 = vlaneseq
      %v1718 = vshrl.u32 %v1717, 7
      %v1719 = vsub.s32 0, %v1718
      %v1720 = vrot.slane %v1540, %v1719
      %v1721 = vlaneseq
      %v1722 = vshrl.u32 %v1721, 7
      %v1723 = vsub.s32 0, %v1722
      %v1724 = vrot.slane %v1564, %v1723
      %v1725 = vlaneseq
      %v1726 = vshrl.u32 %v1725, 7
      %v1727 = vsub.s32 0, %v1726
      %v1728 = vrot.slane %v1578, %v1727
      %v1729 = vlaneseq
      %v1730 = vshrl.u32 %v1729, 7
      %v1731 = vsub.s32 0, %v1730
      %v1732 = vrot.slane %v1586, %v1731
      %v1733 = vlaneseq
      %v1734 = vshrl.u32 %v1733, 7
      %v1735 = vsub.s32 0, %v1734
      %v1736 = vrot.slane %v1588, %v1735
      %v1737 = vlaneseq
      %v1738 = vshrl.u32 %v1737, 7
      %v1739 = vsub.s32 0, %v1738
      %v1740 = vrot.slane %v1571, %v1739
      %v1741 = vlaneseq
      %v1742 = vshrl.u32 %v1741, 7
      %v1743 = vsub.s32 0, %v1742
      %v1744 = vrot.slane %v1585, %v1743
      %v1745 = vlaneseq
      %v1746 = vshrl.u32 %v1745, 7
      %v1747 = vsub.s32 0, %v1746
      %v1748 = vrot.slane %v1587, %v1747
      %v1749 = vlaneseq
      %v1750 = vshrl.u32 %v1749, 7
      %v1751 = vsub.s32 0, %v1750
      %v1752 = vrot.slane %v1589, %v1751
      %v1753 = vlaneseq
      %v1754 = vshrl.u32 %v1753, 7
      %v1755 = vsub.s32 0, %v1754
      %v1756 = vrot.slane %v1613, %v1755
      %v1757 = vlaneseq
      %v1758 = vshrl.u32 %v1757, 7
      %v1759 = vsub.s32 0, %v1758
      %v1760 = vrot.slane %v1627, %v1759
      %v1761 = vlaneseq
      %v1762 = vshrl.u32 %v1761, 7
      %v1763 = vsub.s32 0, %v1762
      %v1764 = vrot.slane %v1635, %v1763
      %v1765 = vlaneseq
      %v1766 = vshrl.u32 %v1765, 7
      %v1767 = vsub.s32 0, %v1766
      %v1768 = vrot.slane %v1637, %v1767
      %v1769 = vlaneseq
      %v1770 = vshrl.u32 %v1769, 7
      %v1771 = vsub.s32 0, %v1770
      %v1772 = vrot.slane %v1620, %v1771
      %v1773 = vlaneseq
      %v1774 = vshrl.u32 %v1773, 7
      %v1775 = vsub.s32 0, %v1774
      %v1776 = vrot.slane %v1634, %v1775
      %v1777 = vlaneseq
      %v1778 = vshrl.u32 %v1777, 7
      %v1779 = vsub.s32 0, %v1778
      %v1780 = vrot.slane %v1636, %v1779
      %v1781 = vlaneseq
      %v1782 = vshrl.u32 %v1781, 7
      %v1783 = vsub.s32 0, %v1782
      %v1784 = vrot.slane %v1638, %v1783
      %v1785 = vlaneseq
      %v1786 = vshrl.u32 %v1785, 7
      %v1787 = vsub.s32 0, %v1786
      %v1788 = vrot.slane %v1662, %v1787
      %v1789 = vlaneseq
      %v1790 = vshrl.u32 %v1789, 7
      %v1791 = vsub.s32 0, %v1790
      %v1792 = vrot.slane %v1676, %v1791
      %v1793 = vlaneseq
      %v1794 = vshrl.u32 %v1793, 7
      %v1795 = vsub.s32 0, %v1794
      %v1796 = vrot.slane %v1684, %v1795
      %v1797 = vlaneseq
      %v1798 = vshrl.u32 %v1797, 7
      %v1799 = vsub.s32 0, %v1798
      %v1800 = vrot.slane %v1686, %v1799
      %v1801 = vlaneseq
      %v1802 = vshrl.u32 %v1801, 7
      %v1803 = vsub.s32 0, %v1802
      %v1804 = vrot.slane %v1669, %v1803
      %v1805 = vlaneseq
      %v1806 = vshrl.u32 %v1805, 7
      %v1807 = vsub.s32 0, %v1806
      %v1808 = vrot.slane %v1683, %v1807
      %v1809 = vlaneseq
      %v1810 = vshrl.u32 %v1809, 7
      %v1811 = vsub.s32 0, %v1810
      %v1812 = vrot.slane %v1685, %v1811
      %v1813 = vlaneseq
      %v1814 = vshrl.u32 %v1813, 7
      %v1815 = vsub.s32 0, %v1814
      %v1816 = vrot.slane %v1687, %v1815
      %v1849 = vmul.f32 %v1692, %v1688
      %v1850 = vmul.f32 %v1696, %v1688
      %v1851 = vmul.f32 %v1700, %v1688
      %v1852 = vmul.f32 %v1704, %v1688
      %v1853 = vmul.f32 %v1708, %v1688
      %v1854 = vmul.f32 %v1712, %v1688
      %v1855 = vmul.f32 %v1716, %v1688
      %v1856 = vmul.f32 %v1720, %v1688
      %v1857 = vmul.f32 %v1724, %v1688
      %v1858 = vmul.f32 %v1728, %v1688
      %v1859 = vmul.f32 %v1732, %v1688
      %v1860 = vmul.f32 %v1736, %v1688
      %v1861 = vmul.f32 %v1740, %v1688
      %v1862 = vmul.f32 %v1744, %v1688
      %v1863 = vmul.f32 %v1748, %v1688
      %v1864 = vmul.f32 %v1752, %v1688
      %v1865 = vmul.f32 %v1756, %v1688
      %v1866 = vmul.f32 %v1760, %v1688
      %v1867 = vmul.f32 %v1764, %v1688
      %v1868 = vmul.f32 %v1768, %v1688
      %v1869 = vmul.f32 %v1772, %v1688
      %v1870 = vmul.f32 %v1776, %v1688
      %v1871 = vmul.f32 %v1780, %v1688
      %v1872 = vmul.f32 %v1784, %v1688
      %v1873 = vmul.f32 %v1788, %v1688
      %v1874 = vmul.f32 %v1792, %v1688
      %v1875 = vmul.f32 %v1796, %v1688
      %v1876 = vmul.f32 %v1800, %v1688
      %v1877 = vmul.f32 %v1804, %v1688
      %v1878 = vmul.f32 %v1808, %v1688
      %v1879 = vmul.f32 %v1812, %v1688
      %v1880 = vmul.f32 %v1816, %v1688
      %1881 = vadd.xlane.f32.xlu0 %v1849
      %v1882 = vpop.xlane.xlu0 %1881
      %1883 = vadd.xlane.f32.xlu0 %v1850
      %v1884 = vpop.xlane.xlu0 %1883
      %1885 = vadd.xlane.f32.xlu0 %v1851
      %v1886 = vpop.xlane.xlu0 %1885
      %1887 = vadd.xlane.f32.xlu0 %v1852
      %v1888 = vpop.xlane.xlu0 %1887
      %1889 = vadd.xlane.f32.xlu0 %v1853
      %v1890 = vpop.xlane.xlu0 %1889
      %1891 = vadd.xlane.f32.xlu0 %v1854
      %v1892 = vpop.xlane.xlu0 %1891
      %1893 = vadd.xlane.f32.xlu0 %v1855
      %v1894 = vpop.xlane.xlu0 %1893
      %1895 = vadd.xlane.f32.xlu0 %v1856
      %v1896 = vpop.xlane.xlu0 %1895
      %1897 = vadd.xlane.f32.xlu0 %v1857
      %v1898 = vpop.xlane.xlu0 %1897
      %1899 = vadd.xlane.f32.xlu0 %v1858
      %v1900 = vpop.xlane.xlu0 %1899
      %1901 = vadd.xlane.f32.xlu0 %v1859
      %v1902 = vpop.xlane.xlu0 %1901
      %1903 = vadd.xlane.f32.xlu0 %v1860
      %v1904 = vpop.xlane.xlu0 %1903
      %1905 = vadd.xlane.f32.xlu0 %v1861
      %v1906 = vpop.xlane.xlu0 %1905
      %1907 = vadd.xlane.f32.xlu0 %v1862
      %v1908 = vpop.xlane.xlu0 %1907
      %1909 = vadd.xlane.f32.xlu0 %v1863
      %v1910 = vpop.xlane.xlu0 %1909
      %1911 = vadd.xlane.f32.xlu0 %v1864
      %v1912 = vpop.xlane.xlu0 %1911
      %1913 = vadd.xlane.f32.xlu0 %v1865
      %v1914 = vpop.xlane.xlu0 %1913
      %1915 = vadd.xlane.f32.xlu0 %v1866
      %v1916 = vpop.xlane.xlu0 %1915
      %1917 = vadd.xlane.f32.xlu0 %v1867
      %v1918 = vpop.xlane.xlu0 %1917
      %1919 = vadd.xlane.f32.xlu0 %v1868
      %v1920 = vpop.xlane.xlu0 %1919
      %1921 = vadd.xlane.f32.xlu0 %v1869
      %v1922 = vpop.xlane.xlu0 %1921
      %1923 = vadd.xlane.f32.xlu0 %v1870
      %v1924 = vpop.xlane.xlu0 %1923
      %1925 = vadd.xlane.f32.xlu0 %v1871
      %v1926 = vpop.xlane.xlu0 %1925
      %1927 = vadd.xlane.f32.xlu0 %v1872
      %v1928 = vpop.xlane.xlu0 %1927
      %1929 = vadd.xlane.f32.xlu0 %v1873
      %v1930 = vpop.xlane.xlu0 %1929
      %1931 = vadd.xlane.f32.xlu0 %v1874
      %v1932 = vpop.xlane.xlu0 %1931
      %1933 = vadd.xlane.f32.xlu0 %v1875
      %v1934 = vpop.xlane.xlu0 %1933
      %1935 = vadd.xlane.f32.xlu0 %v1876
      %v1936 = vpop.xlane.xlu0 %1935
      %1937 = vadd.xlane.f32.xlu0 %v1877
      %v1938 = vpop.xlane.xlu0 %1937
      %1939 = vadd.xlane.f32.xlu0 %v1878
      %v1940 = vpop.xlane.xlu0 %1939
      %1941 = vadd.xlane.f32.xlu0 %v1879
      %v1942 = vpop.xlane.xlu0 %1941
      %1943 = vadd.xlane.f32.xlu0 %v1880
      %v1944 = vpop.xlane.xlu0 %1943
      %v1945 = vmul.f32 %v602, %v1882
      %v1946 = vmul.f32 %v603, %v1884
      %v1947 = vmul.f32 %v604, %v1886
      %v1948 = vmul.f32 %v605, %v1888
      %v1949 = vmul.f32 %v606, %v1890
      %v1950 = vmul.f32 %v607, %v1892
      %v1951 = vmul.f32 %v608, %v1894
      %v1952 = vmul.f32 %v609, %v1896
      %v1953 = vmul.f32 %v610, %v1898
      %v1954 = vmul.f32 %v611, %v1900
      %v1955 = vmul.f32 %v612, %v1902
      %v1956 = vmul.f32 %v613, %v1904
      %v1957 = vmul.f32 %v614, %v1906
      %v1958 = vmul.f32 %v615, %v1908
      %v1959 = vmul.f32 %v616, %v1910
      %v1960 = vmul.f32 %v617, %v1912
      %v1961 = vmul.f32 %v618, %v1914
      %v1962 = vmul.f32 %v619, %v1916
      %v1963 = vmul.f32 %v620, %v1918
      %v1964 = vmul.f32 %v621, %v1920
      %v1965 = vmul.f32 %v622, %v1922
      %v1966 = vmul.f32 %v623, %v1924
      %v1967 = vmul.f32 %v624, %v1926
      %v1968 = vmul.f32 %v625, %v1928
      %v1969 = vmul.f32 %v626, %v1930
      %v1970 = vmul.f32 %v627, %v1932
      %v1971 = vmul.f32 %v628, %v1934
      %v1972 = vmul.f32 %v629, %v1936
      %v1973 = vmul.f32 %v630, %v1938
      %v1974 = vmul.f32 %v631, %v1940
      %v1975 = vmul.f32 %v632, %v1942
      %v1976 = vmul.f32 %v633, %v1944
      %v1977 = vrot.slane %v1945, 4
      %v1978 = vadd.f32 %v1945, %v1977
      %v1979 = vrot.slane %v1978, 2
      %v1980 = vadd.f32 %v1978, %v1979
      %v1981 = vrot.slane %v1980, 1
      %v1982 = vadd.f32 %v1980, %v1981
      %v1983 = vrot.slane %v1946, 4
      %v1984 = vadd.f32 %v1946, %v1983
      %v1985 = vrot.slane %v1984, 2
      %v1986 = vadd.f32 %v1984, %v1985
      %v1987 = vrot.slane %v1986, 1
      %v1988 = vadd.f32 %v1986, %v1987
      %v1989 = vrot.slane %v1947, 4
      %v1990 = vadd.f32 %v1947, %v1989
      %v1991 = vrot.slane %v1990, 2
      %v1992 = vadd.f32 %v1990, %v1991
      %v1993 = vrot.slane %v1992, 1
      %v1994 = vadd.f32 %v1992, %v1993
      %v1995 = vrot.slane %v1948, 4
      %v1996 = vadd.f32 %v1948, %v1995
      %v1997 = vrot.slane %v1996, 2
      %v1998 = vadd.f32 %v1996, %v1997
      %v1999 = vrot.slane %v1998, 1
      %v2000 = vadd.f32 %v1998, %v1999
      %v2001 = vrot.slane %v1949, 4
      %v2002 = vadd.f32 %v1949, %v2001
      %v2003 = vrot.slane %v2002, 2
      %v2004 = vadd.f32 %v2002, %v2003
      %v2005 = vrot.slane %v2004, 1
      %v2006 = vadd.f32 %v2004, %v2005
      %v2007 = vrot.slane %v1950, 4
      %v2008 = vadd.f32 %v1950, %v2007
      %v2009 = vrot.slane %v2008, 2
      %v2010 = vadd.f32 %v2008, %v2009
      %v2011 = vrot.slane %v2010, 1
      %v2012 = vadd.f32 %v2010, %v2011
      %v2013 = vrot.slane %v1951, 4
      %v2014 = vadd.f32 %v1951, %v2013
      %v2015 = vrot.slane %v2014, 2
      %v2016 = vadd.f32 %v2014, %v2015
      %v2017 = vrot.slane %v2016, 1
      %v2018 = vadd.f32 %v2016, %v2017
      %v2019 = vrot.slane %v1952, 4
      %v2020 = vadd.f32 %v1952, %v2019
      %v2021 = vrot.slane %v2020, 2
      %v2022 = vadd.f32 %v2020, %v2021
      %v2023 = vrot.slane %v2022, 1
      %v2024 = vadd.f32 %v2022, %v2023
      %v2025 = vrot.slane %v1953, 4
      %v2026 = vadd.f32 %v1953, %v2025
      %v2027 = vrot.slane %v2026, 2
      %v2028 = vadd.f32 %v2026, %v2027
      %v2029 = vrot.slane %v2028, 1
      %v2030 = vadd.f32 %v2028, %v2029
      %v2031 = vrot.slane %v1954, 4
      %v2032 = vadd.f32 %v1954, %v2031
      %v2033 = vrot.slane %v2032, 2
      %v2034 = vadd.f32 %v2032, %v2033
      %v2035 = vrot.slane %v2034, 1
      %v2036 = vadd.f32 %v2034, %v2035
      %v2037 = vrot.slane %v1955, 4
      %v2038 = vadd.f32 %v1955, %v2037
      %v2039 = vrot.slane %v2038, 2
      %v2040 = vadd.f32 %v2038, %v2039
      %v2041 = vrot.slane %v2040, 1
      %v2042 = vadd.f32 %v2040, %v2041
      %v2043 = vrot.slane %v1956, 4
      %v2044 = vadd.f32 %v1956, %v2043
      %v2045 = vrot.slane %v2044, 2
      %v2046 = vadd.f32 %v2044, %v2045
      %v2047 = vrot.slane %v2046, 1
      %v2048 = vadd.f32 %v2046, %v2047
      %v2049 = vrot.slane %v1957, 4
      %v2050 = vadd.f32 %v1957, %v2049
      %v2051 = vrot.slane %v2050, 2
      %v2052 = vadd.f32 %v2050, %v2051
      %v2053 = vrot.slane %v2052, 1
      %v2054 = vadd.f32 %v2052, %v2053
      %v2055 = vrot.slane %v1958, 4
      %v2056 = vadd.f32 %v1958, %v2055
      %v2057 = vrot.slane %v2056, 2
      %v2058 = vadd.f32 %v2056, %v2057
      %v2059 = vrot.slane %v2058, 1
      %v2060 = vadd.f32 %v2058, %v2059
      %v2061 = vrot.slane %v1959, 4
      %v2062 = vadd.f32 %v1959, %v2061
      %v2063 = vrot.slane %v2062, 2
      %v2064 = vadd.f32 %v2062, %v2063
      %v2065 = vrot.slane %v2064, 1
      %v2066 = vadd.f32 %v2064, %v2065
      %v2067 = vrot.slane %v1960, 4
      %v2068 = vadd.f32 %v1960, %v2067
      %v2069 = vrot.slane %v2068, 2
      %v2070 = vadd.f32 %v2068, %v2069
      %v2071 = vrot.slane %v2070, 1
      %v2072 = vadd.f32 %v2070, %v2071
      %v2073 = vrot.slane %v1961, 4
      %v2074 = vadd.f32 %v1961, %v2073
      %v2075 = vrot.slane %v2074, 2
      %v2076 = vadd.f32 %v2074, %v2075
      %v2077 = vrot.slane %v2076, 1
      %v2078 = vadd.f32 %v2076, %v2077
      %v2079 = vrot.slane %v1962, 4
      %v2080 = vadd.f32 %v1962, %v2079
      %v2081 = vrot.slane %v2080, 2
      %v2082 = vadd.f32 %v2080, %v2081
      %v2083 = vrot.slane %v2082, 1
      %v2084 = vadd.f32 %v2082, %v2083
      %v2085 = vrot.slane %v1963, 4
      %v2086 = vadd.f32 %v1963, %v2085
      %v2087 = vrot.slane %v2086, 2
      %v2088 = vadd.f32 %v2086, %v2087
      %v2089 = vrot.slane %v2088, 1
      %v2090 = vadd.f32 %v2088, %v2089
      %v2091 = vrot.slane %v1964, 4
      %v2092 = vadd.f32 %v1964, %v2091
      %v2093 = vrot.slane %v2092, 2
      %v2094 = vadd.f32 %v2092, %v2093
      %v2095 = vrot.slane %v2094, 1
      %v2096 = vadd.f32 %v2094, %v2095
      %v2097 = vrot.slane %v1965, 4
      %v2098 = vadd.f32 %v1965, %v2097
      %v2099 = vrot.slane %v2098, 2
      %v2100 = vadd.f32 %v2098, %v2099
      %v2101 = vrot.slane %v2100, 1
      %v2102 = vadd.f32 %v2100, %v2101
      %v2103 = vrot.slane %v1966, 4
      %v2104 = vadd.f32 %v1966, %v2103
      %v2105 = vrot.slane %v2104, 2
      %v2106 = vadd.f32 %v2104, %v2105
      %v2107 = vrot.slane %v2106, 1
      %v2108 = vadd.f32 %v2106, %v2107
      %v2109 = vrot.slane %v1967, 4
      %v2110 = vadd.f32 %v1967, %v2109
      %v2111 = vrot.slane %v2110, 2
      %v2112 = vadd.f32 %v2110, %v2111
      %v2113 = vrot.slane %v2112, 1
      %v2114 = vadd.f32 %v2112, %v2113
      %v2115 = vrot.slane %v1968, 4
      %v2116 = vadd.f32 %v1968, %v2115
      %v2117 = vrot.slane %v2116, 2
      %v2118 = vadd.f32 %v2116, %v2117
      %v2119 = vrot.slane %v2118, 1
      %v2120 = vadd.f32 %v2118, %v2119
      %v2121 = vrot.slane %v1969, 4
      %v2122 = vadd.f32 %v1969, %v2121
      %v2123 = vrot.slane %v2122, 2
      %v2124 = vadd.f32 %v2122, %v2123
      %v2125 = vrot.slane %v2124, 1
      %v2126 = vadd.f32 %v2124, %v2125
      %v2127 = vrot.slane %v1970, 4
      %v2128 = vadd.f32 %v1970, %v2127
      %v2129 = vrot.slane %v2128, 2
      %v2130 = vadd.f32 %v2128, %v2129
      %v2131 = vrot.slane %v2130, 1
      %v2132 = vadd.f32 %v2130, %v2131
      %v2133 = vrot.slane %v1971, 4
      %v2134 = vadd.f32 %v1971, %v2133
      %v2135 = vrot.slane %v2134, 2
      %v2136 = vadd.f32 %v2134, %v2135
      %v2137 = vrot.slane %v2136, 1
      %v2138 = vadd.f32 %v2136, %v2137
      %v2139 = vrot.slane %v1972, 4
      %v2140 = vadd.f32 %v1972, %v2139
      %v2141 = vrot.slane %v2140, 2
      %v2142 = vadd.f32 %v2140, %v2141
      %v2143 = vrot.slane %v2142, 1
      %v2144 = vadd.f32 %v2142, %v2143
      %v2145 = vrot.slane %v1973, 4
      %v2146 = vadd.f32 %v1973, %v2145
      %v2147 = vrot.slane %v2146, 2
      %v2148 = vadd.f32 %v2146, %v2147
      %v2149 = vrot.slane %v2148, 1
      %v2150 = vadd.f32 %v2148, %v2149
      %v2151 = vrot.slane %v1974, 4
      %v2152 = vadd.f32 %v1974, %v2151
      %v2153 = vrot.slane %v2152, 2
      %v2154 = vadd.f32 %v2152, %v2153
      %v2155 = vrot.slane %v2154, 1
      %v2156 = vadd.f32 %v2154, %v2155
      %v2157 = vrot.slane %v1975, 4
      %v2158 = vadd.f32 %v1975, %v2157
      %v2159 = vrot.slane %v2158, 2
      %v2160 = vadd.f32 %v2158, %v2159
      %v2161 = vrot.slane %v2160, 1
      %v2162 = vadd.f32 %v2160, %v2161
      %v2163 = vrot.slane %v1976, 4
      %v2164 = vadd.f32 %v1976, %v2163
      %v2165 = vrot.slane %v2164, 2
      %v2166 = vadd.f32 %v2164, %v2165
      %v2167 = vrot.slane %v2166, 1
      %v2168 = vadd.f32 %v2166, %v2167
      %v2169 = vlaneseq
      %v2170 = vand.u32 %v2169, 127
      %vm2171 = vcmp.lt.s32.totalorder %v2170, 32
      %v2204 = vsel %vm1339, %v1988, %v1982
      %v2205 = vsel %vm1341, %v1994, %v2204
      %v2206 = vsel %vm1343, %v2000, %v2205
      %v2207 = vsel %vm1345, %v2006, %v2206
      %v2208 = vsel %vm1347, %v2012, %v2207
      %v2209 = vsel %vm1349, %v2018, %v2208
      %v2210 = vsel %vm1351, %v2024, %v2209
      %v2211 = vsel %vm1339, %v2036, %v2030
      %v2212 = vsel %vm1341, %v2042, %v2211
      %v2213 = vsel %vm1343, %v2048, %v2212
      %v2214 = vsel %vm1345, %v2054, %v2213
      %v2215 = vsel %vm1347, %v2060, %v2214
      %v2216 = vsel %vm1349, %v2066, %v2215
      %v2217 = vsel %vm1351, %v2072, %v2216
      %v2218 = vsel %vm1339, %v2084, %v2078
      %v2219 = vsel %vm1341, %v2090, %v2218
      %v2220 = vsel %vm1343, %v2096, %v2219
      %v2221 = vsel %vm1345, %v2102, %v2220
      %v2222 = vsel %vm1347, %v2108, %v2221
      %v2223 = vsel %vm1349, %v2114, %v2222
      %v2224 = vsel %vm1351, %v2120, %v2223
      %v2225 = vsel %vm1339, %v2132, %v2126
      %v2226 = vsel %vm1341, %v2138, %v2225
      %v2227 = vsel %vm1343, %v2144, %v2226
      %v2228 = vsel %vm1345, %v2150, %v2227
      %v2229 = vsel %vm1347, %v2156, %v2228
      %v2230 = vsel %vm1349, %v2162, %v2229
      %v2231 = vsel %vm1351, %v2168, %v2230
      %v2236 = vsel %vm2171, %v2210, -1e+30
      %v2237 = vsel %vm2171, %v2217, -1e+30
      %v2238 = vsel %vm2171, %v2224, -1e+30
      %v2239 = vsel %vm2171, %v2231, -1e+30
      %2240 = vmax.xlane.f32.xlu0 %v2236
      %v2241 = vpop.xlane.xlu0 %2240
      %2242 = vmax.xlane.f32.xlu0 %v2237
      %v2243 = vpop.xlane.xlu0 %2242
      %2244 = vmax.xlane.f32.xlu0 %v2238
      %v2245 = vpop.xlane.xlu0 %2244
      %2246 = vmax.xlane.f32.xlu0 %v2239
      %v2247 = vpop.xlane.xlu0 %2246
      %v2248 = vsub.f32 %v2236, %v2241
      %v2249 = vsub.f32 %v2237, %v2243
      %v2250 = vsub.f32 %v2238, %v2245
      %v2251 = vsub.f32 %v2239, %v2247
      %v2252 = vmul.f32 %v2248, 1.442695
      %v2253 = vpow.pop %v2252
      %v2254 = vmul.f32 %v2249, 1.442695
      %v2255 = vpow.pop %v2254
      %v2256 = vmul.f32 %v2250, 1.442695
      %v2257 = vpow.pop %v2256
      %v2258 = vmul.f32 %v2251, 1.442695
      %v2259 = vpow.pop %v2258
      %2260 = vadd.xlane.f32.xlu0 %v2253
      %v2261 = vpop.xlane.xlu0 %2260
      %2262 = vadd.xlane.f32.xlu0 %v2255
      %v2263 = vpop.xlane.xlu0 %2262
      %2264 = vadd.xlane.f32.xlu0 %v2257
      %v2265 = vpop.xlane.xlu0 %2264
      %2266 = vadd.xlane.f32.xlu0 %v2259
      %v2267 = vpop.xlane.xlu0 %2266
      %v2268 = vrcp.pop %v2261
      %v2269 = vrcp.pop %v2263
      %v2270 = vrcp.pop %v2265
      %v2271 = vrcp.pop %v2267
      %v2272 = vmul.f32 %v2253, %v2268
      %v2273 = vmul.f32 %v2255, %v2269
      %v2274 = vmul.f32 %v2257, %v2270
      %v2275 = vmul.f32 %v2259, %v2271
      %v2280 = vcombine.high %v2272, %v2272
      %v2282 = vunpack.c.l.s4 1966171168
      %v2283 = vunpack.c.0.s8 %v2282
      %v2284 = vlaneseq
      %v2285 = vshrl.u32 %v2284, 7
      %v2286 = vsub.s32 %v2283, %v2285
      %v2287 = vrot.slane %v2272, %v2286
      %v2289 = vunpack.c.l.s4 1966171168
      %v2290 = vunpack.c.0.s8 %v2289
      %v2291 = vlaneseq
      %v2292 = vshrl.u32 %v2291, 7
      %v2293 = vsub.s32 %v2290, %v2292
      %v2294 = vrot.slane %v2280, %v2293
      %v2295 = vcombine.high %v2287, %v2287
      %v2296 = vcombine.high %v2294, %v2294
      %v2298 = vunpack.c.l.s4 1966171168
      %v2299 = vunpack.c.0.s8 %v2298
      %v2300 = vlaneseq
      %v2301 = vshrl.u32 %v2300, 7
      %v2302 = vsub.s32 %v2299, %v2301
      %v2303 = vrot.slane %v2287, %v2302
      %v2305 = vunpack.c.l.s4 1966171168
      %v2306 = vunpack.c.0.s8 %v2305
      %v2307 = vlaneseq
      %v2308 = vshrl.u32 %v2307, 7
      %v2309 = vsub.s32 %v2306, %v2308
      %v2310 = vrot.slane %v2294, %v2309
      %v2312 = vunpack.c.l.s4 1966171168
      %v2313 = vunpack.c.0.s8 %v2312
      %v2314 = vlaneseq
      %v2315 = vshrl.u32 %v2314, 7
      %v2316 = vsub.s32 %v2313, %v2315
      %v2317 = vrot.slane %v2295, %v2316
      %v2319 = vunpack.c.l.s4 1966171168
      %v2320 = vunpack.c.0.s8 %v2319
      %v2321 = vlaneseq
      %v2322 = vshrl.u32 %v2321, 7
      %v2323 = vsub.s32 %v2320, %v2322
      %v2324 = vrot.slane %v2296, %v2323
      %v2325 = vcombine.high %v2303, %v2303
      %v2326 = vcombine.high %v2310, %v2310
      %v2327 = vcombine.high %v2317, %v2317
      %v2328 = vcombine.high %v2324, %v2324
      %v2329 = vcombine.high %v2273, %v2273
      %v2331 = vunpack.c.l.s4 1966171168
      %v2332 = vunpack.c.0.s8 %v2331
      %v2333 = vlaneseq
      %v2334 = vshrl.u32 %v2333, 7
      %v2335 = vsub.s32 %v2332, %v2334
      %v2336 = vrot.slane %v2273, %v2335
      %v2338 = vunpack.c.l.s4 1966171168
      %v2339 = vunpack.c.0.s8 %v2338
      %v2340 = vlaneseq
      %v2341 = vshrl.u32 %v2340, 7
      %v2342 = vsub.s32 %v2339, %v2341
      %v2343 = vrot.slane %v2329, %v2342
      %v2344 = vcombine.high %v2336, %v2336
      %v2345 = vcombine.high %v2343, %v2343
      %v2347 = vunpack.c.l.s4 1966171168
      %v2348 = vunpack.c.0.s8 %v2347
      %v2349 = vlaneseq
      %v2350 = vshrl.u32 %v2349, 7
      %v2351 = vsub.s32 %v2348, %v2350
      %v2352 = vrot.slane %v2336, %v2351
      %v2354 = vunpack.c.l.s4 1966171168
      %v2355 = vunpack.c.0.s8 %v2354
      %v2356 = vlaneseq
      %v2357 = vshrl.u32 %v2356, 7
      %v2358 = vsub.s32 %v2355, %v2357
      %v2359 = vrot.slane %v2343, %v2358
      %v2361 = vunpack.c.l.s4 1966171168
      %v2362 = vunpack.c.0.s8 %v2361
      %v2363 = vlaneseq
      %v2364 = vshrl.u32 %v2363, 7
      %v2365 = vsub.s32 %v2362, %v2364
      %v2366 = vrot.slane %v2344, %v2365
      %v2368 = vunpack.c.l.s4 1966171168
      %v2369 = vunpack.c.0.s8 %v2368
      %v2370 = vlaneseq
      %v2371 = vshrl.u32 %v2370, 7
      %v2372 = vsub.s32 %v2369, %v2371
      %v2373 = vrot.slane %v2345, %v2372
      %v2374 = vcombine.high %v2352, %v2352
      %v2375 = vcombine.high %v2359, %v2359
      %v2376 = vcombine.high %v2366, %v2366
      %v2377 = vcombine.high %v2373, %v2373
      %v2378 = vcombine.high %v2274, %v2274
      %v2380 = vunpack.c.l.s4 1966171168
      %v2381 = vunpack.c.0.s8 %v2380
      %v2382 = vlaneseq
      %v2383 = vshrl.u32 %v2382, 7
      %v2384 = vsub.s32 %v2381, %v2383
      %v2385 = vrot.slane %v2274, %v2384
      %v2387 = vunpack.c.l.s4 1966171168
      %v2388 = vunpack.c.0.s8 %v2387
      %v2389 = vlaneseq
      %v2390 = vshrl.u32 %v2389, 7
      %v2391 = vsub.s32 %v2388, %v2390
      %v2392 = vrot.slane %v2378, %v2391
      %v2393 = vcombine.high %v2385, %v2385
      %v2394 = vcombine.high %v2392, %v2392
      %v2396 = vunpack.c.l.s4 1966171168
      %v2397 = vunpack.c.0.s8 %v2396
      %v2398 = vlaneseq
      %v2399 = vshrl.u32 %v2398, 7
      %v2400 = vsub.s32 %v2397, %v2399
      %v2401 = vrot.slane %v2385, %v2400
      %v2403 = vunpack.c.l.s4 1966171168
      %v2404 = vunpack.c.0.s8 %v2403
      %v2405 = vlaneseq
      %v2406 = vshrl.u32 %v2405, 7
      %v2407 = vsub.s32 %v2404, %v2406
      %v2408 = vrot.slane %v2392, %v2407
      %v2410 = vunpack.c.l.s4 1966171168
      %v2411 = vunpack.c.0.s8 %v2410
      %v2412 = vlaneseq
      %v2413 = vshrl.u32 %v2412, 7
      %v2414 = vsub.s32 %v2411, %v2413
      %v2415 = vrot.slane %v2393, %v2414
      %v2417 = vunpack.c.l.s4 1966171168
      %v2418 = vunpack.c.0.s8 %v2417
      %v2419 = vlaneseq
      %v2420 = vshrl.u32 %v2419, 7
      %v2421 = vsub.s32 %v2418, %v2420
      %v2422 = vrot.slane %v2394, %v2421
      %v2423 = vcombine.high %v2401, %v2401
      %v2424 = vcombine.high %v2408, %v2408
      %v2425 = vcombine.high %v2415, %v2415
      %v2426 = vcombine.high %v2422, %v2422
      %v2427 = vcombine.high %v2275, %v2275
      %v2429 = vunpack.c.l.s4 1966171168
      %v2430 = vunpack.c.0.s8 %v2429
      %v2431 = vlaneseq
      %v2432 = vshrl.u32 %v2431, 7
      %v2433 = vsub.s32 %v2430, %v2432
      %v2434 = vrot.slane %v2275, %v2433
      %v2436 = vunpack.c.l.s4 1966171168
      %v2437 = vunpack.c.0.s8 %v2436
      %v2438 = vlaneseq
      %v2439 = vshrl.u32 %v2438, 7
      %v2440 = vsub.s32 %v2437, %v2439
      %v2441 = vrot.slane %v2427, %v2440
      %v2442 = vcombine.high %v2434, %v2434
      %v2443 = vcombine.high %v2441, %v2441
      %v2445 = vunpack.c.l.s4 1966171168
      %v2446 = vunpack.c.0.s8 %v2445
      %v2447 = vlaneseq
      %v2448 = vshrl.u32 %v2447, 7
      %v2449 = vsub.s32 %v2446, %v2448
      %v2450 = vrot.slane %v2434, %v2449
      %v2452 = vunpack.c.l.s4 1966171168
      %v2453 = vunpack.c.0.s8 %v2452
      %v2454 = vlaneseq
      %v2455 = vshrl.u32 %v2454, 7
      %v2456 = vsub.s32 %v2453, %v2455
      %v2457 = vrot.slane %v2441, %v2456
      %v2459 = vunpack.c.l.s4 1966171168
      %v2460 = vunpack.c.0.s8 %v2459
      %v2461 = vlaneseq
      %v2462 = vshrl.u32 %v2461, 7
      %v2463 = vsub.s32 %v2460, %v2462
      %v2464 = vrot.slane %v2442, %v2463
      %v2466 = vunpack.c.l.s4 1966171168
      %v2467 = vunpack.c.0.s8 %v2466
      %v2468 = vlaneseq
      %v2469 = vshrl.u32 %v2468, 7
      %v2470 = vsub.s32 %v2467, %v2469
      %v2471 = vrot.slane %v2443, %v2470
      %v2472 = vcombine.high %v2450, %v2450
      %v2473 = vcombine.high %v2457, %v2457
      %v2474 = vcombine.high %v2464, %v2464
      %v2475 = vcombine.high %v2471, %v2471
      %v2476 = vlaneseq
      %v2477 = vshrl.u32 %v2476, 7
      %v2478 = vsub.s32 0, %v2477
      %v2479 = vrot.slane %v2303, %v2478
      %v2480 = vlaneseq
      %v2481 = vshrl.u32 %v2480, 7
      %v2482 = vsub.s32 0, %v2481
      %v2483 = vrot.slane %v2317, %v2482
      %v2484 = vlaneseq
      %v2485 = vshrl.u32 %v2484, 7
      %v2486 = vsub.s32 0, %v2485
      %v2487 = vrot.slane %v2325, %v2486
      %v2488 = vlaneseq
      %v2489 = vshrl.u32 %v2488, 7
      %v2490 = vsub.s32 0, %v2489
      %v2491 = vrot.slane %v2327, %v2490
      %v2492 = vlaneseq
      %v2493 = vshrl.u32 %v2492, 7
      %v2494 = vsub.s32 0, %v2493
      %v2495 = vrot.slane %v2310, %v2494
      %v2496 = vlaneseq
      %v2497 = vshrl.u32 %v2496, 7
      %v2498 = vsub.s32 0, %v2497
      %v2499 = vrot.slane %v2324, %v2498
      %v2500 = vlaneseq
      %v2501 = vshrl.u32 %v2500, 7
      %v2502 = vsub.s32 0, %v2501
      %v2503 = vrot.slane %v2326, %v2502
      %v2504 = vlaneseq
      %v2505 = vshrl.u32 %v2504, 7
      %v2506 = vsub.s32 0, %v2505
      %v2507 = vrot.slane %v2328, %v2506
      %v2508 = vlaneseq
      %v2509 = vshrl.u32 %v2508, 7
      %v2510 = vsub.s32 0, %v2509
      %v2511 = vrot.slane %v2352, %v2510
      %v2512 = vlaneseq
      %v2513 = vshrl.u32 %v2512, 7
      %v2514 = vsub.s32 0, %v2513
      %v2515 = vrot.slane %v2366, %v2514
      %v2516 = vlaneseq
      %v2517 = vshrl.u32 %v2516, 7
      %v2518 = vsub.s32 0, %v2517
      %v2519 = vrot.slane %v2374, %v2518
      %v2520 = vlaneseq
      %v2521 = vshrl.u32 %v2520, 7
      %v2522 = vsub.s32 0, %v2521
      %v2523 = vrot.slane %v2376, %v2522
      %v2524 = vlaneseq
      %v2525 = vshrl.u32 %v2524, 7
      %v2526 = vsub.s32 0, %v2525
      %v2527 = vrot.slane %v2359, %v2526
      %v2528 = vlaneseq
      %v2529 = vshrl.u32 %v2528, 7
      %v2530 = vsub.s32 0, %v2529
      %v2531 = vrot.slane %v2373, %v2530
      %v2532 = vlaneseq
      %v2533 = vshrl.u32 %v2532, 7
      %v2534 = vsub.s32 0, %v2533
      %v2535 = vrot.slane %v2375, %v2534
      %v2536 = vlaneseq
      %v2537 = vshrl.u32 %v2536, 7
      %v2538 = vsub.s32 0, %v2537
      %v2539 = vrot.slane %v2377, %v2538
      %v2540 = vlaneseq
      %v2541 = vshrl.u32 %v2540, 7
      %v2542 = vsub.s32 0, %v2541
      %v2543 = vrot.slane %v2401, %v2542
      %v2544 = vlaneseq
      %v2545 = vshrl.u32 %v2544, 7
      %v2546 = vsub.s32 0, %v2545
      %v2547 = vrot.slane %v2415, %v2546
      %v2548 = vlaneseq
      %v2549 = vshrl.u32 %v2548, 7
      %v2550 = vsub.s32 0, %v2549
      %v2551 = vrot.slane %v2423, %v2550
      %v2552 = vlaneseq
      %v2553 = vshrl.u32 %v2552, 7
      %v2554 = vsub.s32 0, %v2553
      %v2555 = vrot.slane %v2425, %v2554
      %v2556 = vlaneseq
      %v2557 = vshrl.u32 %v2556, 7
      %v2558 = vsub.s32 0, %v2557
      %v2559 = vrot.slane %v2408, %v2558
      %v2560 = vlaneseq
      %v2561 = vshrl.u32 %v2560, 7
      %v2562 = vsub.s32 0, %v2561
      %v2563 = vrot.slane %v2422, %v2562
      %v2564 = vlaneseq
      %v2565 = vshrl.u32 %v2564, 7
      %v2566 = vsub.s32 0, %v2565
      %v2567 = vrot.slane %v2424, %v2566
      %v2568 = vlaneseq
      %v2569 = vshrl.u32 %v2568, 7
      %v2570 = vsub.s32 0, %v2569
      %v2571 = vrot.slane %v2426, %v2570
      %v2572 = vlaneseq
      %v2573 = vshrl.u32 %v2572, 7
      %v2574 = vsub.s32 0, %v2573
      %v2575 = vrot.slane %v2450, %v2574
      %v2576 = vlaneseq
      %v2577 = vshrl.u32 %v2576, 7
      %v2578 = vsub.s32 0, %v2577
      %v2579 = vrot.slane %v2464, %v2578
      %v2580 = vlaneseq
      %v2581 = vshrl.u32 %v2580, 7
      %v2582 = vsub.s32 0, %v2581
      %v2583 = vrot.slane %v2472, %v2582
      %v2584 = vlaneseq
      %v2585 = vshrl.u32 %v2584, 7
      %v2586 = vsub.s32 0, %v2585
      %v2587 = vrot.slane %v2474, %v2586
      %v2588 = vlaneseq
      %v2589 = vshrl.u32 %v2588, 7
      %v2590 = vsub.s32 0, %v2589
      %v2591 = vrot.slane %v2457, %v2590
      %v2592 = vlaneseq
      %v2593 = vshrl.u32 %v2592, 7
      %v2594 = vsub.s32 0, %v2593
      %v2595 = vrot.slane %v2471, %v2594
      %v2596 = vlaneseq
      %v2597 = vshrl.u32 %v2596, 7
      %v2598 = vsub.s32 0, %v2597
      %v2599 = vrot.slane %v2473, %v2598
      %v2600 = vlaneseq
      %v2601 = vshrl.u32 %v2600, 7
      %v2602 = vsub.s32 0, %v2601
      %v2603 = vrot.slane %v2475, %v2602
      %v2636 = vmul.f32 %v602, %v2479
      %v2637 = vmul.f32 %v603, %v2483
      %v2638 = vmul.f32 %v604, %v2487
      %v2639 = vmul.f32 %v605, %v2491
      %v2640 = vmul.f32 %v606, %v2495
      %v2641 = vmul.f32 %v607, %v2499
      %v2642 = vmul.f32 %v608, %v2503
      %v2643 = vmul.f32 %v609, %v2507
      %v2644 = vmul.f32 %v610, %v2511
      %v2645 = vmul.f32 %v611, %v2515
      %v2646 = vmul.f32 %v612, %v2519
      %v2647 = vmul.f32 %v613, %v2523
      %v2648 = vmul.f32 %v614, %v2527
      %v2649 = vmul.f32 %v615, %v2531
      %v2650 = vmul.f32 %v616, %v2535
      %v2651 = vmul.f32 %v617, %v2539
      %v2652 = vmul.f32 %v618, %v2543
      %v2653 = vmul.f32 %v619, %v2547
      %v2654 = vmul.f32 %v620, %v2551
      %v2655 = vmul.f32 %v621, %v2555
      %v2656 = vmul.f32 %v622, %v2559
      %v2657 = vmul.f32 %v623, %v2563
      %v2658 = vmul.f32 %v624, %v2567
      %v2659 = vmul.f32 %v625, %v2571
      %v2660 = vmul.f32 %v626, %v2575
      %v2661 = vmul.f32 %v627, %v2579
      %v2662 = vmul.f32 %v628, %v2583
      %v2663 = vmul.f32 %v629, %v2587
      %v2664 = vmul.f32 %v630, %v2591
      %v2665 = vmul.f32 %v631, %v2595
      %v2666 = vmul.f32 %v632, %v2599
      %v2667 = vmul.f32 %v633, %v2603
      %2668 = vadd.xlane.f32.xlu0 %v2636
      %v2669 = vpop.xlane.xlu0 %2668
      %2670 = vadd.xlane.f32.xlu0 %v2637
      %v2671 = vpop.xlane.xlu0 %2670
      %2672 = vadd.xlane.f32.xlu0 %v2638
      %v2673 = vpop.xlane.xlu0 %2672
      %2674 = vadd.xlane.f32.xlu0 %v2639
      %v2675 = vpop.xlane.xlu0 %2674
      %2676 = vadd.xlane.f32.xlu0 %v2640
      %v2677 = vpop.xlane.xlu0 %2676
      %2678 = vadd.xlane.f32.xlu0 %v2641
      %v2679 = vpop.xlane.xlu0 %2678
      %2680 = vadd.xlane.f32.xlu0 %v2642
      %v2681 = vpop.xlane.xlu0 %2680
      %2682 = vadd.xlane.f32.xlu0 %v2643
      %v2683 = vpop.xlane.xlu0 %2682
      %2684 = vadd.xlane.f32.xlu0 %v2644
      %v2685 = vpop.xlane.xlu0 %2684
      %2686 = vadd.xlane.f32.xlu0 %v2645
      %v2687 = vpop.xlane.xlu0 %2686
      %2688 = vadd.xlane.f32.xlu0 %v2646
      %v2689 = vpop.xlane.xlu0 %2688
      %2690 = vadd.xlane.f32.xlu0 %v2647
      %v2691 = vpop.xlane.xlu0 %2690
      %2692 = vadd.xlane.f32.xlu0 %v2648
      %v2693 = vpop.xlane.xlu0 %2692
      %2694 = vadd.xlane.f32.xlu0 %v2649
      %v2695 = vpop.xlane.xlu0 %2694
      %2696 = vadd.xlane.f32.xlu0 %v2650
      %v2697 = vpop.xlane.xlu0 %2696
      %2698 = vadd.xlane.f32.xlu0 %v2651
      %v2699 = vpop.xlane.xlu0 %2698
      %2700 = vadd.xlane.f32.xlu0 %v2652
      %v2701 = vpop.xlane.xlu0 %2700
      %2702 = vadd.xlane.f32.xlu0 %v2653
      %v2703 = vpop.xlane.xlu0 %2702
      %2704 = vadd.xlane.f32.xlu0 %v2654
      %v2705 = vpop.xlane.xlu0 %2704
      %2706 = vadd.xlane.f32.xlu0 %v2655
      %v2707 = vpop.xlane.xlu0 %2706
      %2708 = vadd.xlane.f32.xlu0 %v2656
      %v2709 = vpop.xlane.xlu0 %2708
      %2710 = vadd.xlane.f32.xlu0 %v2657
      %v2711 = vpop.xlane.xlu0 %2710
      %2712 = vadd.xlane.f32.xlu0 %v2658
      %v2713 = vpop.xlane.xlu0 %2712
      %2714 = vadd.xlane.f32.xlu0 %v2659
      %v2715 = vpop.xlane.xlu0 %2714
      %2716 = vadd.xlane.f32.xlu0 %v2660
      %v2717 = vpop.xlane.xlu0 %2716
      %2718 = vadd.xlane.f32.xlu0 %v2661
      %v2719 = vpop.xlane.xlu0 %2718
      %2720 = vadd.xlane.f32.xlu0 %v2662
      %v2721 = vpop.xlane.xlu0 %2720
      %2722 = vadd.xlane.f32.xlu0 %v2663
      %v2723 = vpop.xlane.xlu0 %2722
      %2724 = vadd.xlane.f32.xlu0 %v2664
      %v2725 = vpop.xlane.xlu0 %2724
      %2726 = vadd.xlane.f32.xlu0 %v2665
      %v2727 = vpop.xlane.xlu0 %2726
      %2728 = vadd.xlane.f32.xlu0 %v2666
      %v2729 = vpop.xlane.xlu0 %2728
      %2730 = vadd.xlane.f32.xlu0 %v2667
      %v2731 = vpop.xlane.xlu0 %2730
      %v2732 = vld [vmem:[%s3 + $0x240] sm:$0xff]
      %v2733 = vld [vmem:[%s3 + $0x753] ss:$0 sm:$0xff]
      %v2766 = vlaneseq
      %v2767 = vshrl.u32 %v2766, 7
      %v2768 = vsub.s32 %v2170, %v2767
      %v2769 = vrot.slane %v2669, %v2768
      %v2770 = vlaneseq
      %v2771 = vshrl.u32 %v2770, 7
      %v2772 = vsub.s32 %v2170, %v2771
      %v2773 = vrot.slane %v2671, %v2772
      %v2774 = vlaneseq
      %v2775 = vshrl.u32 %v2774, 7
      %v2776 = vsub.s32 %v2170, %v2775
      %v2777 = vrot.slane %v2673, %v2776
      %v2778 = vlaneseq
      %v2779 = vshrl.u32 %v2778, 7
      %v2780 = vsub.s32 %v2170, %v2779
      %v2781 = vrot.slane %v2675, %v2780
      %v2782 = vlaneseq
      %v2783 = vshrl.u32 %v2782, 7
      %v2784 = vsub.s32 %v2170, %v2783
      %v2785 = vrot.slane %v2677, %v2784
      %v2786 = vlaneseq
      %v2787 = vshrl.u32 %v2786, 7
      %v2788 = vsub.s32 %v2170, %v2787
      %v2789 = vrot.slane %v2679, %v2788
      %v2790 = vlaneseq
      %v2791 = vshrl.u32 %v2790, 7
      %v2792 = vsub.s32 %v2170, %v2791
      %v2793 = vrot.slane %v2681, %v2792
      %v2794 = vlaneseq
      %v2795 = vshrl.u32 %v2794, 7
      %v2796 = vsub.s32 %v2170, %v2795
      %v2797 = vrot.slane %v2683, %v2796
      %v2798 = vlaneseq
      %v2799 = vshrl.u32 %v2798, 7
      %v2800 = vsub.s32 %v2170, %v2799
      %v2801 = vrot.slane %v2685, %v2800
      %v2802 = vlaneseq
      %v2803 = vshrl.u32 %v2802, 7
      %v2804 = vsub.s32 %v2170, %v2803
      %v2805 = vrot.slane %v2687, %v2804
      %v2806 = vlaneseq
      %v2807 = vshrl.u32 %v2806, 7
      %v2808 = vsub.s32 %v2170, %v2807
      %v2809 = vrot.slane %v2689, %v2808
      %v2810 = vlaneseq
      %v2811 = vshrl.u32 %v2810, 7
      %v2812 = vsub.s32 %v2170, %v2811
      %v2813 = vrot.slane %v2691, %v2812
      %v2814 = vlaneseq
      %v2815 = vshrl.u32 %v2814, 7
      %v2816 = vsub.s32 %v2170, %v2815
      %v2817 = vrot.slane %v2693, %v2816
      %v2818 = vlaneseq
      %v2819 = vshrl.u32 %v2818, 7
      %v2820 = vsub.s32 %v2170, %v2819
      %v2821 = vrot.slane %v2695, %v2820
      %v2822 = vlaneseq
      %v2823 = vshrl.u32 %v2822, 7
      %v2824 = vsub.s32 %v2170, %v2823
      %v2825 = vrot.slane %v2697, %v2824
      %v2826 = vlaneseq
      %v2827 = vshrl.u32 %v2826, 7
      %v2828 = vsub.s32 %v2170, %v2827
      %v2829 = vrot.slane %v2699, %v2828
      %v2830 = vlaneseq
      %v2831 = vshrl.u32 %v2830, 7
      %v2832 = vsub.s32 %v2170, %v2831
      %v2833 = vrot.slane %v2701, %v2832
      %v2834 = vlaneseq
      %v2835 = vshrl.u32 %v2834, 7
      %v2836 = vsub.s32 %v2170, %v2835
      %v2837 = vrot.slane %v2703, %v2836
      %v2838 = vlaneseq
      %v2839 = vshrl.u32 %v2838, 7
      %v2840 = vsub.s32 %v2170, %v2839
      %v2841 = vrot.slane %v2705, %v2840
      %v2842 = vlaneseq
      %v2843 = vshrl.u32 %v2842, 7
      %v2844 = vsub.s32 %v2170, %v2843
      %v2845 = vrot.slane %v2707, %v2844
      %v2846 = vlaneseq
      %v2847 = vshrl.u32 %v2846, 7
      %v2848 = vsub.s32 %v2170, %v2847
      %v2849 = vrot.slane %v2709, %v2848
      %v2850 = vlaneseq
      %v2851 = vshrl.u32 %v2850, 7
      %v2852 = vsub.s32 %v2170, %v2851
      %v2853 = vrot.slane %v2711, %v2852
      %v2854 = vlaneseq
      %v2855 = vshrl.u32 %v2854, 7
      %v2856 = vsub.s32 %v2170, %v2855
      %v2857 = vrot.slane %v2713, %v2856
      %v2858 = vlaneseq
      %v2859 = vshrl.u32 %v2858, 7
      %v2860 = vsub.s32 %v2170, %v2859
      %v2861 = vrot.slane %v2715, %v2860
      %v2862 = vlaneseq
      %v2863 = vshrl.u32 %v2862, 7
      %v2864 = vsub.s32 %v2170, %v2863
      %v2865 = vrot.slane %v2717, %v2864
      %v2866 = vlaneseq
      %v2867 = vshrl.u32 %v2866, 7
      %v2868 = vsub.s32 %v2170, %v2867
      %v2869 = vrot.slane %v2719, %v2868
      %v2870 = vlaneseq
      %v2871 = vshrl.u32 %v2870, 7
      %v2872 = vsub.s32 %v2170, %v2871
      %v2873 = vrot.slane %v2721, %v2872
      %v2874 = vlaneseq
      %v2875 = vshrl.u32 %v2874, 7
      %v2876 = vsub.s32 %v2170, %v2875
      %v2877 = vrot.slane %v2723, %v2876
      %v2878 = vlaneseq
      %v2879 = vshrl.u32 %v2878, 7
      %v2880 = vsub.s32 %v2170, %v2879
      %v2881 = vrot.slane %v2725, %v2880
      %v2882 = vlaneseq
      %v2883 = vshrl.u32 %v2882, 7
      %v2884 = vsub.s32 %v2170, %v2883
      %v2885 = vrot.slane %v2727, %v2884
      %v2886 = vlaneseq
      %v2887 = vshrl.u32 %v2886, 7
      %v2888 = vsub.s32 %v2170, %v2887
      %v2889 = vrot.slane %v2729, %v2888
      %v2890 = vlaneseq
      %v2891 = vshrl.u32 %v2890, 7
      %v2892 = vsub.s32 %v2170, %v2891
      %v2893 = vrot.slane %v2731, %v2892
      %v2894 = vsel %vm1339, %v2773, %v2769
      %v2895 = vsel %vm1341, %v2777, %v2894
      %v2896 = vsel %vm1343, %v2781, %v2895
      %v2897 = vsel %vm1345, %v2785, %v2896
      %v2898 = vsel %vm1347, %v2789, %v2897
      %v2899 = vsel %vm1349, %v2793, %v2898
      %v2900 = vsel %vm1351, %v2797, %v2899
      %v2901 = vsel %vm1339, %v2805, %v2801
      %v2902 = vsel %vm1341, %v2809, %v2901
      %v2903 = vsel %vm1343, %v2813, %v2902
      %v2904 = vsel %vm1345, %v2817, %v2903
      %v2905 = vsel %vm1347, %v2821, %v2904
      %v2906 = vsel %vm1349, %v2825, %v2905
      %v2907 = vsel %vm1351, %v2829, %v2906
      %v2908 = vsel %vm1339, %v2837, %v2833
      %v2909 = vsel %vm1341, %v2841, %v2908
      %v2910 = vsel %vm1343, %v2845, %v2909
      %v2911 = vsel %vm1345, %v2849, %v2910
      %v2912 = vsel %vm1347, %v2853, %v2911
      %v2913 = vsel %vm1349, %v2857, %v2912
      %v2914 = vsel %vm1351, %v2861, %v2913
      %v2915 = vsel %vm1339, %v2869, %v2865
      %v2916 = vsel %vm1341, %v2873, %v2915
      %v2917 = vsel %vm1343, %v2877, %v2916
      %v2918 = vsel %vm1345, %v2881, %v2917
      %v2919 = vsel %vm1347, %v2885, %v2918
      %v2920 = vsel %vm1349, %v2889, %v2919
      %v2921 = vsel %vm1351, %v2893, %v2920
      %v2922 = vsel %vm1056, %v2900, 0
      %v2924 = vsel %vm1056, %v2907, 0
      %v2926 = vsel %vm1056, %v2914, 0
      %v2928 = vsel %vm1056, %v2921, 0
      %2930 = vmatprep.subr.mxu0 0.0
      %2931 = vmatpush1.msra.mxu0 %v2732
      %2932 = vmatprep.subr.mxu0 0.0
      %2933 = vmatpush1.msra.mxu0 0.0
      %2934 = vmatprep.subr.mxu0 0.0
      %2935 = vmatpush1.msra.mxu0 0.0
      %2936 = vmatprep.subr.mxu0 0.0
      %2937 = vmatpush1.msra.mxu0 0.0
      %2938 = vmatprep.subr.mxu0 0.0
      %2939 = vmatpush1.msra.mxu0 0.0
      %2940 = vmatprep.subr.mxu0 0.0
      %2941 = vmatpush1.msra.mxu0 0.0
      %2942 = vmatprep.subr.mxu0 0.0
      %2943 = vmatpush1.msra.mxu0 0.0
      %2944 = vmatprep.subr.mxu0 0.0
      %2945 = vmatpush1.msra.mxu0 0.0
      %2946 = vmatprep.subr.mxu0 0.0
      %2947 = vmatpush1.msra.mxu0 0.0
      %2948 = vmatprep.subr.mxu0 0.0
      %2949 = vmatpush1.msra.mxu0 0.0
      %2950 = vmatprep.subr.mxu0 0.0
      %2951 = vmatpush1.msra.mxu0 0.0
      %2952 = vmatprep.subr.mxu0 0.0
      %2953 = vmatpush1.msra.mxu0 0.0
      %2954 = vmatprep.subr.mxu0 0.0
      %2955 = vmatpush1.msra.mxu0 0.0
      %2956 = vmatprep.subr.mxu0 0.0
      %2957 = vmatpush1.msra.mxu0 0.0
      %2958 = vmatprep.subr.mxu0 0.0
      %2959 = vmatpush1.msra.mxu0 0.0
      %2960 = vmatprep.subr.mxu0 0.0
      %2961 = vmatpush1.msra.mxu0 0.0
      %2962 = vmatprep.subr.mxu0 0.0
      %2963 = vmatpush1.msra.mxu0 0.0
      %2964 = vmatprep.subr.mxu0 0.0
      %2965 = vmatpush1.msra.mxu0 0.0
      %2966 = vmatprep.subr.mxu0 0.0
      %2967 = vmatpush1.msra.mxu0 0.0
      %2968 = vmatprep.subr.mxu0 0.0
      %2969 = vmatpush1.msra.mxu0 0.0
      %2970 = vmatprep.subr.mxu0 0.0
      %2971 = vmatpush1.msra.mxu0 0.0
      %2972 = vmatprep.subr.mxu0 0.0
      %2973 = vmatpush1.msra.mxu0 0.0
      %2974 = vmatprep.subr.mxu0 0.0
      %2975 = vmatpush1.msra.mxu0 0.0
      %2976 = vmatprep.subr.mxu0 0.0
      %2977 = vmatpush1.msra.mxu0 0.0
      %2978 = vmatprep.subr.mxu0 0.0
      %2979 = vmatpush1.msra.mxu0 0.0
      %2980 = vmatprep.subr.mxu0 0.0
      %2981 = vmatpush1.msra.mxu0 0.0
      %2982 = vmatprep.subr.mxu0 0.0
      %2983 = vmatpush1.msra.mxu0 0.0
      %2984 = vmatprep.subr.mxu0 0.0
      %2985 = vmatpush1.msra.mxu0 0.0
      %2986 = vmatprep.subr.mxu0 0.0
      %2987 = vmatpush1.msra.mxu0 0.0
      %2988 = vmatprep.subr.mxu0 0.0
      %2989 = vmatpush1.msra.mxu0 0.0
      %2990 = vmatprep.subr.mxu0 0.0
      %2991 = vmatpush1.msra.mxu0 0.0
      %2992 = vmatprep.subr.mxu0 0.0
      %2993 = vmatpush1.msra.mxu0 0.0
      %2994 = vmatprep.mubr.f32.mxu0 0.0
      %2995 = vmatmul.mubr.f32.gmra.mrb[0].mxu0 %v2922
      %v2996 = vpop.f32.mrb[0].mxu0
      %v2997 = vadd.f32 %v2733, %v2996
      %v2998 = vpop.f32.mrb[0].mxu0
      %2999 = vmatprep.mubr.f32.mxu0 0.0
      %3000 = vmatmul.mubr.f32.gmra.mrb[0].mxu0 %v2924
      %v3001 = vpop.f32.mrb[0].mxu0
      %v3002 = vadd.f32 %v2733, %v3001
      %v3003 = vpop.f32.mrb[0].mxu0
      %3004 = vmatprep.mubr.f32.mxu0 0.0
      %3005 = vmatmul.mubr.f32.gmra.mrb[0].mxu0 %v2926
      %v3006 = vpop.f32.mrb[0].mxu0
      %v3007 = vadd.f32 %v2733, %v3006
      %v3008 = vpop.f32.mrb[0].mxu0
      %3009 = vmatprep.mubr.f32.mxu0 0.0
      %3010 = vmatmul.mubr.f32.gmra.mrb[0].mxu0 %v2928
      %v3011 = vpop.f32.mrb[0].mxu0
      %v3012 = vadd.f32 %v2733, %v3011
      %v3013 = vpop.f32.mrb[0].mxu0
      %3014 = vdwg.mxu0
      %v3015 = vld [vmem:[%s3 + $0x250] sm:$0xff]
      %v3016 = vld [vmem:[%s3 + $0x258] sm:$0xff]
      %v3017 = vld [vmem:[%s3 + $0x260] sm:$0xff]
      %v3018 = vld [vmem:[%s3 + $0x268] sm:$0xff]
      %v3019 = vld [vmem:[%s3 + $0x270] sm:$0xff]
      %v3020 = vld [vmem:[%s3 + $0x278] sm:$0xff]
      %v3021 = vld [vmem:[%s3 + $0x280] sm:$0xff]
      %v3022 = vld [vmem:[%s3 + $0x288] sm:$0xff]
      %v3023 = vld [vmem:[%s3 + $0x290] sm:$0xff]
      %v3024 = vld [vmem:[%s3 + $0x298] sm:$0xff]
      %v3025 = vld [vmem:[%s3 + $0x2a0] sm:$0xff]
      %v3026 = vld [vmem:[%s3 + $0x2a8] sm:$0xff]
      %v3027 = vld [vmem:[%s3 + $0x2b0] sm:$0xff]
      %v3028 = vld [vmem:[%s3 + $0x2b8] sm:$0xff]
      %v3029 = vld [vmem:[%s3 + $0x2c0] sm:$0xff]
      %v3030 = vld [vmem:[%s3 + $0x2c8] sm:$0xff]
      %v3031 = vld [vmem:[%s3 + $0x2d0] sm:$0xff]
      %v3032 = vld [vmem:[%s3 + $0x2d8] sm:$0xff]
      %v3033 = vld [vmem:[%s3 + $0x2e0] sm:$0xff]
      %v3034 = vld [vmem:[%s3 + $0x2e8] sm:$0xff]
      %v3035 = vld [vmem:[%s3 + $0x2f0] sm:$0xff]
      %v3036 = vld [vmem:[%s3 + $0x2f8] sm:$0xff]
      %v3037 = vld [vmem:[%s3 + $0x300] sm:$0xff]
      %v3038 = vld [vmem:[%s3 + $0x308] sm:$0xff]
      %v3039 = vld [vmem:[%s3 + $0x310] sm:$0xff]
      %v3040 = vld [vmem:[%s3 + $0x318] sm:$0xff]
      %v3041 = vld [vmem:[%s3 + $0x320] sm:$0xff]
      %v3042 = vld [vmem:[%s3 + $0x328] sm:$0xff]
      %v3043 = vld [vmem:[%s3 + $0x330] sm:$0xff]
      %v3044 = vld [vmem:[%s3 + $0x338] sm:$0xff]
      %v3045 = vld [vmem:[%s3 + $0x340] sm:$0xff]
      %v3046 = vld [vmem:[%s3 + $0x348] sm:$0xff]
      %s3047 = scalar_lea.vmem %s3, 1876
      %v3048 = vld [vmem:[%s3047] ss:$8 sm:$0x3]
      %v3050 = vlaneseq
      %v3051 = vshrl.u32 %v3050, 7
      %v3052 = vsub.s32 0, %v3051
      %v3053 = vrot.slane %v3048, %v3052
      %v3054 = vlaneseq
      %v3055 = vshrl.u32 %v3054, 7
      %v3056 = vsub.s32 1, %v3055
      %v3057 = vrot.slane %v3048, %v3056
      %3060 = vmatprep.subr.mxu0 %v3016
      %3061 = vmatpush1.msra.mxu0 %v3015
      %3062 = vmatprep.subr.mxu0 %v3018
      %3063 = vmatpush1.msra.mxu0 %v3017
      %3064 = vmatprep.subr.mxu0 %v3020
      %3065 = vmatpush1.msra.mxu0 %v3019
      %3066 = vmatprep.subr.mxu0 %v3022
      %3067 = vmatpush1.msra.mxu0 %v3021
      %3068 = vmatprep.subr.mxu0 %v3024
      %3069 = vmatpush1.msra.mxu0 %v3023
      %3070 = vmatprep.subr.mxu0 %v3026
      %3071 = vmatpush1.msra.mxu0 %v3025
      %3072 = vmatprep.subr.mxu0 %v3028
      %3073 = vmatpush1.msra.mxu0 %v3027
      %3074 = vmatprep.subr.mxu0 %v3030
      %3075 = vmatpush1.msra.mxu0 %v3029
      %3076 = vmatprep.subr.mxu0 %v3032
      %3077 = vmatpush1.msra.mxu0 %v3031
      %3078 = vmatprep.subr.mxu0 %v3034
      %3079 = vmatpush1.msra.mxu0 %v3033
      %3080 = vmatprep.subr.mxu0 %v3036
      %3081 = vmatpush1.msra.mxu0 %v3035
      %3082 = vmatprep.subr.mxu0 %v3038
      %3083 = vmatpush1.msra.mxu0 %v3037
      %3084 = vmatprep.subr.mxu0 %v3040
      %3085 = vmatpush1.msra.mxu0 %v3039
      %3086 = vmatprep.subr.mxu0 %v3042
      %3087 = vmatpush1.msra.mxu0 %v3041
      %3088 = vmatprep.subr.mxu0 %v3044
      %3089 = vmatpush1.msra.mxu0 %v3043
      %3090 = vmatprep.subr.mxu0 %v3046
      %3091 = vmatpush1.msra.mxu0 %v3045
      %3092 = vmatprep.subr.mxu0 0.0
      %3093 = vmatpush1.msra.mxu0 0.0
      %3094 = vmatprep.subr.mxu0 0.0
      %3095 = vmatpush1.msra.mxu0 0.0
      %3096 = vmatprep.subr.mxu0 0.0
      %3097 = vmatpush1.msra.mxu0 0.0
      %3098 = vmatprep.subr.mxu0 0.0
      %3099 = vmatpush1.msra.mxu0 0.0
      %3100 = vmatprep.subr.mxu0 0.0
      %3101 = vmatpush1.msra.mxu0 0.0
      %3102 = vmatprep.subr.mxu0 0.0
      %3103 = vmatpush1.msra.mxu0 0.0
      %3104 = vmatprep.subr.mxu0 0.0
      %3105 = vmatpush1.msra.mxu0 0.0
      %3106 = vmatprep.subr.mxu0 0.0
      %3107 = vmatpush1.msra.mxu0 0.0
      %3108 = vmatprep.subr.mxu0 0.0
      %3109 = vmatpush1.msra.mxu0 0.0
      %3110 = vmatprep.subr.mxu0 0.0
      %3111 = vmatpush1.msra.mxu0 0.0
      %3112 = vmatprep.subr.mxu0 0.0
      %3113 = vmatpush1.msra.mxu0 0.0
      %3114 = vmatprep.subr.mxu0 0.0
      %3115 = vmatpush1.msra.mxu0 0.0
      %3116 = vmatprep.subr.mxu0 0.0
      %3117 = vmatpush1.msra.mxu0 0.0
      %3118 = vmatprep.subr.mxu0 0.0
      %3119 = vmatpush1.msra.mxu0 0.0
      %3120 = vmatprep.subr.mxu0 0.0
      %3121 = vmatpush1.msra.mxu0 0.0
      %3122 = vmatprep.subr.mxu0 0.0
      %3123 = vmatpush1.msra.mxu0 0.0
      %3124 = vmatprep.mubr.f32.mxu0 0.0
      %3125 = vmatmul.mubr.f32.gmra.mrb[0].mxu0 %v602
      %v3126 = vpop.f32.mrb[0].mxu0
      %v3127 = vadd.f32 %v3053, %v3126
      %v3128 = vpop.f32.mrb[0].mxu0
      %v3129 = vadd.f32 %v3057, %v3128
      %3130 = vmatprep.mubr.f32.mxu0 0.0
      %3131 = vmatmul.mubr.f32.gmra.mrb[0].mxu0 %v603
      %v3132 = vpop.f32.mrb[0].mxu0
      %v3133 = vadd.f32 %v3053, %v3132
      %v3134 = vpop.f32.mrb[0].mxu0
      %v3135 = vadd.f32 %v3057, %v3134
      %3136 = vmatprep.mubr.f32.mxu0 0.0
      %3137 = vmatmul.mubr.f32.gmra.mrb[0].mxu0 %v604
      %v3138 = vpop.f32.mrb[0].mxu0
      %v3139 = vadd.f32 %v3053, %v3138
      %v3140 = vpop.f32.mrb[0].mxu0
      %v3141 = vadd.f32 %v3057, %v3140
      %3142 = vmatprep.mubr.f32.mxu0 0.0
      %3143 = vmatmul.mubr.f32.gmra.mrb[0].mxu0 %v605
      %v3144 = vpop.f32.mrb[0].mxu0
      %v3145 = vadd.f32 %v3053, %v3144
      %v3146 = vpop.f32.mrb[0].mxu0
      %v3147 = vadd.f32 %v3057, %v3146
      %3148 = vmatprep.mubr.f32.mxu0 0.0
      %3149 = vmatmul.mubr.f32.gmra.mrb[0].mxu0 %v606
      %v3150 = vpop.f32.mrb[0].mxu0
      %v3151 = vadd.f32 %v3053, %v3150
      %v3152 = vpop.f32.mrb[0].mxu0
      %v3153 = vadd.f32 %v3057, %v3152
      %3154 = vmatprep.mubr.f32.mxu0 0.0
      %3155 = vmatmul.mubr.f32.gmra.mrb[0].mxu0 %v607
      %v3156 = vpop.f32.mrb[0].mxu0
      %v3157 = vadd.f32 %v3053, %v3156
      %v3158 = vpop.f32.mrb[0].mxu0
      %v3159 = vadd.f32 %v3057, %v3158
      %3160 = vmatprep.mubr.f32.mxu0 0.0
      %3161 = vmatmul.mubr.f32.gmra.mrb[0].mxu0 %v608
      %v3162 = vpop.f32.mrb[0].mxu0
      %v3163 = vadd.f32 %v3053, %v3162
      %v3164 = vpop.f32.mrb[0].mxu0
      %v3165 = vadd.f32 %v3057, %v3164
      %3166 = vmatprep.mubr.f32.mxu0 0.0
      %3167 = vmatmul.mubr.f32.gmra.mrb[0].mxu0 %v609
      %v3168 = vpop.f32.mrb[0].mxu0
      %v3169 = vadd.f32 %v3053, %v3168
      %v3170 = vpop.f32.mrb[0].mxu0
      %v3171 = vadd.f32 %v3057, %v3170
      %3172 = vmatprep.mubr.f32.mxu0 0.0
      %3173 = vmatmul.mubr.f32.gmra.mrb[0].mxu0 %v610
      %v3174 = vpop.f32.mrb[0].mxu0
      %v3175 = vadd.f32 %v3053, %v3174
      %v3176 = vpop.f32.mrb[0].mxu0
      %v3177 = vadd.f32 %v3057, %v3176
      %3178 = vmatprep.mubr.f32.mxu0 0.0
      %3179 = vmatmul.mubr.f32.gmra.mrb[0].mxu0 %v611
      %v3180 = vpop.f32.mrb[0].mxu0
      %v3181 = vadd.f32 %v3053, %v3180
      %v3182 = vpop.f32.mrb[0].mxu0
      %v3183 = vadd.f32 %v3057, %v3182
      %3184 = vmatprep.mubr.f32.mxu0 0.0
      %3185 = vmatmul.mubr.f32.gmra.mrb[0].mxu0 %v612
      %v3186 = vpop.f32.mrb[0].mxu0
      %v3187 = vadd.f32 %v3053, %v3186
      %v3188 = vpop.f32.mrb[0].mxu0
      %v3189 = vadd.f32 %v3057, %v3188
      %3190 = vmatprep.mubr.f32.mxu0 0.0
      %3191 = vmatmul.mubr.f32.gmra.mrb[0].mxu0 %v613
      %v3192 = vpop.f32.mrb[0].mxu0
      %v3193 = vadd.f32 %v3053, %v3192
      %v3194 = vpop.f32.mrb[0].mxu0
      %v3195 = vadd.f32 %v3057, %v3194
      %3196 = vmatprep.mubr.f32.mxu0 0.0
      %3197 = vmatmul.mubr.f32.gmra.mrb[0].mxu0 %v614
      %v3198 = vpop.f32.mrb[0].mxu0
      %v3199 = vadd.f32 %v3053, %v3198
      %v3200 = vpop.f32.mrb[0].mxu0
      %v3201 = vadd.f32 %v3057, %v3200
      %3202 = vmatprep.mubr.f32.mxu0 0.0
      %3203 = vmatmul.mubr.f32.gmra.mrb[0].mxu0 %v615
      %v3204 = vpop.f32.mrb[0].mxu0
      %v3205 = vadd.f32 %v3053, %v3204
      %v3206 = vpop.f32.mrb[0].mxu0
      %v3207 = vadd.f32 %v3057, %v3206
      %3208 = vmatprep.mubr.f32.mxu0 0.0
      %3209 = vmatmul.mubr.f32.gmra.mrb[0].mxu0 %v616
      %v3210 = vpop.f32.mrb[0].mxu0
      %v3211 = vadd.f32 %v3053, %v3210
      %v3212 = vpop.f32.mrb[0].mxu0
      %v3213 = vadd.f32 %v3057, %v3212
      %3214 = vmatprep.mubr.f32.mxu0 0.0
      %3215 = vmatmul.mubr.f32.gmra.mrb[0].mxu0 %v617
      %v3216 = vpop.f32.mrb[0].mxu0
      %v3217 = vadd.f32 %v3053, %v3216
      %v3218 = vpop.f32.mrb[0].mxu0
      %v3219 = vadd.f32 %v3057, %v3218
      %3220 = vmatprep.mubr.f32.mxu0 0.0
      %3221 = vmatmul.mubr.f32.gmra.mrb[0].mxu0 %v618
      %v3222 = vpop.f32.mrb[0].mxu0
      %v3223 = vadd.f32 %v3053, %v3222
      %v3224 = vpop.f32.mrb[0].mxu0
      %v3225 = vadd.f32 %v3057, %v3224
      %3226 = vmatprep.mubr.f32.mxu0 0.0
      %3227 = vmatmul.mubr.f32.gmra.mrb[0].mxu0 %v619
      %v3228 = vpop.f32.mrb[0].mxu0
      %v3229 = vadd.f32 %v3053, %v3228
      %v3230 = vpop.f32.mrb[0].mxu0
      %v3231 = vadd.f32 %v3057, %v3230
      %3232 = vmatprep.mubr.f32.mxu0 0.0
      %3233 = vmatmul.mubr.f32.gmra.mrb[0].mxu0 %v620
      %v3234 = vpop.f32.mrb[0].mxu0
      %v3235 = vadd.f32 %v3053, %v3234
      %v3236 = vpop.f32.mrb[0].mxu0
      %v3237 = vadd.f32 %v3057, %v3236
      %3238 = vmatprep.mubr.f32.mxu0 0.0
      %3239 = vmatmul.mubr.f32.gmra.mrb[0].mxu0 %v621
      %v3240 = vpop.f32.mrb[0].mxu0
      %v3241 = vadd.f32 %v3053, %v3240
      %v3242 = vpop.f32.mrb[0].mxu0
      %v3243 = vadd.f32 %v3057, %v3242
      %3244 = vmatprep.mubr.f32.mxu0 0.0
      %3245 = vmatmul.mubr.f32.gmra.mrb[0].mxu0 %v622
      %v3246 = vpop.f32.mrb[0].mxu0
      %v3247 = vadd.f32 %v3053, %v3246
      %v3248 = vpop.f32.mrb[0].mxu0
      %v3249 = vadd.f32 %v3057, %v3248
      %3250 = vmatprep.mubr.f32.mxu0 0.0
      %3251 = vmatmul.mubr.f32.gmra.mrb[0].mxu0 %v623
      %v3252 = vpop.f32.mrb[0].mxu0
      %v3253 = vadd.f32 %v3053, %v3252
      %v3254 = vpop.f32.mrb[0].mxu0
      %v3255 = vadd.f32 %v3057, %v3254
      %3256 = vmatprep.mubr.f32.mxu0 0.0
      %3257 = vmatmul.mubr.f32.gmra.mrb[0].mxu0 %v624
      %v3258 = vpop.f32.mrb[0].mxu0
      %v3259 = vadd.f32 %v3053, %v3258
      %v3260 = vpop.f32.mrb[0].mxu0
      %v3261 = vadd.f32 %v3057, %v3260
      %3262 = vmatprep.mubr.f32.mxu0 0.0
      %3263 = vmatmul.mubr.f32.gmra.mrb[0].mxu0 %v625
      %v3264 = vpop.f32.mrb[0].mxu0
      %v3265 = vadd.f32 %v3053, %v3264
      %v3266 = vpop.f32.mrb[0].mxu0
      %v3267 = vadd.f32 %v3057, %v3266
      %3268 = vmatprep.mubr.f32.mxu0 0.0
      %3269 = vmatmul.mubr.f32.gmra.mrb[0].mxu0 %v626
      %v3270 = vpop.f32.mrb[0].mxu0
      %v3271 = vadd.f32 %v3053, %v3270
      %v3272 = vpop.f32.mrb[0].mxu0
      %v3273 = vadd.f32 %v3057, %v3272
      %3274 = vmatprep.mubr.f32.mxu0 0.0
      %3275 = vmatmul.mubr.f32.gmra.mrb[0].mxu0 %v627
      %v3276 = vpop.f32.mrb[0].mxu0
      %v3277 = vadd.f32 %v3053, %v3276
      %v3278 = vpop.f32.mrb[0].mxu0
      %v3279 = vadd.f32 %v3057, %v3278
      %3280 = vmatprep.mubr.f32.mxu0 0.0
      %3281 = vmatmul.mubr.f32.gmra.mrb[0].mxu0 %v628
      %v3282 = vpop.f32.mrb[0].mxu0
      %v3283 = vadd.f32 %v3053, %v3282
      %v3284 = vpop.f32.mrb[0].mxu0
      %v3285 = vadd.f32 %v3057, %v3284
      %3286 = vmatprep.mubr.f32.mxu0 0.0
      %3287 = vmatmul.mubr.f32.gmra.mrb[0].mxu0 %v629
      %v3288 = vpop.f32.mrb[0].mxu0
      %v3289 = vadd.f32 %v3053, %v3288
      %v3290 = vpop.f32.mrb[0].mxu0
      %v3291 = vadd.f32 %v3057, %v3290
      %3292 = vmatprep.mubr.f32.mxu0 0.0
      %3293 = vmatmul.mubr.f32.gmra.mrb[0].mxu0 %v630
      %v3294 = vpop.f32.mrb[0].mxu0
      %v3295 = vadd.f32 %v3053, %v3294
      %v3296 = vpop.f32.mrb[0].mxu0
      %v3297 = vadd.f32 %v3057, %v3296
      %3298 = vmatprep.mubr.f32.mxu0 0.0
      %3299 = vmatmul.mubr.f32.gmra.mrb[0].mxu0 %v631
      %v3300 = vpop.f32.mrb[0].mxu0
      %v3301 = vadd.f32 %v3053, %v3300
      %v3302 = vpop.f32.mrb[0].mxu0
      %v3303 = vadd.f32 %v3057, %v3302
      %3304 = vmatprep.mubr.f32.mxu0 0.0
      %3305 = vmatmul.mubr.f32.gmra.mrb[0].mxu0 %v632
      %v3306 = vpop.f32.mrb[0].mxu0
      %v3307 = vadd.f32 %v3053, %v3306
      %v3308 = vpop.f32.mrb[0].mxu0
      %v3309 = vadd.f32 %v3057, %v3308
      %3310 = vmatprep.mubr.f32.mxu0 0.0
      %3311 = vmatmul.mubr.f32.gmra.mrb[0].mxu0 %v633
      %v3312 = vpop.f32.mrb[0].mxu0
      %v3313 = vadd.f32 %v3053, %v3312
      %v3314 = vpop.f32.mrb[0].mxu0
      %v3315 = vadd.f32 %v3057, %v3314
      %3316 = vdwg.mxu0
      %v3321 = vcombine.high %v1481, %v1481
      %v3323 = vunpack.c.l.s4 1966171168
      %v3324 = vunpack.c.0.s8 %v3323
      %v3325 = vlaneseq
      %v3326 = vshrl.u32 %v3325, 7
      %v3327 = vsub.s32 %v3324, %v3326
      %v3328 = vrot.slane %v1481, %v3327
      %v3330 = vunpack.c.l.s4 1966171168
      %v3331 = vunpack.c.0.s8 %v3330
      %v3332 = vlaneseq
      %v3333 = vshrl.u32 %v3332, 7
      %v3334 = vsub.s32 %v3331, %v3333
      %v3335 = vrot.slane %v3321, %v3334
      %v3336 = vcombine.high %v3328, %v3328
      %v3337 = vcombine.high %v3335, %v3335
      %v3339 = vunpack.c.l.s4 1966171168
      %v3340 = vunpack.c.0.s8 %v3339
      %v3341 = vlaneseq
      %v3342 = vshrl.u32 %v3341, 7
      %v3343 = vsub.s32 %v3340, %v3342
      %v3344 = vrot.slane %v3328, %v3343
      %v3346 = vunpack.c.l.s4 1966171168
      %v3347 = vunpack.c.0.s8 %v3346
      %v3348 = vlaneseq
      %v3349 = vshrl.u32 %v3348, 7
      %v3350 = vsub.s32 %v3347, %v3349
      %v3351 = vrot.slane %v3335, %v3350
      %v3353 = vunpack.c.l.s4 1966171168
      %v3354 = vunpack.c.0.s8 %v3353
      %v3355 = vlaneseq
      %v3356 = vshrl.u32 %v3355, 7
      %v3357 = vsub.s32 %v3354, %v3356
      %v3358 = vrot.slane %v3336, %v3357
      %v3360 = vunpack.c.l.s4 1966171168
      %v3361 = vunpack.c.0.s8 %v3360
      %v3362 = vlaneseq
      %v3363 = vshrl.u32 %v3362, 7
      %v3364 = vsub.s32 %v3361, %v3363
      %v3365 = vrot.slane %v3337, %v3364
      %v3366 = vcombine.high %v3344, %v3344
      %v3367 = vcombine.high %v3351, %v3351
      %v3368 = vcombine.high %v3358, %v3358
      %v3369 = vcombine.high %v3365, %v3365
      %v3370 = vcombine.high %v1483, %v1483
      %v3372 = vunpack.c.l.s4 1966171168
      %v3373 = vunpack.c.0.s8 %v3372
      %v3374 = vlaneseq
      %v3375 = vshrl.u32 %v3374, 7
      %v3376 = vsub.s32 %v3373, %v3375
      %v3377 = vrot.slane %v1483, %v3376
      %v3379 = vunpack.c.l.s4 1966171168
      %v3380 = vunpack.c.0.s8 %v3379
      %v3381 = vlaneseq
      %v3382 = vshrl.u32 %v3381, 7
      %v3383 = vsub.s32 %v3380, %v3382
      %v3384 = vrot.slane %v3370, %v3383
      %v3385 = vcombine.high %v3377, %v3377
      %v3386 = vcombine.high %v3384, %v3384
      %v3388 = vunpack.c.l.s4 1966171168
      %v3389 = vunpack.c.0.s8 %v3388
      %v3390 = vlaneseq
      %v3391 = vshrl.u32 %v3390, 7
      %v3392 = vsub.s32 %v3389, %v3391
      %v3393 = vrot.slane %v3377, %v3392
      %v3395 = vunpack.c.l.s4 1966171168
      %v3396 = vunpack.c.0.s8 %v3395
      %v3397 = vlaneseq
      %v3398 = vshrl.u32 %v3397, 7
      %v3399 = vsub.s32 %v3396, %v3398
      %v3400 = vrot.slane %v3384, %v3399
      %v3402 = vunpack.c.l.s4 1966171168
      %v3403 = vunpack.c.0.s8 %v3402
      %v3404 = vlaneseq
      %v3405 = vshrl.u32 %v3404, 7
      %v3406 = vsub.s32 %v3403, %v3405
      %v3407 = vrot.slane %v3385, %v3406
      %v3409 = vunpack.c.l.s4 1966171168
      %v3410 = vunpack.c.0.s8 %v3409
      %v3411 = vlaneseq
      %v3412 = vshrl.u32 %v3411, 7
      %v3413 = vsub.s32 %v3410, %v3412
      %v3414 = vrot.slane %v3386, %v3413
      %v3415 = vcombine.high %v3393, %v3393
      %v3416 = vcombine.high %v3400, %v3400
      %v3417 = vcombine.high %v3407, %v3407
      %v3418 = vcombine.high %v3414, %v3414
      %v3419 = vcombine.high %v1485, %v1485
      %v3421 = vunpack.c.l.s4 1966171168
      %v3422 = vunpack.c.0.s8 %v3421
      %v3423 = vlaneseq
      %v3424 = vshrl.u32 %v3423, 7
      %v3425 = vsub.s32 %v3422, %v3424
      %v3426 = vrot.slane %v1485, %v3425
      %v3428 = vunpack.c.l.s4 1966171168
      %v3429 = vunpack.c.0.s8 %v3428
      %v3430 = vlaneseq
      %v3431 = vshrl.u32 %v3430, 7
      %v3432 = vsub.s32 %v3429, %v3431
      %v3433 = vrot.slane %v3419, %v3432
      %v3434 = vcombine.high %v3426, %v3426
      %v3435 = vcombine.high %v3433, %v3433
      %v3437 = vunpack.c.l.s4 1966171168
      %v3438 = vunpack.c.0.s8 %v3437
      %v3439 = vlaneseq
      %v3440 = vshrl.u32 %v3439, 7
      %v3441 = vsub.s32 %v3438, %v3440
      %v3442 = vrot.slane %v3426, %v3441
      %v3444 = vunpack.c.l.s4 1966171168
      %v3445 = vunpack.c.0.s8 %v3444
      %v3446 = vlaneseq
      %v3447 = vshrl.u32 %v3446, 7
      %v3448 = vsub.s32 %v3445, %v3447
      %v3449 = vrot.slane %v3433, %v3448
      %v3451 = vunpack.c.l.s4 1966171168
      %v3452 = vunpack.c.0.s8 %v3451
      %v3453 = vlaneseq
      %v3454 = vshrl.u32 %v3453, 7
      %v3455 = vsub.s32 %v3452, %v3454
      %v3456 = vrot.slane %v3434, %v3455
      %v3458 = vunpack.c.l.s4 1966171168
      %v3459 = vunpack.c.0.s8 %v3458
      %v3460 = vlaneseq
      %v3461 = vshrl.u32 %v3460, 7
      %v3462 = vsub.s32 %v3459, %v3461
      %v3463 = vrot.slane %v3435, %v3462
      %v3464 = vcombine.high %v3442, %v3442
      %v3465 = vcombine.high %v3449, %v3449
      %v3466 = vcombine.high %v3456, %v3456
      %v3467 = vcombine.high %v3463, %v3463
      %v3468 = vcombine.high %v1487, %v1487
      %v3470 = vunpack.c.l.s4 1966171168
      %v3471 = vunpack.c.0.s8 %v3470
      %v3472 = vlaneseq
      %v3473 = vshrl.u32 %v3472, 7
      %v3474 = vsub.s32 %v3471, %v3473
      %v3475 = vrot.slane %v1487, %v3474
      %v3477 = vunpack.c.l.s4 1966171168
      %v3478 = vunpack.c.0.s8 %v3477
      %v3479 = vlaneseq
      %v3480 = vshrl.u32 %v3479, 7
      %v3481 = vsub.s32 %v3478, %v3480
      %v3482 = vrot.slane %v3468, %v3481
      %v3483 = vcombine.high %v3475, %v3475
      %v3484 = vcombine.high %v3482, %v3482
      %v3486 = vunpack.c.l.s4 1966171168
      %v3487 = vunpack.c.0.s8 %v3486
      %v3488 = vlaneseq
      %v3489 = vshrl.u32 %v3488, 7
      %v3490 = vsub.s32 %v3487, %v3489
      %v3491 = vrot.slane %v3475, %v3490
      %v3493 = vunpack.c.l.s4 1966171168
      %v3494 = vunpack.c.0.s8 %v3493
      %v3495 = vlaneseq
      %v3496 = vshrl.u32 %v3495, 7
      %v3497 = vsub.s32 %v3494, %v3496
      %v3498 = vrot.slane %v3482, %v3497
      %v3500 = vunpack.c.l.s4 1966171168
      %v3501 = vunpack.c.0.s8 %v3500
      %v3502 = vlaneseq
      %v3503 = vshrl.u32 %v3502, 7
      %v3504 = vsub.s32 %v3501, %v3503
      %v3505 = vrot.slane %v3483, %v3504
      %v3507 = vunpack.c.l.s4 1966171168
      %v3508 = vunpack.c.0.s8 %v3507
      %v3509 = vlaneseq
      %v3510 = vshrl.u32 %v3509, 7
      %v3511 = vsub.s32 %v3508, %v3510
      %v3512 = vrot.slane %v3484, %v3511
      %v3513 = vcombine.high %v3491, %v3491
      %v3514 = vcombine.high %v3498, %v3498
      %v3515 = vcombine.high %v3505, %v3505
      %v3516 = vcombine.high %v3512, %v3512
      %v3517 = vlaneseq
      %v3518 = vshrl.u32 %v3517, 7
      %v3519 = vsub.s32 0, %v3518
      %v3520 = vrot.slane %v3344, %v3519
      %v3521 = vlaneseq
      %v3522 = vshrl.u32 %v3521, 7
      %v3523 = vsub.s32 0, %v3522
      %v3524 = vrot.slane %v3358, %v3523
      %v3525 = vlaneseq
      %v3526 = vshrl.u32 %v3525, 7
      %v3527 = vsub.s32 0, %v3526
      %v3528 = vrot.slane %v3366, %v3527
      %v3529 = vlaneseq
      %v3530 = vshrl.u32 %v3529, 7
      %v3531 = vsub.s32 0, %v3530
      %v3532 = vrot.slane %v3368, %v3531
      %v3533 = vlaneseq
      %v3534 = vshrl.u32 %v3533, 7
      %v3535 = vsub.s32 0, %v3534
      %v3536 = vrot.slane %v3351, %v3535
      %v3537 = vlaneseq
      %v3538 = vshrl.u32 %v3537, 7
      %v3539 = vsub.s32 0, %v3538
      %v3540 = vrot.slane %v3365, %v3539
      %v3541 = vlaneseq
      %v3542 = vshrl.u32 %v3541, 7
      %v3543 = vsub.s32 0, %v3542
      %v3544 = vrot.slane %v3367, %v3543
      %v3545 = vlaneseq
      %v3546 = vshrl.u32 %v3545, 7
      %v3547 = vsub.s32 0, %v3546
      %v3548 = vrot.slane %v3369, %v3547
      %v3549 = vlaneseq
      %v3550 = vshrl.u32 %v3549, 7
      %v3551 = vsub.s32 0, %v3550
      %v3552 = vrot.slane %v3393, %v3551
      %v3553 = vlaneseq
      %v3554 = vshrl.u32 %v3553, 7
      %v3555 = vsub.s32 0, %v3554
      %v3556 = vrot.slane %v3407, %v3555
      %v3557 = vlaneseq
      %v3558 = vshrl.u32 %v3557, 7
      %v3559 = vsub.s32 0, %v3558
      %v3560 = vrot.slane %v3415, %v3559
      %v3561 = vlaneseq
      %v3562 = vshrl.u32 %v3561, 7
      %v3563 = vsub.s32 0, %v3562
      %v3564 = vrot.slane %v3417, %v3563
      %v3565 = vlaneseq
      %v3566 = vshrl.u32 %v3565, 7
      %v3567 = vsub.s32 0, %v3566
      %v3568 = vrot.slane %v3400, %v3567
      %v3569 = vlaneseq
      %v3570 = vshrl.u32 %v3569, 7
      %v3571 = vsub.s32 0, %v3570
      %v3572 = vrot.slane %v3414, %v3571
      %v3573 = vlaneseq
      %v3574 = vshrl.u32 %v3573, 7
      %v3575 = vsub.s32 0, %v3574
      %v3576 = vrot.slane %v3416, %v3575
      %v3577 = vlaneseq
      %v3578 = vshrl.u32 %v3577, 7
      %v3579 = vsub.s32 0, %v3578
      %v3580 = vrot.slane %v3418, %v3579
      %v3581 = vlaneseq
      %v3582 = vshrl.u32 %v3581, 7
      %v3583 = vsub.s32 0, %v3582
      %v3584 = vrot.slane %v3442, %v3583
      %v3585 = vlaneseq
      %v3586 = vshrl.u32 %v3585, 7
      %v3587 = vsub.s32 0, %v3586
      %v3588 = vrot.slane %v3456, %v3587
      %v3589 = vlaneseq
      %v3590 = vshrl.u32 %v3589, 7
      %v3591 = vsub.s32 0, %v3590
      %v3592 = vrot.slane %v3464, %v3591
      %v3593 = vlaneseq
      %v3594 = vshrl.u32 %v3593, 7
      %v3595 = vsub.s32 0, %v3594
      %v3596 = vrot.slane %v3466, %v3595
      %v3597 = vlaneseq
      %v3598 = vshrl.u32 %v3597, 7
      %v3599 = vsub.s32 0, %v3598
      %v3600 = vrot.slane %v3449, %v3599
      %v3601 = vlaneseq
      %v3602 = vshrl.u32 %v3601, 7
      %v3603 = vsub.s32 0, %v3602
      %v3604 = vrot.slane %v3463, %v3603
      %v3605 = vlaneseq
      %v3606 = vshrl.u32 %v3605, 7
      %v3607 = vsub.s32 0, %v3606
      %v3608 = vrot.slane %v3465, %v3607
      %v3609 = vlaneseq
      %v3610 = vshrl.u32 %v3609, 7
      %v3611 = vsub.s32 0, %v3610
      %v3612 = vrot.slane %v3467, %v3611
      %v3613 = vlaneseq
      %v3614 = vshrl.u32 %v3613, 7
      %v3615 = vsub.s32 0, %v3614
      %v3616 = vrot.slane %v3491, %v3615
      %v3617 = vlaneseq
      %v3618 = vshrl.u32 %v3617, 7
      %v3619 = vsub.s32 0, %v3618
      %v3620 = vrot.slane %v3505, %v3619
      %v3621 = vlaneseq
      %v3622 = vshrl.u32 %v3621, 7
      %v3623 = vsub.s32 0, %v3622
      %v3624 = vrot.slane %v3513, %v3623
      %v3625 = vlaneseq
      %v3626 = vshrl.u32 %v3625, 7
      %v3627 = vsub.s32 0, %v3626
      %v3628 = vrot.slane %v3515, %v3627
      %v3629 = vlaneseq
      %v3630 = vshrl.u32 %v3629, 7
      %v3631 = vsub.s32 0, %v3630
      %v3632 = vrot.slane %v3498, %v3631
      %v3633 = vlaneseq
      %v3634 = vshrl.u32 %v3633, 7
      %v3635 = vsub.s32 0, %v3634
      %v3636 = vrot.slane %v3512, %v3635
      %v3637 = vlaneseq
      %v3638 = vshrl.u32 %v3637, 7
      %v3639 = vsub.s32 0, %v3638
      %v3640 = vrot.slane %v3514, %v3639
      %v3641 = vlaneseq
      %v3642 = vshrl.u32 %v3641, 7
      %v3643 = vsub.s32 0, %v3642
      %v3644 = vrot.slane %v3516, %v3643
      %v3677 = vmul.f32 %v3127, %v3520
      %v3678 = vmul.f32 %v3133, %v3524
      %v3679 = vmul.f32 %v3139, %v3528
      %v3680 = vmul.f32 %v3145, %v3532
      %v3681 = vmul.f32 %v3151, %v3536
      %v3682 = vmul.f32 %v3157, %v3540
      %v3683 = vmul.f32 %v3163, %v3544
      %v3684 = vmul.f32 %v3169, %v3548
      %v3685 = vmul.f32 %v3175, %v3552
      %v3686 = vmul.f32 %v3181, %v3556
      %v3687 = vmul.f32 %v3187, %v3560
      %v3688 = vmul.f32 %v3193, %v3564
      %v3689 = vmul.f32 %v3199, %v3568
      %v3690 = vmul.f32 %v3205, %v3572
      %v3691 = vmul.f32 %v3211, %v3576
      %v3692 = vmul.f32 %v3217, %v3580
      %v3693 = vmul.f32 %v3223, %v3584
      %v3694 = vmul.f32 %v3229, %v3588
      %v3695 = vmul.f32 %v3235, %v3592
      %v3696 = vmul.f32 %v3241, %v3596
      %v3697 = vmul.f32 %v3247, %v3600
      %v3698 = vmul.f32 %v3253, %v3604
      %v3699 = vmul.f32 %v3259, %v3608
      %v3700 = vmul.f32 %v3265, %v3612
      %v3701 = vmul.f32 %v3271, %v3616
      %v3702 = vmul.f32 %v3277, %v3620
      %v3703 = vmul.f32 %v3283, %v3624
      %v3704 = vmul.f32 %v3289, %v3628
      %v3705 = vmul.f32 %v3295, %v3632
      %v3706 = vmul.f32 %v3301, %v3636
      %v3707 = vmul.f32 %v3307, %v3640
      %v3708 = vmul.f32 %v3313, %v3644
      %3709 = vadd.xlane.f32.xlu0 %v3677
      %v3710 = vpop.xlane.xlu0 %3709
      %3711 = vadd.xlane.f32.xlu0 %v3678
      %v3712 = vpop.xlane.xlu0 %3711
      %3713 = vadd.xlane.f32.xlu0 %v3679
      %v3714 = vpop.xlane.xlu0 %3713
      %3715 = vadd.xlane.f32.xlu0 %v3680
      %v3716 = vpop.xlane.xlu0 %3715
      %3717 = vadd.xlane.f32.xlu0 %v3681
      %v3718 = vpop.xlane.xlu0 %3717
      %3719 = vadd.xlane.f32.xlu0 %v3682
      %v3720 = vpop.xlane.xlu0 %3719
      %3721 = vadd.xlane.f32.xlu0 %v3683
      %v3722 = vpop.xlane.xlu0 %3721
      %3723 = vadd.xlane.f32.xlu0 %v3684
      %v3724 = vpop.xlane.xlu0 %3723
      %3725 = vadd.xlane.f32.xlu0 %v3685
      %v3726 = vpop.xlane.xlu0 %3725
      %3727 = vadd.xlane.f32.xlu0 %v3686
      %v3728 = vpop.xlane.xlu0 %3727
      %3729 = vadd.xlane.f32.xlu0 %v3687
      %v3730 = vpop.xlane.xlu0 %3729
      %3731 = vadd.xlane.f32.xlu0 %v3688
      %v3732 = vpop.xlane.xlu0 %3731
      %3733 = vadd.xlane.f32.xlu0 %v3689
      %v3734 = vpop.xlane.xlu0 %3733
      %3735 = vadd.xlane.f32.xlu0 %v3690
      %v3736 = vpop.xlane.xlu0 %3735
      %3737 = vadd.xlane.f32.xlu0 %v3691
      %v3738 = vpop.xlane.xlu0 %3737
      %3739 = vadd.xlane.f32.xlu0 %v3692
      %v3740 = vpop.xlane.xlu0 %3739
      %3741 = vadd.xlane.f32.xlu0 %v3693
      %v3742 = vpop.xlane.xlu0 %3741
      %3743 = vadd.xlane.f32.xlu0 %v3694
      %v3744 = vpop.xlane.xlu0 %3743
      %3745 = vadd.xlane.f32.xlu0 %v3695
      %v3746 = vpop.xlane.xlu0 %3745
      %3747 = vadd.xlane.f32.xlu0 %v3696
      %v3748 = vpop.xlane.xlu0 %3747
      %3749 = vadd.xlane.f32.xlu0 %v3697
      %v3750 = vpop.xlane.xlu0 %3749
      %3751 = vadd.xlane.f32.xlu0 %v3698
      %v3752 = vpop.xlane.xlu0 %3751
      %3753 = vadd.xlane.f32.xlu0 %v3699
      %v3754 = vpop.xlane.xlu0 %3753
      %3755 = vadd.xlane.f32.xlu0 %v3700
      %v3756 = vpop.xlane.xlu0 %3755
      %3757 = vadd.xlane.f32.xlu0 %v3701
      %v3758 = vpop.xlane.xlu0 %3757
      %3759 = vadd.xlane.f32.xlu0 %v3702
      %v3760 = vpop.xlane.xlu0 %3759
      %3761 = vadd.xlane.f32.xlu0 %v3703
      %v3762 = vpop.xlane.xlu0 %3761
      %3763 = vadd.xlane.f32.xlu0 %v3704
      %v3764 = vpop.xlane.xlu0 %3763
      %3765 = vadd.xlane.f32.xlu0 %v3705
      %v3766 = vpop.xlane.xlu0 %3765
      %3767 = vadd.xlane.f32.xlu0 %v3706
      %v3768 = vpop.xlane.xlu0 %3767
      %3769 = vadd.xlane.f32.xlu0 %v3707
      %v3770 = vpop.xlane.xlu0 %3769
      %3771 = vadd.xlane.f32.xlu0 %v3708
      %v3772 = vpop.xlane.xlu0 %3771
      %v3773 = vlaneseq
      %v3774 = vshrl.u32 %v3773, 7
      %vm3775 = vcmp.lt.s32.totalorder %v3774, 6
      %v3776 = vsel %vm3775, %v3710, -1e+30
      %v3777 = vsel %vm3775, %v3712, -1e+30
      %v3778 = vsel %vm3775, %v3714, -1e+30
      %v3779 = vsel %vm3775, %v3716, -1e+30
      %v3780 = vsel %vm3775, %v3718, -1e+30
      %v3781 = vsel %vm3775, %v3720, -1e+30
      %v3782 = vsel %vm3775, %v3722, -1e+30
      %v3783 = vsel %vm3775, %v3724, -1e+30
      %v3784 = vsel %vm3775, %v3726, -1e+30
      %v3785 = vsel %vm3775, %v3728, -1e+30
      %v3786 = vsel %vm3775, %v3730, -1e+30
      %v3787 = vsel %vm3775, %v3732, -1e+30
      %v3788 = vsel %vm3775, %v3734, -1e+30
      %v3789 = vsel %vm3775, %v3736, -1e+30
      %v3790 = vsel %vm3775, %v3738, -1e+30
      %v3791 = vsel %vm3775, %v3740, -1e+30
      %v3792 = vsel %vm3775, %v3742, -1e+30
      %v3793 = vsel %vm3775, %v3744, -1e+30
      %v3794 = vsel %vm3775, %v3746, -1e+30
      %v3795 = vsel %vm3775, %v3748, -1e+30
      %v3796 = vsel %vm3775, %v3750, -1e+30
      %v3797 = vsel %vm3775, %v3752, -1e+30
      %v3798 = vsel %vm3775, %v3754, -1e+30
      %v3799 = vsel %vm3775, %v3756, -1e+30
      %v3800 = vsel %vm3775, %v3758, -1e+30
      %v3801 = vsel %vm3775, %v3760, -1e+30
      %v3802 = vsel %vm3775, %v3762, -1e+30
      %v3803 = vsel %vm3775, %v3764, -1e+30
      %v3804 = vsel %vm3775, %v3766, -1e+30
      %v3805 = vsel %vm3775, %v3768, -1e+30
      %v3806 = vsel %vm3775, %v3770, -1e+30
      %v3807 = vsel %vm3775, %v3772, -1e+30
      %v3808 = vrot.slane %v3776, 4
      %v3809 = vmax.f32 %v3776, %v3808
      %v3810 = vrot.slane %v3809, 2
      %v3811 = vmax.f32 %v3809, %v3810
      %v3812 = vrot.slane %v3811, 1
      %v3813 = vmax.f32 %v3811, %v3812
      %v3814 = vrot.slane %v3777, 4
      %v3815 = vmax.f32 %v3777, %v3814
      %v3816 = vrot.slane %v3815, 2
      %v3817 = vmax.f32 %v3815, %v3816
      %v3818 = vrot.slane %v3817, 1
      %v3819 = vmax.f32 %v3817, %v3818
      %v3820 = vrot.slane %v3778, 4
      %v3821 = vmax.f32 %v3778, %v3820
      %v3822 = vrot.slane %v3821, 2
      %v3823 = vmax.f32 %v3821, %v3822
      %v3824 = vrot.slane %v3823, 1
      %v3825 = vmax.f32 %v3823, %v3824
      %v3826 = vrot.slane %v3779, 4
      %v3827 = vmax.f32 %v3779, %v3826
      %v3828 = vrot.slane %v3827, 2
      %v3829 = vmax.f32 %v3827, %v3828
      %v3830 = vrot.slane %v3829, 1
      %v3831 = vmax.f32 %v3829, %v3830
      %v3832 = vrot.slane %v3780, 4
      %v3833 = vmax.f32 %v3780, %v3832
      %v3834 = vrot.slane %v3833, 2
      %v3835 = vmax.f32 %v3833, %v3834
      %v3836 = vrot.slane %v3835, 1
      %v3837 = vmax.f32 %v3835, %v3836
      %v3838 = vrot.slane %v3781, 4
      %v3839 = vmax.f32 %v3781, %v3838
      %v3840 = vrot.slane %v3839, 2
      %v3841 = vmax.f32 %v3839, %v3840
      %v3842 = vrot.slane %v3841, 1
      %v3843 = vmax.f32 %v3841, %v3842
      %v3844 = vrot.slane %v3782, 4
      %v3845 = vmax.f32 %v3782, %v3844
      %v3846 = vrot.slane %v3845, 2
      %v3847 = vmax.f32 %v3845, %v3846
      %v3848 = vrot.slane %v3847, 1
      %v3849 = vmax.f32 %v3847, %v3848
      %v3850 = vrot.slane %v3783, 4
      %v3851 = vmax.f32 %v3783, %v3850
      %v3852 = vrot.slane %v3851, 2
      %v3853 = vmax.f32 %v3851, %v3852
      %v3854 = vrot.slane %v3853, 1
      %v3855 = vmax.f32 %v3853, %v3854
      %v3856 = vrot.slane %v3784, 4
      %v3857 = vmax.f32 %v3784, %v3856
      %v3858 = vrot.slane %v3857, 2
      %v3859 = vmax.f32 %v3857, %v3858
      %v3860 = vrot.slane %v3859, 1
      %v3861 = vmax.f32 %v3859, %v3860
      %v3862 = vrot.slane %v3785, 4
      %v3863 = vmax.f32 %v3785, %v3862
      %v3864 = vrot.slane %v3863, 2
      %v3865 = vmax.f32 %v3863, %v3864
      %v3866 = vrot.slane %v3865, 1
      %v3867 = vmax.f32 %v3865, %v3866
      %v3868 = vrot.slane %v3786, 4
      %v3869 = vmax.f32 %v3786, %v3868
      %v3870 = vrot.slane %v3869, 2
      %v3871 = vmax.f32 %v3869, %v3870
      %v3872 = vrot.slane %v3871, 1
      %v3873 = vmax.f32 %v3871, %v3872
      %v3874 = vrot.slane %v3787, 4
      %v3875 = vmax.f32 %v3787, %v3874
      %v3876 = vrot.slane %v3875, 2
      %v3877 = vmax.f32 %v3875, %v3876
      %v3878 = vrot.slane %v3877, 1
      %v3879 = vmax.f32 %v3877, %v3878
      %v3880 = vrot.slane %v3788, 4
      %v3881 = vmax.f32 %v3788, %v3880
      %v3882 = vrot.slane %v3881, 2
      %v3883 = vmax.f32 %v3881, %v3882
      %v3884 = vrot.slane %v3883, 1
      %v3885 = vmax.f32 %v3883, %v3884
      %v3886 = vrot.slane %v3789, 4
      %v3887 = vmax.f32 %v3789, %v3886
      %v3888 = vrot.slane %v3887, 2
      %v3889 = vmax.f32 %v3887, %v3888
      %v3890 = vrot.slane %v3889, 1
      %v3891 = vmax.f32 %v3889, %v3890
      %v3892 = vrot.slane %v3790, 4
      %v3893 = vmax.f32 %v3790, %v3892
      %v3894 = vrot.slane %v3893, 2
      %v3895 = vmax.f32 %v3893, %v3894
      %v3896 = vrot.slane %v3895, 1
      %v3897 = vmax.f32 %v3895, %v3896
      %v3898 = vrot.slane %v3791, 4
      %v3899 = vmax.f32 %v3791, %v3898
      %v3900 = vrot.slane %v3899, 2
      %v3901 = vmax.f32 %v3899, %v3900
      %v3902 = vrot.slane %v3901, 1
      %v3903 = vmax.f32 %v3901, %v3902
      %v3904 = vrot.slane %v3792, 4
      %v3905 = vmax.f32 %v3792, %v3904
      %v3906 = vrot.slane %v3905, 2
      %v3907 = vmax.f32 %v3905, %v3906
      %v3908 = vrot.slane %v3907, 1
      %v3909 = vmax.f32 %v3907, %v3908
      %v3910 = vrot.slane %v3793, 4
      %v3911 = vmax.f32 %v3793, %v3910
      %v3912 = vrot.slane %v3911, 2
      %v3913 = vmax.f32 %v3911, %v3912
      %v3914 = vrot.slane %v3913, 1
      %v3915 = vmax.f32 %v3913, %v3914
      %v3916 = vrot.slane %v3794, 4
      %v3917 = vmax.f32 %v3794, %v3916
      %v3918 = vrot.slane %v3917, 2
      %v3919 = vmax.f32 %v3917, %v3918
      %v3920 = vrot.slane %v3919, 1
      %v3921 = vmax.f32 %v3919, %v3920
      %v3922 = vrot.slane %v3795, 4
      %v3923 = vmax.f32 %v3795, %v3922
      %v3924 = vrot.slane %v3923, 2
      %v3925 = vmax.f32 %v3923, %v3924
      %v3926 = vrot.slane %v3925, 1
      %v3927 = vmax.f32 %v3925, %v3926
      %v3928 = vrot.slane %v3796, 4
      %v3929 = vmax.f32 %v3796, %v3928
      %v3930 = vrot.slane %v3929, 2
      %v3931 = vmax.f32 %v3929, %v3930
      %v3932 = vrot.slane %v3931, 1
      %v3933 = vmax.f32 %v3931, %v3932
      %v3934 = vrot.slane %v3797, 4
      %v3935 = vmax.f32 %v3797, %v3934
      %v3936 = vrot.slane %v3935, 2
      %v3937 = vmax.f32 %v3935, %v3936
      %v3938 = vrot.slane %v3937, 1
      %v3939 = vmax.f32 %v3937, %v3938
      %v3940 = vrot.slane %v3798, 4
      %v3941 = vmax.f32 %v3798, %v3940
      %v3942 = vrot.slane %v3941, 2
      %v3943 = vmax.f32 %v3941, %v3942
      %v3944 = vrot.slane %v3943, 1
      %v3945 = vmax.f32 %v3943, %v3944
      %v3946 = vrot.slane %v3799, 4
      %v3947 = vmax.f32 %v3799, %v3946
      %v3948 = vrot.slane %v3947, 2
      %v3949 = vmax.f32 %v3947, %v3948
      %v3950 = vrot.slane %v3949, 1
      %v3951 = vmax.f32 %v3949, %v3950
      %v3952 = vrot.slane %v3800, 4
      %v3953 = vmax.f32 %v3800, %v3952
      %v3954 = vrot.slane %v3953, 2
      %v3955 = vmax.f32 %v3953, %v3954
      %v3956 = vrot.slane %v3955, 1
      %v3957 = vmax.f32 %v3955, %v3956
      %v3958 = vrot.slane %v3801, 4
      %v3959 = vmax.f32 %v3801, %v3958
      %v3960 = vrot.slane %v3959, 2
      %v3961 = vmax.f32 %v3959, %v3960
      %v3962 = vrot.slane %v3961, 1
      %v3963 = vmax.f32 %v3961, %v3962
      %v3964 = vrot.slane %v3802, 4
      %v3965 = vmax.f32 %v3802, %v3964
      %v3966 = vrot.slane %v3965, 2
      %v3967 = vmax.f32 %v3965, %v3966
      %v3968 = vrot.slane %v3967, 1
      %v3969 = vmax.f32 %v3967, %v3968
      %v3970 = vrot.slane %v3803, 4
      %v3971 = vmax.f32 %v3803, %v3970
      %v3972 = vrot.slane %v3971, 2
      %v3973 = vmax.f32 %v3971, %v3972
      %v3974 = vrot.slane %v3973, 1
      %v3975 = vmax.f32 %v3973, %v3974
      %v3976 = vrot.slane %v3804, 4
      %v3977 = vmax.f32 %v3804, %v3976
      %v3978 = vrot.slane %v3977, 2
      %v3979 = vmax.f32 %v3977, %v3978
      %v3980 = vrot.slane %v3979, 1
      %v3981 = vmax.f32 %v3979, %v3980
      %v3982 = vrot.slane %v3805, 4
      %v3983 = vmax.f32 %v3805, %v3982
      %v3984 = vrot.slane %v3983, 2
      %v3985 = vmax.f32 %v3983, %v3984
      %v3986 = vrot.slane %v3985, 1
      %v3987 = vmax.f32 %v3985, %v3986
      %v3988 = vrot.slane %v3806, 4
      %v3989 = vmax.f32 %v3806, %v3988
      %v3990 = vrot.slane %v3989, 2
      %v3991 = vmax.f32 %v3989, %v3990
      %v3992 = vrot.slane %v3991, 1
      %v3993 = vmax.f32 %v3991, %v3992
      %v3994 = vrot.slane %v3807, 4
      %v3995 = vmax.f32 %v3807, %v3994
      %v3996 = vrot.slane %v3995, 2
      %v3997 = vmax.f32 %v3995, %v3996
      %v3998 = vrot.slane %v3997, 1
      %v3999 = vmax.f32 %v3997, %v3998
      %v4000 = vsub.f32 %v3776, %v3813
      %v4001 = vsub.f32 %v3777, %v3819
      %v4002 = vsub.f32 %v3778, %v3825
      %v4003 = vsub.f32 %v3779, %v3831
      %v4004 = vsub.f32 %v3780, %v3837
      %v4005 = vsub.f32 %v3781, %v3843
      %v4006 = vsub.f32 %v3782, %v3849
      %v4007 = vsub.f32 %v3783, %v3855
      %v4008 = vsub.f32 %v3784, %v3861
      %v4009 = vsub.f32 %v3785, %v3867
      %v4010 = vsub.f32 %v3786, %v3873
      %v4011 = vsub.f32 %v3787, %v3879
      %v4012 = vsub.f32 %v3788, %v3885
      %v4013 = vsub.f32 %v3789, %v3891
      %v4014 = vsub.f32 %v3790, %v3897
      %v4015 = vsub.f32 %v3791, %v3903
      %v4016 = vsub.f32 %v3792, %v3909
      %v4017 = vsub.f32 %v3793, %v3915
      %v4018 = vsub.f32 %v3794, %v3921
      %v4019 = vsub.f32 %v3795, %v3927
      %v4020 = vsub.f32 %v3796, %v3933
      %v4021 = vsub.f32 %v3797, %v3939
      %v4022 = vsub.f32 %v3798, %v3945
      %v4023 = vsub.f32 %v3799, %v3951
      %v4024 = vsub.f32 %v3800, %v3957
      %v4025 = vsub.f32 %v3801, %v3963
      %v4026 = vsub.f32 %v3802, %v3969
      %v4027 = vsub.f32 %v3803, %v3975
      %v4028 = vsub.f32 %v3804, %v3981
      %v4029 = vsub.f32 %v3805, %v3987
      %v4030 = vsub.f32 %v3806, %v3993
      %v4031 = vsub.f32 %v3807, %v3999
      %v4032 = vmul.f32 %v4000, 1.442695
      %v4033 = vpow.pop %v4032
      %v4034 = vmul.f32 %v4001, 1.442695
      %v4035 = vpow.pop %v4034
      %v4036 = vmul.f32 %v4002, 1.442695
      %v4037 = vpow.pop %v4036
      %v4038 = vmul.f32 %v4003, 1.442695
      %v4039 = vpow.pop %v4038
      %v4040 = vmul.f32 %v4004, 1.442695
      %v4041 = vpow.pop %v4040
      %v4042 = vmul.f32 %v4005, 1.442695
      %v4043 = vpow.pop %v4042
      %v4044 = vmul.f32 %v4006, 1.442695
      %v4045 = vpow.pop %v4044
      %v4046 = vmul.f32 %v4007, 1.442695
      %v4047 = vpow.pop %v4046
      %v4048 = vmul.f32 %v4008, 1.442695
      %v4049 = vpow.pop %v4048
      %v4050 = vmul.f32 %v4009, 1.442695
      %v4051 = vpow.pop %v4050
      %v4052 = vmul.f32 %v4010, 1.442695
      %v4053 = vpow.pop %v4052
      %v4054 = vmul.f32 %v4011, 1.442695
      %v4055 = vpow.pop %v4054
      %v4056 = vmul.f32 %v4012, 1.442695
      %v4057 = vpow.pop %v4056
      %v4058 = vmul.f32 %v4013, 1.442695
      %v4059 = vpow.pop %v4058
      %v4060 = vmul.f32 %v4014, 1.442695
      %v4061 = vpow.pop %v4060
      %v4062 = vmul.f32 %v4015, 1.442695
      %v4063 = vpow.pop %v4062
      %v4064 = vmul.f32 %v4016, 1.442695
      %v4065 = vpow.pop %v4064
      %v4066 = vmul.f32 %v4017, 1.442695
      %v4067 = vpow.pop %v4066
      %v4068 = vmul.f32 %v4018, 1.442695
      %v4069 = vpow.pop %v4068
      %v4070 = vmul.f32 %v4019, 1.442695
      %v4071 = vpow.pop %v4070
      %v4072 = vmul.f32 %v4020, 1.442695
      %v4073 = vpow.pop %v4072
      %v4074 = vmul.f32 %v4021, 1.442695
      %v4075 = vpow.pop %v4074
      %v4076 = vmul.f32 %v4022, 1.442695
      %v4077 = vpow.pop %v4076
      %v4078 = vmul.f32 %v4023, 1.442695
      %v4079 = vpow.pop %v4078
      %v4080 = vmul.f32 %v4024, 1.442695
      %v4081 = vpow.pop %v4080
      %v4082 = vmul.f32 %v4025, 1.442695
      %v4083 = vpow.pop %v4082
      %v4084 = vmul.f32 %v4026, 1.442695
      %v4085 = vpow.pop %v4084
      %v4086 = vmul.f32 %v4027, 1.442695
      %v4087 = vpow.pop %v4086
      %v4088 = vmul.f32 %v4028, 1.442695
      %v4089 = vpow.pop %v4088
      %v4090 = vmul.f32 %v4029, 1.442695
      %v4091 = vpow.pop %v4090
      %v4092 = vmul.f32 %v4030, 1.442695
      %v4093 = vpow.pop %v4092
      %v4094 = vmul.f32 %v4031, 1.442695
      %v4095 = vpow.pop %v4094
      %v4096 = vrot.slane %v4033, 4
      %v4097 = vadd.f32 %v4033, %v4096
      %v4098 = vrot.slane %v4097, 2
      %v4099 = vadd.f32 %v4097, %v4098
      %v4100 = vrot.slane %v4099, 1
      %v4101 = vadd.f32 %v4099, %v4100
      %v4102 = vrot.slane %v4035, 4
      %v4103 = vadd.f32 %v4035, %v4102
      %v4104 = vrot.slane %v4103, 2
      %v4105 = vadd.f32 %v4103, %v4104
      %v4106 = vrot.slane %v4105, 1
      %v4107 = vadd.f32 %v4105, %v4106
      %v4108 = vrot.slane %v4037, 4
      %v4109 = vadd.f32 %v4037, %v4108
      %v4110 = vrot.slane %v4109, 2
      %v4111 = vadd.f32 %v4109, %v4110
      %v4112 = vrot.slane %v4111, 1
      %v4113 = vadd.f32 %v4111, %v4112
      %v4114 = vrot.slane %v4039, 4
      %v4115 = vadd.f32 %v4039, %v4114
      %v4116 = vrot.slane %v4115, 2
      %v4117 = vadd.f32 %v4115, %v4116
      %v4118 = vrot.slane %v4117, 1
      %v4119 = vadd.f32 %v4117, %v4118
      %v4120 = vrot.slane %v4041, 4
      %v4121 = vadd.f32 %v4041, %v4120
      %v4122 = vrot.slane %v4121, 2
      %v4123 = vadd.f32 %v4121, %v4122
      %v4124 = vrot.slane %v4123, 1
      %v4125 = vadd.f32 %v4123, %v4124
      %v4126 = vrot.slane %v4043, 4
      %v4127 = vadd.f32 %v4043, %v4126
      %v4128 = vrot.slane %v4127, 2
      %v4129 = vadd.f32 %v4127, %v4128
      %v4130 = vrot.slane %v4129, 1
      %v4131 = vadd.f32 %v4129, %v4130
      %v4132 = vrot.slane %v4045, 4
      %v4133 = vadd.f32 %v4045, %v4132
      %v4134 = vrot.slane %v4133, 2
      %v4135 = vadd.f32 %v4133, %v4134
      %v4136 = vrot.slane %v4135, 1
      %v4137 = vadd.f32 %v4135, %v4136
      %v4138 = vrot.slane %v4047, 4
      %v4139 = vadd.f32 %v4047, %v4138
      %v4140 = vrot.slane %v4139, 2
      %v4141 = vadd.f32 %v4139, %v4140
      %v4142 = vrot.slane %v4141, 1
      %v4143 = vadd.f32 %v4141, %v4142
      %v4144 = vrot.slane %v4049, 4
      %v4145 = vadd.f32 %v4049, %v4144
      %v4146 = vrot.slane %v4145, 2
      %v4147 = vadd.f32 %v4145, %v4146
      %v4148 = vrot.slane %v4147, 1
      %v4149 = vadd.f32 %v4147, %v4148
      %v4150 = vrot.slane %v4051, 4
      %v4151 = vadd.f32 %v4051, %v4150
      %v4152 = vrot.slane %v4151, 2
      %v4153 = vadd.f32 %v4151, %v4152
      %v4154 = vrot.slane %v4153, 1
      %v4155 = vadd.f32 %v4153, %v4154
      %v4156 = vrot.slane %v4053, 4
      %v4157 = vadd.f32 %v4053, %v4156
      %v4158 = vrot.slane %v4157, 2
      %v4159 = vadd.f32 %v4157, %v4158
      %v4160 = vrot.slane %v4159, 1
      %v4161 = vadd.f32 %v4159, %v4160
      %v4162 = vrot.slane %v4055, 4
      %v4163 = vadd.f32 %v4055, %v4162
      %v4164 = vrot.slane %v4163, 2
      %v4165 = vadd.f32 %v4163, %v4164
      %v4166 = vrot.slane %v4165, 1
      %v4167 = vadd.f32 %v4165, %v4166
      %v4168 = vrot.slane %v4057, 4
      %v4169 = vadd.f32 %v4057, %v4168
      %v4170 = vrot.slane %v4169, 2
      %v4171 = vadd.f32 %v4169, %v4170
      %v4172 = vrot.slane %v4171, 1
      %v4173 = vadd.f32 %v4171, %v4172
      %v4174 = vrot.slane %v4059, 4
      %v4175 = vadd.f32 %v4059, %v4174
      %v4176 = vrot.slane %v4175, 2
      %v4177 = vadd.f32 %v4175, %v4176
      %v4178 = vrot.slane %v4177, 1
      %v4179 = vadd.f32 %v4177, %v4178
      %v4180 = vrot.slane %v4061, 4
      %v4181 = vadd.f32 %v4061, %v4180
      %v4182 = vrot.slane %v4181, 2
      %v4183 = vadd.f32 %v4181, %v4182
      %v4184 = vrot.slane %v4183, 1
      %v4185 = vadd.f32 %v4183, %v4184
      %v4186 = vrot.slane %v4063, 4
      %v4187 = vadd.f32 %v4063, %v4186
      %v4188 = vrot.slane %v4187, 2
      %v4189 = vadd.f32 %v4187, %v4188
      %v4190 = vrot.slane %v4189, 1
      %v4191 = vadd.f32 %v4189, %v4190
      %v4192 = vrot.slane %v4065, 4
      %v4193 = vadd.f32 %v4065, %v4192
      %v4194 = vrot.slane %v4193, 2
      %v4195 = vadd.f32 %v4193, %v4194
      %v4196 = vrot.slane %v4195, 1
      %v4197 = vadd.f32 %v4195, %v4196
      %v4198 = vrot.slane %v4067, 4
      %v4199 = vadd.f32 %v4067, %v4198
      %v4200 = vrot.slane %v4199, 2
      %v4201 = vadd.f32 %v4199, %v4200
      %v4202 = vrot.slane %v4201, 1
      %v4203 = vadd.f32 %v4201, %v4202
      %v4204 = vrot.slane %v4069, 4
      %v4205 = vadd.f32 %v4069, %v4204
      %v4206 = vrot.slane %v4205, 2
      %v4207 = vadd.f32 %v4205, %v4206
      %v4208 = vrot.slane %v4207, 1
      %v4209 = vadd.f32 %v4207, %v4208
      %v4210 = vrot.slane %v4071, 4
      %v4211 = vadd.f32 %v4071, %v4210
      %v4212 = vrot.slane %v4211, 2
      %v4213 = vadd.f32 %v4211, %v4212
      %v4214 = vrot.slane %v4213, 1
      %v4215 = vadd.f32 %v4213, %v4214
      %v4216 = vrot.slane %v4073, 4
      %v4217 = vadd.f32 %v4073, %v4216
      %v4218 = vrot.slane %v4217, 2
      %v4219 = vadd.f32 %v4217, %v4218
      %v4220 = vrot.slane %v4219, 1
      %v4221 = vadd.f32 %v4219, %v4220
      %v4222 = vrot.slane %v4075, 4
      %v4223 = vadd.f32 %v4075, %v4222
      %v4224 = vrot.slane %v4223, 2
      %v4225 = vadd.f32 %v4223, %v4224
      %v4226 = vrot.slane %v4225, 1
      %v4227 = vadd.f32 %v4225, %v4226
      %v4228 = vrot.slane %v4077, 4
      %v4229 = vadd.f32 %v4077, %v4228
      %v4230 = vrot.slane %v4229, 2
      %v4231 = vadd.f32 %v4229, %v4230
      %v4232 = vrot.slane %v4231, 1
      %v4233 = vadd.f32 %v4231, %v4232
      %v4234 = vrot.slane %v4079, 4
      %v4235 = vadd.f32 %v4079, %v4234
      %v4236 = vrot.slane %v4235, 2
      %v4237 = vadd.f32 %v4235, %v4236
      %v4238 = vrot.slane %v4237, 1
      %v4239 = vadd.f32 %v4237, %v4238
      %v4240 = vrot.slane %v4081, 4
      %v4241 = vadd.f32 %v4081, %v4240
      %v4242 = vrot.slane %v4241, 2
      %v4243 = vadd.f32 %v4241, %v4242
      %v4244 = vrot.slane %v4243, 1
      %v4245 = vadd.f32 %v4243, %v4244
      %v4246 = vrot.slane %v4083, 4
      %v4247 = vadd.f32 %v4083, %v4246
      %v4248 = vrot.slane %v4247, 2
      %v4249 = vadd.f32 %v4247, %v4248
      %v4250 = vrot.slane %v4249, 1
      %v4251 = vadd.f32 %v4249, %v4250
      %v4252 = vrot.slane %v4085, 4
      %v4253 = vadd.f32 %v4085, %v4252
      %v4254 = vrot.slane %v4253, 2
      %v4255 = vadd.f32 %v4253, %v4254
      %v4256 = vrot.slane %v4255, 1
      %v4257 = vadd.f32 %v4255, %v4256
      %v4258 = vrot.slane %v4087, 4
      %v4259 = vadd.f32 %v4087, %v4258
      %v4260 = vrot.slane %v4259, 2
      %v4261 = vadd.f32 %v4259, %v4260
      %v4262 = vrot.slane %v4261, 1
      %v4263 = vadd.f32 %v4261, %v4262
      %v4264 = vrot.slane %v4089, 4
      %v4265 = vadd.f32 %v4089, %v4264
      %v4266 = vrot.slane %v4265, 2
      %v4267 = vadd.f32 %v4265, %v4266
      %v4268 = vrot.slane %v4267, 1
      %v4269 = vadd.f32 %v4267, %v4268
      %v4270 = vrot.slane %v4091, 4
      %v4271 = vadd.f32 %v4091, %v4270
      %v4272 = vrot.slane %v4271, 2
      %v4273 = vadd.f32 %v4271, %v4272
      %v4274 = vrot.slane %v4273, 1
      %v4275 = vadd.f32 %v4273, %v4274
      %v4276 = vrot.slane %v4093, 4
      %v4277 = vadd.f32 %v4093, %v4276
      %v4278 = vrot.slane %v4277, 2
      %v4279 = vadd.f32 %v4277, %v4278
      %v4280 = vrot.slane %v4279, 1
      %v4281 = vadd.f32 %v4279, %v4280
      %v4282 = vrot.slane %v4095, 4
      %v4283 = vadd.f32 %v4095, %v4282
      %v4284 = vrot.slane %v4283, 2
      %v4285 = vadd.f32 %v4283, %v4284
      %v4286 = vrot.slane %v4285, 1
      %v4287 = vadd.f32 %v4285, %v4286
      %v4288 = vrcp.pop %v4101
      %v4289 = vrcp.pop %v4107
      %v4290 = vrcp.pop %v4113
      %v4291 = vrcp.pop %v4119
      %v4292 = vrcp.pop %v4125
      %v4293 = vrcp.pop %v4131
      %v4294 = vrcp.pop %v4137
      %v4295 = vrcp.pop %v4143
      %v4296 = vrcp.pop %v4149
      %v4297 = vrcp.pop %v4155
      %v4298 = vrcp.pop %v4161
      %v4299 = vrcp.pop %v4167
      %v4300 = vrcp.pop %v4173
      %v4301 = vrcp.pop %v4179
      %v4302 = vrcp.pop %v4185
      %v4303 = vrcp.pop %v4191
      %v4304 = vrcp.pop %v4197
      %v4305 = vrcp.pop %v4203
      %v4306 = vrcp.pop %v4209
      %v4307 = vrcp.pop %v4215
      %v4308 = vrcp.pop %v4221
      %v4309 = vrcp.pop %v4227
      %v4310 = vrcp.pop %v4233
      %v4311 = vrcp.pop %v4239
      %v4312 = vrcp.pop %v4245
      %v4313 = vrcp.pop %v4251
      %v4314 = vrcp.pop %v4257
      %v4315 = vrcp.pop %v4263
      %v4316 = vrcp.pop %v4269
      %v4317 = vrcp.pop %v4275
      %v4318 = vrcp.pop %v4281
      %v4319 = vrcp.pop %v4287
      %v4320 = vmul.f32 %v4033, %v4288
      %v4321 = vmul.f32 %v4035, %v4289
      %v4322 = vmul.f32 %v4037, %v4290
      %v4323 = vmul.f32 %v4039, %v4291
      %v4324 = vmul.f32 %v4041, %v4292
      %v4325 = vmul.f32 %v4043, %v4293
      %v4326 = vmul.f32 %v4045, %v4294
      %v4327 = vmul.f32 %v4047, %v4295
      %v4328 = vmul.f32 %v4049, %v4296
      %v4329 = vmul.f32 %v4051, %v4297
      %v4330 = vmul.f32 %v4053, %v4298
      %v4331 = vmul.f32 %v4055, %v4299
      %v4332 = vmul.f32 %v4057, %v4300
      %v4333 = vmul.f32 %v4059, %v4301
      %v4334 = vmul.f32 %v4061, %v4302
      %v4335 = vmul.f32 %v4063, %v4303
      %v4336 = vmul.f32 %v4065, %v4304
      %v4337 = vmul.f32 %v4067, %v4305
      %v4338 = vmul.f32 %v4069, %v4306
      %v4339 = vmul.f32 %v4071, %v4307
      %v4340 = vmul.f32 %v4073, %v4308
      %v4341 = vmul.f32 %v4075, %v4309
      %v4342 = vmul.f32 %v4077, %v4310
      %v4343 = vmul.f32 %v4079, %v4311
      %v4344 = vmul.f32 %v4081, %v4312
      %v4345 = vmul.f32 %v4083, %v4313
      %v4346 = vmul.f32 %v4085, %v4314
      %v4347 = vmul.f32 %v4087, %v4315
      %v4348 = vmul.f32 %v4089, %v4316
      %v4349 = vmul.f32 %v4091, %v4317
      %v4350 = vmul.f32 %v4093, %v4318
      %v4351 = vmul.f32 %v4095, %v4319
      %v4352 = vmul.f32 %v4320, %v3129
      %v4353 = vmul.f32 %v4321, %v3135
      %v4354 = vmul.f32 %v4322, %v3141
      %v4355 = vmul.f32 %v4323, %v3147
      %v4356 = vmul.f32 %v4324, %v3153
      %v4357 = vmul.f32 %v4325, %v3159
      %v4358 = vmul.f32 %v4326, %v3165
      %v4359 = vmul.f32 %v4327, %v3171
      %v4360 = vmul.f32 %v4328, %v3177
      %v4361 = vmul.f32 %v4329, %v3183
      %v4362 = vmul.f32 %v4330, %v3189
      %v4363 = vmul.f32 %v4331, %v3195
      %v4364 = vmul.f32 %v4332, %v3201
      %v4365 = vmul.f32 %v4333, %v3207
      %v4366 = vmul.f32 %v4334, %v3213
      %v4367 = vmul.f32 %v4335, %v3219
      %v4368 = vmul.f32 %v4336, %v3225
      %v4369 = vmul.f32 %v4337, %v3231
      %v4370 = vmul.f32 %v4338, %v3237
      %v4371 = vmul.f32 %v4339, %v3243
      %v4372 = vmul.f32 %v4340, %v3249
      %v4373 = vmul.f32 %v4341, %v3255
      %v4374 = vmul.f32 %v4342, %v3261
      %v4375 = vmul.f32 %v4343, %v3267
      %v4376 = vmul.f32 %v4344, %v3273
      %v4377 = vmul.f32 %v4345, %v3279
      %v4378 = vmul.f32 %v4346, %v3285
      %v4379 = vmul.f32 %v4347, %v3291
      %v4380 = vmul.f32 %v4348, %v3297
      %v4381 = vmul.f32 %v4349, %v3303
      %v4382 = vmul.f32 %v4350, %v3309
      %v4383 = vmul.f32 %v4351, %v3315
      %v4384 = vrot.slane %v4352, 4
      %v4385 = vadd.f32 %v4352, %v4384
      %v4386 = vrot.slane %v4385, 2
      %v4387 = vadd.f32 %v4385, %v4386
      %v4388 = vrot.slane %v4387, 1
      %v4389 = vadd.f32 %v4387, %v4388
      %v4390 = vrot.slane %v4353, 4
      %v4391 = vadd.f32 %v4353, %v4390
      %v4392 = vrot.slane %v4391, 2
      %v4393 = vadd.f32 %v4391, %v4392
      %v4394 = vrot.slane %v4393, 1
      %v4395 = vadd.f32 %v4393, %v4394
      %v4396 = vrot.slane %v4354, 4
      %v4397 = vadd.f32 %v4354, %v4396
      %v4398 = vrot.slane %v4397, 2
      %v4399 = vadd.f32 %v4397, %v4398
      %v4400 = vrot.slane %v4399, 1
      %v4401 = vadd.f32 %v4399, %v4400
      %v4402 = vrot.slane %v4355, 4
      %v4403 = vadd.f32 %v4355, %v4402
      %v4404 = vrot.slane %v4403, 2
      %v4405 = vadd.f32 %v4403, %v4404
      %v4406 = vrot.slane %v4405, 1
      %v4407 = vadd.f32 %v4405, %v4406
      %v4408 = vrot.slane %v4356, 4
      %v4409 = vadd.f32 %v4356, %v4408
      %v4410 = vrot.slane %v4409, 2
      %v4411 = vadd.f32 %v4409, %v4410
      %v4412 = vrot.slane %v4411, 1
      %v4413 = vadd.f32 %v4411, %v4412
      %v4414 = vrot.slane %v4357, 4
      %v4415 = vadd.f32 %v4357, %v4414
      %v4416 = vrot.slane %v4415, 2
      %v4417 = vadd.f32 %v4415, %v4416
      %v4418 = vrot.slane %v4417, 1
      %v4419 = vadd.f32 %v4417, %v4418
      %v4420 = vrot.slane %v4358, 4
      %v4421 = vadd.f32 %v4358, %v4420
      %v4422 = vrot.slane %v4421, 2
      %v4423 = vadd.f32 %v4421, %v4422
      %v4424 = vrot.slane %v4423, 1
      %v4425 = vadd.f32 %v4423, %v4424
      %v4426 = vrot.slane %v4359, 4
      %v4427 = vadd.f32 %v4359, %v4426
      %v4428 = vrot.slane %v4427, 2
      %v4429 = vadd.f32 %v4427, %v4428
      %v4430 = vrot.slane %v4429, 1
      %v4431 = vadd.f32 %v4429, %v4430
      %v4432 = vrot.slane %v4360, 4
      %v4433 = vadd.f32 %v4360, %v4432
      %v4434 = vrot.slane %v4433, 2
      %v4435 = vadd.f32 %v4433, %v4434
      %v4436 = vrot.slane %v4435, 1
      %v4437 = vadd.f32 %v4435, %v4436
      %v4438 = vrot.slane %v4361, 4
      %v4439 = vadd.f32 %v4361, %v4438
      %v4440 = vrot.slane %v4439, 2
      %v4441 = vadd.f32 %v4439, %v4440
      %v4442 = vrot.slane %v4441, 1
      %v4443 = vadd.f32 %v4441, %v4442
      %v4444 = vrot.slane %v4362, 4
      %v4445 = vadd.f32 %v4362, %v4444
      %v4446 = vrot.slane %v4445, 2
      %v4447 = vadd.f32 %v4445, %v4446
      %v4448 = vrot.slane %v4447, 1
      %v4449 = vadd.f32 %v4447, %v4448
      %v4450 = vrot.slane %v4363, 4
      %v4451 = vadd.f32 %v4363, %v4450
      %v4452 = vrot.slane %v4451, 2
      %v4453 = vadd.f32 %v4451, %v4452
      %v4454 = vrot.slane %v4453, 1
      %v4455 = vadd.f32 %v4453, %v4454
      %v4456 = vrot.slane %v4364, 4
      %v4457 = vadd.f32 %v4364, %v4456
      %v4458 = vrot.slane %v4457, 2
      %v4459 = vadd.f32 %v4457, %v4458
      %v4460 = vrot.slane %v4459, 1
      %v4461 = vadd.f32 %v4459, %v4460
      %v4462 = vrot.slane %v4365, 4
      %v4463 = vadd.f32 %v4365, %v4462
      %v4464 = vrot.slane %v4463, 2
      %v4465 = vadd.f32 %v4463, %v4464
      %v4466 = vrot.slane %v4465, 1
      %v4467 = vadd.f32 %v4465, %v4466
      %v4468 = vrot.slane %v4366, 4
      %v4469 = vadd.f32 %v4366, %v4468
      %v4470 = vrot.slane %v4469, 2
      %v4471 = vadd.f32 %v4469, %v4470
      %v4472 = vrot.slane %v4471, 1
      %v4473 = vadd.f32 %v4471, %v4472
      %v4474 = vrot.slane %v4367, 4
      %v4475 = vadd.f32 %v4367, %v4474
      %v4476 = vrot.slane %v4475, 2
      %v4477 = vadd.f32 %v4475, %v4476
      %v4478 = vrot.slane %v4477, 1
      %v4479 = vadd.f32 %v4477, %v4478
      %v4480 = vrot.slane %v4368, 4
      %v4481 = vadd.f32 %v4368, %v4480
      %v4482 = vrot.slane %v4481, 2
      %v4483 = vadd.f32 %v4481, %v4482
      %v4484 = vrot.slane %v4483, 1
      %v4485 = vadd.f32 %v4483, %v4484
      %v4486 = vrot.slane %v4369, 4
      %v4487 = vadd.f32 %v4369, %v4486
      %v4488 = vrot.slane %v4487, 2
      %v4489 = vadd.f32 %v4487, %v4488
      %v4490 = vrot.slane %v4489, 1
      %v4491 = vadd.f32 %v4489, %v4490
      %v4492 = vrot.slane %v4370, 4
      %v4493 = vadd.f32 %v4370, %v4492
      %v4494 = vrot.slane %v4493, 2
      %v4495 = vadd.f32 %v4493, %v4494
      %v4496 = vrot.slane %v4495, 1
      %v4497 = vadd.f32 %v4495, %v4496
      %v4498 = vrot.slane %v4371, 4
      %v4499 = vadd.f32 %v4371, %v4498
      %v4500 = vrot.slane %v4499, 2
      %v4501 = vadd.f32 %v4499, %v4500
      %v4502 = vrot.slane %v4501, 1
      %v4503 = vadd.f32 %v4501, %v4502
      %v4504 = vrot.slane %v4372, 4
      %v4505 = vadd.f32 %v4372, %v4504
      %v4506 = vrot.slane %v4505, 2
      %v4507 = vadd.f32 %v4505, %v4506
      %v4508 = vrot.slane %v4507, 1
      %v4509 = vadd.f32 %v4507, %v4508
      %v4510 = vrot.slane %v4373, 4
      %v4511 = vadd.f32 %v4373, %v4510
      %v4512 = vrot.slane %v4511, 2
      %v4513 = vadd.f32 %v4511, %v4512
      %v4514 = vrot.slane %v4513, 1
      %v4515 = vadd.f32 %v4513, %v4514
      %v4516 = vrot.slane %v4374, 4
      %v4517 = vadd.f32 %v4374, %v4516
      %v4518 = vrot.slane %v4517, 2
      %v4519 = vadd.f32 %v4517, %v4518
      %v4520 = vrot.slane %v4519, 1
      %v4521 = vadd.f32 %v4519, %v4520
      %v4522 = vrot.slane %v4375, 4
      %v4523 = vadd.f32 %v4375, %v4522
      %v4524 = vrot.slane %v4523, 2
      %v4525 = vadd.f32 %v4523, %v4524
      %v4526 = vrot.slane %v4525, 1
      %v4527 = vadd.f32 %v4525, %v4526
      %v4528 = vrot.slane %v4376, 4
      %v4529 = vadd.f32 %v4376, %v4528
      %v4530 = vrot.slane %v4529, 2
      %v4531 = vadd.f32 %v4529, %v4530
      %v4532 = vrot.slane %v4531, 1
      %v4533 = vadd.f32 %v4531, %v4532
      %v4534 = vrot.slane %v4377, 4
      %v4535 = vadd.f32 %v4377, %v4534
      %v4536 = vrot.slane %v4535, 2
      %v4537 = vadd.f32 %v4535, %v4536
      %v4538 = vrot.slane %v4537, 1
      %v4539 = vadd.f32 %v4537, %v4538
      %v4540 = vrot.slane %v4378, 4
      %v4541 = vadd.f32 %v4378, %v4540
      %v4542 = vrot.slane %v4541, 2
      %v4543 = vadd.f32 %v4541, %v4542
      %v4544 = vrot.slane %v4543, 1
      %v4545 = vadd.f32 %v4543, %v4544
      %v4546 = vrot.slane %v4379, 4
      %v4547 = vadd.f32 %v4379, %v4546
      %v4548 = vrot.slane %v4547, 2
      %v4549 = vadd.f32 %v4547, %v4548
      %v4550 = vrot.slane %v4549, 1
      %v4551 = vadd.f32 %v4549, %v4550
      %v4552 = vrot.slane %v4380, 4
      %v4553 = vadd.f32 %v4380, %v4552
      %v4554 = vrot.slane %v4553, 2
      %v4555 = vadd.f32 %v4553, %v4554
      %v4556 = vrot.slane %v4555, 1
      %v4557 = vadd.f32 %v4555, %v4556
      %v4558 = vrot.slane %v4381, 4
      %v4559 = vadd.f32 %v4381, %v4558
      %v4560 = vrot.slane %v4559, 2
      %v4561 = vadd.f32 %v4559, %v4560
      %v4562 = vrot.slane %v4561, 1
      %v4563 = vadd.f32 %v4561, %v4562
      %v4564 = vrot.slane %v4382, 4
      %v4565 = vadd.f32 %v4382, %v4564
      %v4566 = vrot.slane %v4565, 2
      %v4567 = vadd.f32 %v4565, %v4566
      %v4568 = vrot.slane %v4567, 1
      %v4569 = vadd.f32 %v4567, %v4568
      %v4570 = vrot.slane %v4383, 4
      %v4571 = vadd.f32 %v4383, %v4570
      %v4572 = vrot.slane %v4571, 2
      %v4573 = vadd.f32 %v4571, %v4572
      %v4574 = vrot.slane %v4573, 1
      %v4575 = vadd.f32 %v4573, %v4574
      %v4608 = vsel %vm1339, %v4395, %v4389
      %v4609 = vsel %vm1341, %v4401, %v4608
      %v4610 = vsel %vm1343, %v4407, %v4609
      %v4611 = vsel %vm1345, %v4413, %v4610
      %v4612 = vsel %vm1347, %v4419, %v4611
      %v4613 = vsel %vm1349, %v4425, %v4612
      %v4614 = vsel %vm1351, %v4431, %v4613
      %v4615 = vsel %vm1339, %v4443, %v4437
      %v4616 = vsel %vm1341, %v4449, %v4615
      %v4617 = vsel %vm1343, %v4455, %v4616
      %v4618 = vsel %vm1345, %v4461, %v4617
      %v4619 = vsel %vm1347, %v4467, %v4618
      %v4620 = vsel %vm1349, %v4473, %v4619
      %v4621 = vsel %vm1351, %v4479, %v4620
      %v4622 = vsel %vm1339, %v4491, %v4485
      %v4623 = vsel %vm1341, %v4497, %v4622
      %v4624 = vsel %vm1343, %v4503, %v4623
      %v4625 = vsel %vm1345, %v4509, %v4624
      %v4626 = vsel %vm1347, %v4515, %v4625
      %v4627 = vsel %vm1349, %v4521, %v4626
      %v4628 = vsel %vm1351, %v4527, %v4627
      %v4629 = vsel %vm1339, %v4539, %v4533
      %v4630 = vsel %vm1341, %v4545, %v4629
      %v4631 = vsel %vm1343, %v4551, %v4630
      %v4632 = vsel %vm1345, %v4557, %v4631
      %v4633 = vsel %vm1347, %v4563, %v4632
      %v4634 = vsel %vm1349, %v4569, %v4633
      %v4635 = vsel %vm1351, %v4575, %v4634
      %v4640 = vld [vmem:[%s3 + $0x350] sm:$0xff]
      %v4641 = vld [vmem:[%s3 + $0x360] sm:$0xff]
      %v4642 = vld [vmem:[%s3 + $0x370] sm:$0xff]
      %v4643 = vld [vmem:[%s3 + $0x380] sm:$0xff]
      %v4644 = vld [vmem:[%s3 + $0x390] sm:$0xff]
      %v4645 = vld [vmem:[%s3 + $0x3a0] sm:$0xff]
      %v4646 = vld [vmem:[%s3 + $0x3b0] sm:$0xff]
      %v4647 = vld [vmem:[%s3 + $0x3c0] sm:$0xff]
      %v4648 = vld [vmem:[%s3 + $0x3d0] sm:$0xff]
      %v4649 = vld [vmem:[%s3 + $0x3e0] sm:$0xff]
      %v4650 = vld [vmem:[%s3 + $0x3f0] sm:$0xff]
      %v4651 = vld [vmem:[%s3 + $0x400] sm:$0xff]
      %v4652 = vld [vmem:[%s3 + $0x410] sm:$0xff]
      %v4653 = vld [vmem:[%s3 + $0x420] sm:$0xff]
      %v4654 = vld [vmem:[%s3 + $0x430] sm:$0xff]
      %v4655 = vld [vmem:[%s3 + $0x440] sm:$0xff]
      %v4656 = vld [vmem:[%s3 + $0x450] sm:$0xff]
      %v4657 = vld [vmem:[%s3 + $0x460] sm:$0xff]
      %v4658 = vld [vmem:[%s3 + $0x470] sm:$0xff]
      %v4659 = vld [vmem:[%s3 + $0x480] sm:$0xff]
      %v4660 = vld [vmem:[%s3 + $0x490] sm:$0xff]
      %v4661 = vld [vmem:[%s3 + $0x4a0] sm:$0xff]
      %v4662 = vld [vmem:[%s3 + $0x4b0] sm:$0xff]
      %v4663 = vld [vmem:[%s3 + $0x4c0] sm:$0xff]
      %v4664 = vld [vmem:[%s3 + $0x4d0] sm:$0xff]
      %v4665 = vld [vmem:[%s3 + $0x4e0] sm:$0xff]
      %v4666 = vld [vmem:[%s3 + $0x4f0] sm:$0xff]
      %v4667 = vld [vmem:[%s3 + $0x500] sm:$0xff]
      %v4668 = vld [vmem:[%s3 + $0x510] sm:$0xff]
      %v4669 = vld [vmem:[%s3 + $0x520] sm:$0xff]
      %v4670 = vld [vmem:[%s3 + $0x530] sm:$0xff]
      %v4671 = vld [vmem:[%s3 + $0x540] sm:$0xff]
      %v4672 = vld [vmem:[%s3 + $0x550] sm:$0xff]
      %v4673 = vld [vmem:[%s3 + $0x560] sm:$0xff]
      %v4674 = vld [vmem:[%s3 + $0x570] sm:$0xff]
      %v4675 = vld [vmem:[%s3 + $0x580] sm:$0xff]
      %v4676 = vld [vmem:[%s3 + $0x590] sm:$0xff]
      %v4677 = vld [vmem:[%s3 + $0x5a0] sm:$0xff]
      %v4678 = vld [vmem:[%s3 + $0x5b0] sm:$0xff]
      %v4679 = vld [vmem:[%s3 + $0x5c0] sm:$0xff]
      %v4680 = vld [vmem:[%s3 + $0x5d0] sm:$0xff]
      %v4681 = vld [vmem:[%s3 + $0x5e0] sm:$0xff]
      %v4682 = vld [vmem:[%s3 + $0x5f0] sm:$0xff]
      %v4683 = vld [vmem:[%s3 + $0x600] sm:$0xff]
      %v4684 = vld [vmem:[%s3 + $0x610] sm:$0xff]
      %v4685 = vld [vmem:[%s3 + $0x620] sm:$0xff]
      %v4686 = vld [vmem:[%s3 + $0x630] sm:$0xff]
      %v4687 = vld [vmem:[%s3 + $0x640] sm:$0xff]
      %v4688 = vld [vmem:[%s3 + $0x755] ss:$0 sm:$0xff]
      %4689 = vmatprep.subr.mxu0 0.0
      %4690 = vmatpush1.msra.mxu0 %v4640
      %4691 = vmatprep.subr.mxu0 0.0
      %4692 = vmatpush1.msra.mxu0 %v4641
      %4693 = vmatprep.subr.mxu0 0.0
      %4694 = vmatpush1.msra.mxu0 %v4642
      %4695 = vmatprep.subr.mxu0 0.0
      %4696 = vmatpush1.msra.mxu0 %v4643
      %4697 = vmatprep.subr.mxu0 0.0
      %4698 = vmatpush1.msra.mxu0 %v4644
      %4699 = vmatprep.subr.mxu0 0.0
      %4700 = vmatpush1.msra.mxu0 %v4645
      %4701 = vmatprep.subr.mxu0 0.0
      %4702 = vmatpush1.msra.mxu0 %v4646
      %4703 = vmatprep.subr.mxu0 0.0
      %4704 = vmatpush1.msra.mxu0 %v4647
      %4705 = vmatprep.subr.mxu0 0.0
      %4706 = vmatpush1.msra.mxu0 %v4648
      %4707 = vmatprep.subr.mxu0 0.0
      %4708 = vmatpush1.msra.mxu0 %v4649
      %4709 = vmatprep.subr.mxu0 0.0
      %4710 = vmatpush1.msra.mxu0 %v4650
      %4711 = vmatprep.subr.mxu0 0.0
      %4712 = vmatpush1.msra.mxu0 %v4651
      %4713 = vmatprep.subr.mxu0 0.0
      %4714 = vmatpush1.msra.mxu0 %v4652
      %4715 = vmatprep.subr.mxu0 0.0
      %4716 = vmatpush1.msra.mxu0 %v4653
      %4717 = vmatprep.subr.mxu0 0.0
      %4718 = vmatpush1.msra.mxu0 %v4654
      %4719 = vmatprep.subr.mxu0 0.0
      %4720 = vmatpush1.msra.mxu0 %v4655
      %4721 = vmatprep.subr.mxu0 0.0
      %4722 = vmatpush1.msra.mxu0 %v4656
      %4723 = vmatprep.subr.mxu0 0.0
      %4724 = vmatpush1.msra.mxu0 %v4657
      %4725 = vmatprep.subr.mxu0 0.0
      %4726 = vmatpush1.msra.mxu0 %v4658
      %4727 = vmatprep.subr.mxu0 0.0
      %4728 = vmatpush1.msra.mxu0 %v4659
      %4729 = vmatprep.subr.mxu0 0.0
      %4730 = vmatpush1.msra.mxu0 %v4660
      %4731 = vmatprep.subr.mxu0 0.0
      %4732 = vmatpush1.msra.mxu0 %v4661
      %4733 = vmatprep.subr.mxu0 0.0
      %4734 = vmatpush1.msra.mxu0 %v4662
      %4735 = vmatprep.subr.mxu0 0.0
      %4736 = vmatpush1.msra.mxu0 %v4663
      %4737 = vmatprep.subr.mxu0 0.0
      %4738 = vmatpush1.msra.mxu0 %v4664
      %4739 = vmatprep.subr.mxu0 0.0
      %4740 = vmatpush1.msra.mxu0 %v4665
      %4741 = vmatprep.subr.mxu0 0.0
      %4742 = vmatpush1.msra.mxu0 %v4666
      %4743 = vmatprep.subr.mxu0 0.0
      %4744 = vmatpush1.msra.mxu0 %v4667
      %4745 = vmatprep.subr.mxu0 0.0
      %4746 = vmatpush1.msra.mxu0 %v4668
      %4747 = vmatprep.subr.mxu0 0.0
      %4748 = vmatpush1.msra.mxu0 %v4669
      %4749 = vmatprep.subr.mxu0 0.0
      %4750 = vmatpush1.msra.mxu0 %v4670
      %4751 = vmatprep.subr.mxu0 0.0
      %4752 = vmatpush1.msra.mxu0 %v4671
      %4753 = vmatprep.mubr.f32.mxu0 %v4614
      %4754 = vmatmul.mubr.f32.gmra.mrb[0].mxu0 %v2997
      %v4755 = vpop.f32.mrb[0].mxu0
      %v4756 = vadd.f32 %v4688, %v4755
      %v4757 = vpop.f32.mrb[0].mxu0
      %4758 = vmatprep.mubr.f32.mxu0 %v4621
      %4759 = vmatmul.mubr.f32.gmra.mrb[0].mxu0 %v3002
      %v4760 = vpop.f32.mrb[0].mxu0
      %v4761 = vadd.f32 %v4688, %v4760
      %v4762 = vpop.f32.mrb[0].mxu0
      %4763 = vmatprep.mubr.f32.mxu0 %v4628
      %4764 = vmatmul.mubr.f32.gmra.mrb[0].mxu0 %v3007
      %v4765 = vpop.f32.mrb[0].mxu0
      %v4766 = vadd.f32 %v4688, %v4765
      %v4767 = vpop.f32.mrb[0].mxu0
      %4768 = vmatprep.mubr.f32.mxu0 %v4635
      %4769 = vmatmul.mubr.f32.gmra.mrb[0].mxu0 %v3012
      %v4770 = vpop.f32.mrb[0].mxu0
      %v4771 = vadd.f32 %v4688, %v4770
      %v4772 = vpop.f32.mrb[0].mxu0
      %4773 = vdwg.mxu0
      %4774 = vmatprep.subr.mxu0 0.0
      %4775 = vmatpush1.msra.mxu0 %v4672
      %4776 = vmatprep.subr.mxu0 0.0
      %4777 = vmatpush1.msra.mxu0 %v4673
      %4778 = vmatprep.subr.mxu0 0.0
      %4779 = vmatpush1.msra.mxu0 %v4674
      %4780 = vmatprep.subr.mxu0 0.0
      %4781 = vmatpush1.msra.mxu0 %v4675
      %4782 = vmatprep.subr.mxu0 0.0
      %4783 = vmatpush1.msra.mxu0 %v4676
      %4784 = vmatprep.subr.mxu0 0.0
      %4785 = vmatpush1.msra.mxu0 %v4677
      %4786 = vmatprep.subr.mxu0 0.0
      %4787 = vmatpush1.msra.mxu0 %v4678
      %4788 = vmatprep.subr.mxu0 0.0
      %4789 = vmatpush1.msra.mxu0 %v4679
      %4790 = vmatprep.subr.mxu0 0.0
      %4791 = vmatpush1.msra.mxu0 %v4680
      %4792 = vmatprep.subr.mxu0 0.0
      %4793 = vmatpush1.msra.mxu0 %v4681
      %4794 = vmatprep.subr.mxu0 0.0
      %4795 = vmatpush1.msra.mxu0 %v4682
      %4796 = vmatprep.subr.mxu0 0.0
      %4797 = vmatpush1.msra.mxu0 %v4683
      %4798 = vmatprep.subr.mxu0 0.0
      %4799 = vmatpush1.msra.mxu0 %v4684
      %4800 = vmatprep.subr.mxu0 0.0
      %4801 = vmatpush1.msra.mxu0 %v4685
      %4802 = vmatprep.subr.mxu0 0.0
      %4803 = vmatpush1.msra.mxu0 %v4686
      %4804 = vmatprep.subr.mxu0 0.0
      %4805 = vmatpush1.msra.mxu0 %v4687
      %4806 = vmatprep.subr.mxu0 0.0
      %4807 = vmatpush1.msra.mxu0 0.0
      %4808 = vmatprep.subr.mxu0 0.0
      %4809 = vmatpush1.msra.mxu0 0.0
      %4810 = vmatprep.subr.mxu0 0.0
      %4811 = vmatpush1.msra.mxu0 0.0
      %4812 = vmatprep.subr.mxu0 0.0
      %4813 = vmatpush1.msra.mxu0 0.0
      %4814 = vmatprep.subr.mxu0 0.0
      %4815 = vmatpush1.msra.mxu0 0.0
      %4816 = vmatprep.subr.mxu0 0.0
      %4817 = vmatpush1.msra.mxu0 0.0
      %4818 = vmatprep.subr.mxu0 0.0
      %4819 = vmatpush1.msra.mxu0 0.0
      %4820 = vmatprep.subr.mxu0 0.0
      %4821 = vmatpush1.msra.mxu0 0.0
      %4822 = vmatprep.subr.mxu0 0.0
      %4823 = vmatpush1.msra.mxu0 0.0
      %4824 = vmatprep.subr.mxu0 0.0
      %4825 = vmatpush1.msra.mxu0 0.0
      %4826 = vmatprep.subr.mxu0 0.0
      %4827 = vmatpush1.msra.mxu0 0.0
      %4828 = vmatprep.subr.mxu0 0.0
      %4829 = vmatpush1.msra.mxu0 0.0
      %4830 = vmatprep.subr.mxu0 0.0
      %4831 = vmatpush1.msra.mxu0 0.0
      %4832 = vmatprep.subr.mxu0 0.0
      %4833 = vmatpush1.msra.mxu0 0.0
      %4834 = vmatprep.subr.mxu0 0.0
      %4835 = vmatpush1.msra.mxu0 0.0
      %4836 = vmatprep.subr.mxu0 0.0
      %4837 = vmatpush1.msra.mxu0 0.0
      %4838 = vmatprep.mubr.f32.mxu0 0.0
      %4839 = vmatmul.mubr.f32.gmra.mrb[0].mxu0 %v1136
      %v4840 = vpop.f32.mrb[0].mxu0
      %v4841 = vadd.f32 %v4756, %v4840
      %v4842 = vpop.f32.mrb[0].mxu0
      %4843 = vmatprep.mubr.f32.mxu0 0.0
      %4844 = vmatmul.mubr.f32.gmra.mrb[0].mxu0 %v1141
      %v4845 = vpop.f32.mrb[0].mxu0
      %v4846 = vadd.f32 %v4761, %v4845
      %v4847 = vpop.f32.mrb[0].mxu0
      %4848 = vmatprep.mubr.f32.mxu0 0.0
      %4849 = vmatmul.mubr.f32.gmra.mrb[0].mxu0 %v1146
      %v4850 = vpop.f32.mrb[0].mxu0
      %v4851 = vadd.f32 %v4766, %v4850
      %v4852 = vpop.f32.mrb[0].mxu0
      %4853 = vmatprep.mubr.f32.mxu0 0.0
      %4854 = vmatmul.mubr.f32.gmra.mrb[0].mxu0 %v1151
      %v4855 = vpop.f32.mrb[0].mxu0
      %v4856 = vadd.f32 %v4771, %v4855
      %v4857 = vpop.f32.mrb[0].mxu0
      %4858 = vdwg.mxu0
      %v4859 = vmax.f32 %v4841, 0.0
      %v4860 = vmax.f32 %v4846, 0.0
      %v4861 = vmax.f32 %v4851, 0.0
      %v4862 = vmax.f32 %v4856, 0.0
      %v4863 = vld [vmem:[%s3 + $0x650] sm:$0xff]
      %v4864 = vld [vmem:[%s3 + $0x660] sm:$0xff]
      %v4865 = vld [vmem:[%s3 + $0x670] sm:$0xff]
      %v4866 = vld [vmem:[%s3 + $0x680] sm:$0xff]
      %v4867 = vld [vmem:[%s3 + $0x690] sm:$0xff]
      %v4868 = vld [vmem:[%s3 + $0x6a0] sm:$0xff]
      %v4869 = vld [vmem:[%s3 + $0x6b0] sm:$0xff]
      %v4870 = vld [vmem:[%s3 + $0x6c0] sm:$0xff]
      %v4871 = vld [vmem:[%s3 + $0x6d0] sm:$0xff]
      %v4872 = vld [vmem:[%s3 + $0x6e0] sm:$0xff]
      %v4873 = vld [vmem:[%s3 + $0x6f0] sm:$0xff]
      %v4874 = vld [vmem:[%s3 + $0x700] sm:$0xff]
      %v4875 = vld [vmem:[%s3 + $0x710] sm:$0xff]
      %v4876 = vld [vmem:[%s3 + $0x720] sm:$0xff]
      %v4877 = vld [vmem:[%s3 + $0x730] sm:$0xff]
      %v4878 = vld [vmem:[%s3 + $0x740] sm:$0xff]
      %v4879 = vld [vmem:[%s3 + $0x756] ss:$0 sm:$0xff]
      %4880 = vmatprep.subr.mxu0 0.0
      %4881 = vmatpush1.msra.mxu0 %v4863
      %4882 = vmatprep.subr.mxu0 0.0
      %4883 = vmatpush1.msra.mxu0 %v4864
      %4884 = vmatprep.subr.mxu0 0.0
      %4885 = vmatpush1.msra.mxu0 %v4865
      %4886 = vmatprep.subr.mxu0 0.0
      %4887 = vmatpush1.msra.mxu0 %v4866
      %4888 = vmatprep.subr.mxu0 0.0
      %4889 = vmatpush1.msra.mxu0 %v4867
      %4890 = vmatprep.subr.mxu0 0.0
      %4891 = vmatpush1.msra.mxu0 %v4868
      %4892 = vmatprep.subr.mxu0 0.0
      %4893 = vmatpush1.msra.mxu0 %v4869
      %4894 = vmatprep.subr.mxu0 0.0
      %4895 = vmatpush1.msra.mxu0 %v4870
      %4896 = vmatprep.subr.mxu0 0.0
      %4897 = vmatpush1.msra.mxu0 %v4871
      %4898 = vmatprep.subr.mxu0 0.0
      %4899 = vmatpush1.msra.mxu0 %v4872
      %4900 = vmatprep.subr.mxu0 0.0
      %4901 = vmatpush1.msra.mxu0 %v4873
      %4902 = vmatprep.subr.mxu0 0.0
      %4903 = vmatpush1.msra.mxu0 %v4874
      %4904 = vmatprep.subr.mxu0 0.0
      %4905 = vmatpush1.msra.mxu0 %v4875
      %4906 = vmatprep.subr.mxu0 0.0
      %4907 = vmatpush1.msra.mxu0 %v4876
      %4908 = vmatprep.subr.mxu0 0.0
      %4909 = vmatpush1.msra.mxu0 %v4877
      %4910 = vmatprep.subr.mxu0 0.0
      %4911 = vmatpush1.msra.mxu0 %v4878
      %4912 = vmatprep.subr.mxu0 0.0
      %4913 = vmatpush1.msra.mxu0 0.0
      %4914 = vmatprep.subr.mxu0 0.0
      %4915 = vmatpush1.msra.mxu0 0.0
      %4916 = vmatprep.subr.mxu0 0.0
      %4917 = vmatpush1.msra.mxu0 0.0
      %4918 = vmatprep.subr.mxu0 0.0
      %4919 = vmatpush1.msra.mxu0 0.0
      %4920 = vmatprep.subr.mxu0 0.0
      %4921 = vmatpush1.msra.mxu0 0.0
      %4922 = vmatprep.subr.mxu0 0.0
      %4923 = vmatpush1.msra.mxu0 0.0
      %4924 = vmatprep.subr.mxu0 0.0
      %4925 = vmatpush1.msra.mxu0 0.0
      %4926 = vmatprep.subr.mxu0 0.0
      %4927 = vmatpush1.msra.mxu0 0.0
      %4928 = vmatprep.subr.mxu0 0.0
      %4929 = vmatpush1.msra.mxu0 0.0
      %4930 = vmatprep.subr.mxu0 0.0
      %4931 = vmatpush1.msra.mxu0 0.0
      %4932 = vmatprep.subr.mxu0 0.0
      %4933 = vmatpush1.msra.mxu0 0.0
      %4934 = vmatprep.subr.mxu0 0.0
      %4935 = vmatpush1.msra.mxu0 0.0
      %4936 = vmatprep.subr.mxu0 0.0
      %4937 = vmatpush1.msra.mxu0 0.0
      %4938 = vmatprep.subr.mxu0 0.0
      %4939 = vmatpush1.msra.mxu0 0.0
      %4940 = vmatprep.subr.mxu0 0.0
      %4941 = vmatpush1.msra.mxu0 0.0
      %4942 = vmatprep.subr.mxu0 0.0
      %4943 = vmatpush1.msra.mxu0 0.0
      %4944 = vmatprep.mubr.f32.mxu0 0.0
      %4945 = vmatmul.mubr.f32.gmra.mrb[0].mxu0 %v4859
      %v4946 = vpop.f32.mrb[0].mxu0
      %v4947 = vadd.f32 %v4879, %v4946
      %v4948 = vpop.f32.mrb[0].mxu0
      %4949 = vmatprep.mubr.f32.mxu0 0.0
      %4950 = vmatmul.mubr.f32.gmra.mrb[0].mxu0 %v4860
      %v4951 = vpop.f32.mrb[0].mxu0
      %v4952 = vadd.f32 %v4879, %v4951
      %v4953 = vpop.f32.mrb[0].mxu0
      %4954 = vmatprep.mubr.f32.mxu0 0.0
      %4955 = vmatmul.mubr.f32.gmra.mrb[0].mxu0 %v4861
      %v4956 = vpop.f32.mrb[0].mxu0
      %v4957 = vadd.f32 %v4879, %v4956
      %v4958 = vpop.f32.mrb[0].mxu0
      %4959 = vmatprep.mubr.f32.mxu0 0.0
      %4960 = vmatmul.mubr.f32.gmra.mrb[0].mxu0 %v4862
      %v4961 = vpop.f32.mrb[0].mxu0
      %v4962 = vadd.f32 %v4879, %v4961
      %v4963 = vpop.f32.mrb[0].mxu0
      %4964 = vdwg.mxu0
      %4965 = vst [vmem:[%s243] sm:$0xff] %v4947
      %4966 = vst [vmem:[%s243 + $0x8] sm:$0xff] %v4952
      %4967 = vst [vmem:[%s243 + $0x10] sm:$0xff] %v4957
      %4968 = vst [vmem:[%s243 + $0x18] sm:$0xff] %v4962
      %s4969 = smul.u32 4, %s15
      %p4970 = scmp.lt.s32.totalorder %s4969, 15
      %s4971 = scalar_select %p4970, %s4969, 15
      %s4972 = smul.addr %s4971, 8
      %s4973 = scalar_lea.vmem %s4, %s4972
      // Predicated region
      $region37: #{local_global_decoder.1} parent=35 // pred_check
        %p4974 = pneg %p132
      $region38: #{local_global_decoder.1} parent=35 // pred_check_branch
        %4976 = sbr.rel (%p4974) target = $region40
      $region39: #{local_global_decoder.1} parent=35 // pred_region
        %s4977 = smul.u32 4, %s15
      $region40: #{local_global_decoder.1} parent=35 // pred_fallthru
        _
    $region36: #{local_global_decoder.1} parent=5 // pred_fallthru
      _
    %p4978 = scmp.le.s32.totalorder 2, %s10
    // Predicated region
    $region41: #{local_global_decoder.1} parent=5 // pred_check
      %p4979 = pneg %p4978
    $region42: #{local_global_decoder.1} parent=5 // pred_check_branch
      %4981 = sbr.rel (%p4979) target = $region44
    $region43: #{local_global_decoder.1} parent=5 // pred_region
      %s4982 = ssub.s32 %s10, 2
      // Predicated region
      $region45: #{local_global_decoder.1} parent=43 // pred_check
        %p4983 = pneg %p138
      $region46: #{local_global_decoder.1} parent=43 // pred_check_branch
        %4985 = sbr.rel (%p4983) target = $region48
      $region47: #{local_global_decoder.1} parent=43 // pred_region
        %s4986 = smul.u32 4, %s16
        %p4987 = scmp.lt.s32.totalorder %s4986, 15
        %s4988 = scalar_select %p4987, %s4986, 15
        %s4989 = smul.addr %s4988, 8
        %s4990 = scalar_lea.vmem %s4, %s4989
      $region48: #{local_global_decoder.1} parent=43 // pred_fallthru
        _
    $region44: #{local_global_decoder.1} parent=5 // pred_fallthru
      _
  $region6: #{local_global_decoder.1} parent=0 // loop_footer
    %s14 = sadd.s32 1, %s10
  $region7: #{local_global_decoder.1} parent=0 // loop_footer_branch
    %9 = sbr.rel target = $region3
  $region8: #{local_global_decoder.1} parent=0 // loop_exit
    _

</llo_original>
